<compile_context>
chip_gen: v7x
topology: tpu7x:2x2x1
jax: 0.10.0
libtpu: 0.0.40
codegen_flags: <defaults>
</compile_context>

<pallas_src>
import functools

import jax
import jax.numpy as jnp
from jax.experimental import pallas as pl
from jax.experimental.pallas import tpu as pltpu

_LANE = 128  # TPU lane width; channels are padded to a multiple of this.


def _round_up(c, m=_LANE):
    return ((c + m - 1) // m) * m


def _im2col(x, H, W):
    """x: (H+2, W+2, C) value (spatially pre-padded). Returns (H*W, 9*C)."""
    cols = [x[dy:dy + H, dx:dx + W, :] for dy in range(3) for dx in range(3)]
    patch = jnp.concatenate(cols, axis=-1)          # (H, W, 9*C), lane-aligned
    return patch.reshape(H * W, patch.shape[-1])    # collapse leading dims only


def double_conv_kernel(x_ref, w1_ref, s1_ref, b1_ref, w2_ref, s2_ref, b2_ref,
                       o_ref, *, H, W):
    x = x_ref[0]                                    # (H+2, W+2, Cin_p) f32
    c2 = w1_ref.shape[-1]                           # Cout_p (lane-padded)

    # ---- conv1: single im2col matmul (bf16 MXU, f32 accum) + BN + ReLU ----
    p1 = _im2col(x, H, W).astype(jnp.bfloat16)      # (H*W, 9*Cin_p)
    h1 = jnp.dot(p1, w1_ref[...], preferred_element_type=jnp.float32)
    h1 = jnp.maximum(h1 * s1_ref[...] + b1_ref[...], 0.0)    # (H*W, Cout_p) f32
    h1 = h1.reshape(H, W, c2)

    # ---- zero-pad intermediate in registers (no VMEM scratch round trip) ----
    zr = jnp.zeros((1, W, c2), h1.dtype)
    zc = jnp.zeros((H + 2, 1, c2), h1.dtype)
    h1p = jnp.concatenate([zr, h1, zr], axis=0)     # (H+2, W,   Cout_p)
    h1p = jnp.concatenate([zc, h1p, zc], axis=1)    # (H+2, W+2, Cout_p)

    # ---- conv2: single im2col matmul + BN + ReLU ----
    p2 = _im2col(h1p, H, W).astype(jnp.bfloat16)    # (H*W, 9*Cout_p)
    h2 = jnp.dot(p2, w2_ref[...], preferred_element_type=jnp.float32)
    h2 = jnp.maximum(h2 * s2_ref[...] + b2_ref[...], 0.0)

    o_ref[0] = h2.reshape(H, W, c2)                 # lane-dense (last dim 128k)


def double_conv_forward(x_nchw, folded):
    """x_nchw: (N, Cin, H, W) float32; folded: dict from fold_params."""
    N, Cin, H, W = x_nchw.shape
    cin_p, cout_p, cout = folded["cin_p"], folded["cout_p"], folded["cout"]

    # layout adaptation (single pad op handles halo + lane padding together)
    x_nhwc = jnp.transpose(x_nchw, (0, 2, 3, 1)).astype(jnp.float32)
    x_pad = jnp.pad(x_nhwc, ((0, 0), (1, 1), (1, 1), (0, cin_p - Cin)))

    kernel = functools.partial(double_conv_kernel, H=H, W=W)
    out_nhwc = pl.pallas_call(
        kernel,
        out_shape=jax.ShapeDtypeStruct((N, H, W, cout_p), jnp.float32),
        grid_spec=pltpu.PrefetchScalarGridSpec(
            num_scalar_prefetch=0,
            grid=(N,),                               # one image per grid step
            in_specs=[
                pl.BlockSpec((1, H + 2, W + 2, cin_p), lambda n: (n, 0, 0, 0)),
                pl.BlockSpec((9 * cin_p, cout_p), lambda n: (0, 0)),
                pl.BlockSpec((1, cout_p), lambda n: (0, 0)),
                pl.BlockSpec((1, cout_p), lambda n: (0, 0)),
                pl.BlockSpec((9 * cout_p, cout_p), lambda n: (0, 0)),
                pl.BlockSpec((1, cout_p), lambda n: (0, 0)),
                pl.BlockSpec((1, cout_p), lambda n: (0, 0)),
            ],
            out_specs=pl.BlockSpec((1, H, W, cout_p), lambda n: (n, 0, 0, 0)),
        ),
        compiler_params=pltpu.CompilerParams(
            dimension_semantics=("parallel",),       # batch axis -> megacore
            vmem_limit_bytes=64 * 1024 * 1024),
    )(x_pad, folded["w1"], folded["s1"], folded["b1"],
      folded["w2"], folded["s2"], folded["b2"])

    # drop padded channels, back to NCHW
    return jnp.transpose(out_nhwc[..., :cout], (0, 3, 1, 2))


# ---------------------------------------------------------------------------
# deterministic parameter construction + BN folding / weight repacking
# ---------------------------------------------------------------------------
def init_raw_params(key, in_ch, out_ch):
    ks = jax.random.split(key, 12)
    eps = 1e-5
    raw = dict(eps=eps)
    # conv weights in PyTorch OIHW layout
    raw["w1"] = 0.1 * jax.random.normal(ks[0], (out_ch, in_ch, 3, 3), jnp.float32)
    raw["b1"] = 0.1 * jax.random.normal(ks[1], (out_ch,), jnp.float32)
    raw["g1"] = 1.0 + 0.1 * jax.random.normal(ks[2], (out_ch,), jnp.float32)
    raw["beta1"] = 0.1 * jax.random.normal(ks[3], (out_ch,), jnp.float32)
    raw["m1"] = 0.1 * jax.random.normal(ks[4], (out_ch,), jnp.float32)
    raw["v1"] = jnp.abs(jax.random.normal(ks[5], (out_ch,), jnp.float32)) + 0.5
    raw["w2"] = 0.1 * jax.random.normal(ks[6], (out_ch, out_ch, 3, 3), jnp.float32)
    raw["b2"] = 0.1 * jax.random.normal(ks[7], (out_ch,), jnp.float32)
    raw["g2"] = 1.0 + 0.1 * jax.random.normal(ks[8], (out_ch,), jnp.float32)
    raw["beta2"] = 0.1 * jax.random.normal(ks[9], (out_ch,), jnp.float32)
    raw["m2"] = 0.1 * jax.random.normal(ks[10], (out_ch,), jnp.float32)
    raw["v2"] = jnp.abs(jax.random.normal(ks[11], (out_ch,), jnp.float32)) + 0.5
    return raw


def fold_params(raw):
    """Fold conv bias + eval-mode BN into per-channel scale/bias; repack conv
    weights OIHW -> im2col (9*Cin_p, Cout_p) bf16 with lane-padded channels."""
    eps = raw["eps"]
    out = {}
    for i in ("1", "2"):
        w = raw["w" + i]                              # (O, I, 3, 3)
        O, I = w.shape[0], w.shape[1]
        Op, Ip = _round_up(O), _round_up(I)
        w = jnp.transpose(w, (2, 3, 1, 0))            # (3, 3, I, O) = HWIO
        w = jnp.pad(w, ((0, 0), (0, 0), (0, Ip - I), (0, Op - O)))
        # rows ordered (dy, dx, cin) to match the kernel's tap-concat order
        out["w" + i] = w.reshape(9 * Ip, Op).astype(jnp.bfloat16)

        s = raw["g" + i] / jnp.sqrt(raw["v" + i] + eps)
        b = (raw["b" + i] - raw["m" + i]) * s + raw["beta" + i]
        out["s" + i] = jnp.pad(s, (0, Op - O)).reshape(1, Op).astype(jnp.float32)
        out["b" + i] = jnp.pad(b, (0, Op - O)).reshape(1, Op).astype(jnp.float32)
    out["cin"] = raw["w1"].shape[1]
    out["cout"] = raw["w1"].shape[0]
    out["cin_p"] = _round_up(out["cin"])
    out["cout_p"] = _round_up(out["cout"])
    return out


def reference_forward(x_nchw, raw):
    """Plain-JAX NCHW reference mimicking the PyTorch module in eval mode."""
    eps = raw["eps"]

    def conv(x, w, b):
        y = jax.lax.conv_general_dilated(
            x, w, window_strides=(1, 1), padding=((1, 1), (1, 1)),
            dimension_numbers=("NCHW", "OIHW", "NCHW"))
        return y + b[None, :, None, None]

    def bn(x, g, beta, m, v):
        return (g[None, :, None, None] * (x - m[None, :, None, None])
                / jnp.sqrt(v[None, :, None, None] + eps)
                + beta[None, :, None, None])

    h = jax.nn.relu(bn(conv(x_nchw, raw["w1"], raw["b1"]),
                       raw["g1"], raw["beta1"], raw["m1"], raw["v1"]))
    h = jax.nn.relu(bn(conv(h, raw["w2"], raw["b2"]),
                       raw["g2"], raw["beta2"], raw["m2"], raw["v2"]))
    return h


if __name__ == "__main__":
    N, Cin, Cout, H, W = 2, 4, 8, 16, 16
    key = jax.random.PRNGKey(0)
    kx, kp = jax.random.split(key)
    x = jax.random.normal(kx, (N, Cin, H, W), jnp.float32)

    raw = init_raw_params(kp, Cin, Cout)
    folded = fold_params(raw)

    out = double_conv_forward(x, folded)
    out = jax.block_until_ready(out)

    ref = jax.block_until_ready(reference_forward(x, raw))
    assert out.shape == (N, Cout, H, W)
    # tolerance loosened slightly: matmuls run with bf16 operands (f32 accum)
    assert jnp.allclose(out, ref, atol=3e-2, rtol=3e-2), (
        float(jnp.max(jnp.abs(out - ref))))

    print("KERNEL_OK")
</pallas_src>

<mosaic_0001>
module attributes {stable_mosaic.version = 11 : i64} {
  func.func @double_conv_kernel(%arg0: i32, %arg1: memref<1x18x18x128xf32, #tpu.memory_space<vmem>>, %arg2: memref<1152x128xbf16, #tpu.memory_space<vmem>>, %arg3: memref<1x128xf32, #tpu.memory_space<vmem>>, %arg4: memref<1x128xf32, #tpu.memory_space<vmem>>, %arg5: memref<1152x128xbf16, #tpu.memory_space<vmem>>, %arg6: memref<1x128xf32, #tpu.memory_space<vmem>>, %arg7: memref<1x128xf32, #tpu.memory_space<vmem>>, %arg8: memref<1x16x16x128xf32, #tpu.memory_space<vmem>>) attributes {dimension_semantics = [#tpu.dimension_semantics<parallel>], iteration_bounds = array<i64: 2>, scalar_prefetch = 0 : i64, scratch_operands = 0 : i64, tpu.core_type = #tpu.core_type<tc>, window_params = [{transform_indices = @transform_0, window_bounds = array<i64: 1, 18, 18, 128>}, {pipeline_mode = #tpu.pipeline_mode<synchronous>, transform_indices = @transform_1, window_bounds = array<i64: 1152, 128>}, {pipeline_mode = #tpu.pipeline_mode<synchronous>, transform_indices = @transform_2, window_bounds = array<i64: 1, 128>}, {pipeline_mode = #tpu.pipeline_mode<synchronous>, transform_indices = @transform_3, window_bounds = array<i64: 1, 128>}, {pipeline_mode = #tpu.pipeline_mode<synchronous>, transform_indices = @transform_4, window_bounds = array<i64: 1152, 128>}, {pipeline_mode = #tpu.pipeline_mode<synchronous>, transform_indices = @transform_5, window_bounds = array<i64: 1, 128>}, {pipeline_mode = #tpu.pipeline_mode<synchronous>, transform_indices = @transform_6, window_bounds = array<i64: 1, 128>}, {transform_indices = @transform_7, window_bounds = array<i64: 1, 16, 16, 128>}]} {
    %c0 = arith.constant 0 : index
    %c0_0 = arith.constant 0 : index
    %c0_1 = arith.constant 0 : index
    %c0_2 = arith.constant 0 : index
    %0 = vector.load %arg1[%c0, %c0_0, %c0_1, %c0_2] : memref<1x18x18x128xf32, #tpu.memory_space<vmem>>, vector<1x18x18x128xf32>
    %1 = vector.shape_cast %0 : vector<1x18x18x128xf32> to vector<18x18x128xf32>
    %2 = vector.extract_strided_slice %1 {offsets = [0, 0, 0], sizes = [16, 16, 128], strides = [1, 1, 1]} : vector<18x18x128xf32> to vector<16x16x128xf32>
    %3 = vector.extract_strided_slice %1 {offsets = [0, 1, 0], sizes = [16, 16, 128], strides = [1, 1, 1]} : vector<18x18x128xf32> to vector<16x16x128xf32>
    %4 = vector.extract_strided_slice %1 {offsets = [0, 2, 0], sizes = [16, 16, 128], strides = [1, 1, 1]} : vector<18x18x128xf32> to vector<16x16x128xf32>
    %5 = vector.extract_strided_slice %1 {offsets = [1, 0, 0], sizes = [16, 16, 128], strides = [1, 1, 1]} : vector<18x18x128xf32> to vector<16x16x128xf32>
    %6 = vector.extract_strided_slice %1 {offsets = [1, 1, 0], sizes = [16, 16, 128], strides = [1, 1, 1]} : vector<18x18x128xf32> to vector<16x16x128xf32>
    %7 = vector.extract_strided_slice %1 {offsets = [1, 2, 0], sizes = [16, 16, 128], strides = [1, 1, 1]} : vector<18x18x128xf32> to vector<16x16x128xf32>
    %8 = vector.extract_strided_slice %1 {offsets = [2, 0, 0], sizes = [16, 16, 128], strides = [1, 1, 1]} : vector<18x18x128xf32> to vector<16x16x128xf32>
    %9 = vector.extract_strided_slice %1 {offsets = [2, 1, 0], sizes = [16, 16, 128], strides = [1, 1, 1]} : vector<18x18x128xf32> to vector<16x16x128xf32>
    %10 = vector.extract_strided_slice %1 {offsets = [2, 2, 0], sizes = [16, 16, 128], strides = [1, 1, 1]} : vector<18x18x128xf32> to vector<16x16x128xf32>
    %11 = tpu.concatenate %2, %3, %4, %5, %6, %7, %8, %9, %10 in 2 : vector<16x16x128xf32>, vector<16x16x128xf32>, vector<16x16x128xf32>, vector<16x16x128xf32>, vector<16x16x128xf32>, vector<16x16x128xf32>, vector<16x16x128xf32>, vector<16x16x128xf32>, vector<16x16x128xf32> -> vector<16x16x1152xf32>
    %12 = vector.shape_cast %11 : vector<16x16x1152xf32> to vector<256x1152xf32>
    %13 = arith.truncf %12 : vector<256x1152xf32> to vector<256x1152xbf16>
    %c0_3 = arith.constant 0 : index
    %c0_4 = arith.constant 0 : index
    %14 = vector.load %arg2[%c0_3, %c0_4] : memref<1152x128xbf16, #tpu.memory_space<vmem>>, vector<1152x128xbf16>
    %cst = arith.constant dense<0.000000e+00> : vector<256x128xf32>
    %15 = tpu.matmul %13, %14, %cst {dimension_numbers = #tpu.dot_dimension_numbers<[1], [0], [0], [1], [0, 0, 1, 1], [], []>} : vector<256x1152xbf16>, vector<1152x128xbf16>, vector<256x128xf32> -> vector<256x128xf32>
    %c0_5 = arith.constant 0 : index
    %c0_6 = arith.constant 0 : index
    %16 = vector.load %arg3[%c0_5, %c0_6] : memref<1x128xf32, #tpu.memory_space<vmem>>, vector<1x128xf32>
    %17 = vector.broadcast %16 : vector<1x128xf32> to vector<256x128xf32>
    %18 = arith.mulf %15, %17 : vector<256x128xf32>
    %c0_7 = arith.constant 0 : index
    %c0_8 = arith.constant 0 : index
    %19 = vector.load %arg4[%c0_7, %c0_8] : memref<1x128xf32, #tpu.memory_space<vmem>>, vector<1x128xf32>
    %20 = vector.broadcast %19 : vector<1x128xf32> to vector<256x128xf32>
    %21 = arith.addf %18, %20 : vector<256x128xf32>
    %cst_9 = arith.constant 0.000000e+00 : f32
    %22 = vector.broadcast %cst_9 : f32 to vector<256x128xf32>
    %23 = arith.maximumf %21, %22 : vector<256x128xf32>
    %24 = vector.shape_cast %23 : vector<256x128xf32> to vector<16x16x128xf32>
    %cst_10 = arith.constant 0.000000e+00 : f32
    %25 = vector.broadcast %cst_10 : f32 to vector<1x16x128xf32>
    %cst_11 = arith.constant 0.000000e+00 : f32
    %26 = vector.broadcast %cst_11 : f32 to vector<18x1x128xf32>
    %27 = tpu.concatenate %25, %24, %25 in 0 : vector<1x16x128xf32>, vector<16x16x128xf32>, vector<1x16x128xf32> -> vector<18x16x128xf32>
    %28 = tpu.concatenate %26, %27, %26 in 1 : vector<18x1x128xf32>, vector<18x16x128xf32>, vector<18x1x128xf32> -> vector<18x18x128xf32>
    %29 = vector.extract_strided_slice %28 {offsets = [0, 0, 0], sizes = [16, 16, 128], strides = [1, 1, 1]} : vector<18x18x128xf32> to vector<16x16x128xf32>
    %30 = vector.extract_strided_slice %28 {offsets = [0, 1, 0], sizes = [16, 16, 128], strides = [1, 1, 1]} : vector<18x18x128xf32> to vector<16x16x128xf32>
    %31 = vector.extract_strided_slice %28 {offsets = [0, 2, 0], sizes = [16, 16, 128], strides = [1, 1, 1]} : vector<18x18x128xf32> to vector<16x16x128xf32>
    %32 = vector.extract_strided_slice %28 {offsets = [1, 0, 0], sizes = [16, 16, 128], strides = [1, 1, 1]} : vector<18x18x128xf32> to vector<16x16x128xf32>
    %33 = vector.extract_strided_slice %28 {offsets = [1, 1, 0], sizes = [16, 16, 128], strides = [1, 1, 1]} : vector<18x18x128xf32> to vector<16x16x128xf32>
    %34 = vector.extract_strided_slice %28 {offsets = [1, 2, 0], sizes = [16, 16, 128], strides = [1, 1, 1]} : vector<18x18x128xf32> to vector<16x16x128xf32>
    %35 = vector.extract_strided_slice %28 {offsets = [2, 0, 0], sizes = [16, 16, 128], strides = [1, 1, 1]} : vector<18x18x128xf32> to vector<16x16x128xf32>
    %36 = vector.extract_strided_slice %28 {offsets = [2, 1, 0], sizes = [16, 16, 128], strides = [1, 1, 1]} : vector<18x18x128xf32> to vector<16x16x128xf32>
    %37 = vector.extract_strided_slice %28 {offsets = [2, 2, 0], sizes = [16, 16, 128], strides = [1, 1, 1]} : vector<18x18x128xf32> to vector<16x16x128xf32>
    %38 = tpu.concatenate %29, %30, %31, %32, %33, %34, %35, %36, %37 in 2 : vector<16x16x128xf32>, vector<16x16x128xf32>, vector<16x16x128xf32>, vector<16x16x128xf32>, vector<16x16x128xf32>, vector<16x16x128xf32>, vector<16x16x128xf32>, vector<16x16x128xf32>, vector<16x16x128xf32> -> vector<16x16x1152xf32>
    %39 = vector.shape_cast %38 : vector<16x16x1152xf32> to vector<256x1152xf32>
    %40 = arith.truncf %39 : vector<256x1152xf32> to vector<256x1152xbf16>
    %c0_12 = arith.constant 0 : index
    %c0_13 = arith.constant 0 : index
    %41 = vector.load %arg5[%c0_12, %c0_13] : memref<1152x128xbf16, #tpu.memory_space<vmem>>, vector<1152x128xbf16>
    %cst_14 = arith.constant dense<0.000000e+00> : vector<256x128xf32>
    %42 = tpu.matmul %40, %41, %cst_14 {dimension_numbers = #tpu.dot_dimension_numbers<[1], [0], [0], [1], [0, 0, 1, 1], [], []>} : vector<256x1152xbf16>, vector<1152x128xbf16>, vector<256x128xf32> -> vector<256x128xf32>
    %c0_15 = arith.constant 0 : index
    %c0_16 = arith.constant 0 : index
    %43 = vector.load %arg6[%c0_15, %c0_16] : memref<1x128xf32, #tpu.memory_space<vmem>>, vector<1x128xf32>
    %44 = vector.broadcast %43 : vector<1x128xf32> to vector<256x128xf32>
    %45 = arith.mulf %42, %44 : vector<256x128xf32>
    %c0_17 = arith.constant 0 : index
    %c0_18 = arith.constant 0 : index
    %46 = vector.load %arg7[%c0_17, %c0_18] : memref<1x128xf32, #tpu.memory_space<vmem>>, vector<1x128xf32>
    %47 = vector.broadcast %46 : vector<1x128xf32> to vector<256x128xf32>
    %48 = arith.addf %45, %47 : vector<256x128xf32>
    %cst_19 = arith.constant 0.000000e+00 : f32
    %49 = vector.broadcast %cst_19 : f32 to vector<256x128xf32>
    %50 = arith.maximumf %48, %49 : vector<256x128xf32>
    %51 = vector.shape_cast %50 : vector<256x128xf32> to vector<16x16x128xf32>
    %c0_20 = arith.constant 0 : index
    %c0_21 = arith.constant 0 : index
    %c0_22 = arith.constant 0 : index
    %c0_23 = arith.constant 0 : index
    %52 = vector.load %arg8[%c0_20, %c0_21, %c0_22, %c0_23] : memref<1x16x16x128xf32, #tpu.memory_space<vmem>>, vector<1x16x16x128xf32>
    %53 = vector.shape_cast %52 : vector<1x16x16x128xf32> to vector<16x16x128xf32>
    %54 = vector.shape_cast %51 : vector<16x16x128xf32> to vector<1x16x16x128xf32>
    tpu.vector_store %arg8[%c0_20, %c0_21, %c0_22, %c0_23], %54 {strides = array<i32>} : memref<1x16x16x128xf32, #tpu.memory_space<vmem>>, vector<1x16x16x128xf32>,
    return
  }
  func.func @transform_0(%arg0: i32) -> (i32, i32, i32, i32) {
    %c0_i32 = arith.constant 0 : i32
    %c0_i32_0 = arith.constant 0 : i32
    %c0_i32_1 = arith.constant 0 : i32
    %c0_i32_2 = arith.constant 0 : i32
    return %arg0, %c0_i32, %c0_i32_0, %c0_i32_1 : i32, i32, i32, i32
  }
  func.func @transform_1(%arg0: i32) -> (i32, i32) {
    %c0_i32 = arith.constant 0 : i32
    %c0_i32_0 = arith.constant 0 : i32
    %c0_i32_1 = arith.constant 0 : i32
    return %c0_i32, %c0_i32_0 : i32, i32
  }
  func.func @transform_2(%arg0: i32) -> (i32, i32) {
    %c0_i32 = arith.constant 0 : i32
    %c0_i32_0 = arith.constant 0 : i32
    %c0_i32_1 = arith.constant 0 : i32
    return %c0_i32, %c0_i32_0 : i32, i32
  }
  func.func @transform_3(%arg0: i32) -> (i32, i32) {
    %c0_i32 = arith.constant 0 : i32
    %c0_i32_0 = arith.constant 0 : i32
    %c0_i32_1 = arith.constant 0 : i32
    return %c0_i32, %c0_i32_0 : i32, i32
  }
  func.func @transform_4(%arg0: i32) -> (i32, i32) {
    %c0_i32 = arith.constant 0 : i32
    %c0_i32_0 = arith.constant 0 : i32
    %c0_i32_1 = arith.constant 0 : i32
    return %c0_i32, %c0_i32_0 : i32, i32
  }
  func.func @transform_5(%arg0: i32) -> (i32, i32) {
    %c0_i32 = arith.constant 0 : i32
    %c0_i32_0 = arith.constant 0 : i32
    %c0_i32_1 = arith.constant 0 : i32
    return %c0_i32, %c0_i32_0 : i32, i32
  }
  func.func @transform_6(%arg0: i32) -> (i32, i32) {
    %c0_i32 = arith.constant 0 : i32
    %c0_i32_0 = arith.constant 0 : i32
    %c0_i32_1 = arith.constant 0 : i32
    return %c0_i32, %c0_i32_0 : i32, i32
  }
  func.func @transform_7(%arg0: i32) -> (i32, i32, i32, i32) {
    %c0_i32 = arith.constant 0 : i32
    %c0_i32_0 = arith.constant 0 : i32
    %c0_i32_1 = arith.constant 0 : i32
    %c0_i32_2 = arith.constant 0 : i32
    return %arg0, %c0_i32, %c0_i32_0, %c0_i32_1 : i32, i32, i32, i32
  }
}

</mosaic_0001>

<llo_original>
// kernel: tpu_custom_call.1
$region0: #{tpu_custom_call.1}
  #allocation0 [shape = 'u32[]', space=smem, size = 0x4, offset = 0x4, fixed_abs, tag = 'smem constant byte address 0x4 - core index']
  #allocation1 [shape = 'u32[144,128]{1,0:T(1,128)}', space=vmem, size = 0x12000, scoped, tag = 'internal scratch']
  %s0 = inlined_call_operand.hbm [shape: f32[2,18,18,128], index: 0, kind: input, shape index: {}]
  %s1 = inlined_call_operand.hbm [shape: bf16[1152,128], index: 1, kind: input, shape index: {}]
  %s2 = inlined_call_operand.hbm [shape: f32[1,128], index: 2, kind: input, shape index: {}]
  %s3 = inlined_call_operand.hbm [shape: f32[1,128], index: 3, kind: input, shape index: {}]
  %s4 = inlined_call_operand.hbm [shape: bf16[1152,128], index: 4, kind: input, shape index: {}]
  %s5 = inlined_call_operand.hbm [shape: f32[1,128], index: 5, kind: input, shape index: {}]
  %s6 = inlined_call_operand.hbm [shape: f32[1,128], index: 6, kind: input, shape index: {}]
  %s7 = inlined_call_operand.hbm [shape: f32[2,16,16,128], index: 7, kind: output, shape index: {}]
  %s8 = sld [smem:[#allocation0]]
  $region89: #{tpu_custom_call.1} parent=0
    _
  %s10 = ssub.s32 1, %s8
  %s11 = scalar_select 0, %s10, %s8
  $region1: #{tpu_custom_call.1} parent=0
    #allocation2 [shape = 'u8[442368]{0}', space=vmem, size = 0x6c000, scoped, tag = 'input window, operand 0']
    #allocation3 [shape = 's32[2]{0}', space=sflag, size = 0x8, scoped, tag = 'scoped memory for tpu_custom_call.1']
    #allocation4 [shape = 's32[2]{0}', space=sflag, size = 0x8, scoped, tag = 'scoped memory for tpu_custom_call.1']
    #allocation5 [shape = 'u8[294912]{0}', space=vmem, size = 0x48000, scoped, tag = 'input window, operand 1, single buffered']
    #allocation6 [shape = 's32[1]{0}', space=sflag, size = 0x4, scoped, tag = 'scoped memory for tpu_custom_call.1']
    #allocation7 [shape = 'u8[512]{0}', space=vmem, size = 0x400, scoped, tag = 'input window, operand 2, single buffered']
    #allocation8 [shape = 'u8[512]{0}', space=vmem, size = 0x400, scoped, tag = 'input window, operand 3, single buffered']
    #allocation9 [shape = 's32[1]{0}', space=sflag, size = 0x4, scoped, tag = 'scoped memory for tpu_custom_call.1']
    #allocation10 [shape = 'u8[294912]{0}', space=vmem, size = 0x48000, scoped, tag = 'input window, operand 4, single buffered']
    #allocation11 [shape = 'u8[512]{0}', space=vmem, size = 0x400, scoped, tag = 'input window, operand 5, single buffered']
    #allocation12 [shape = 's32[1]{0}', space=sflag, size = 0x4, scoped, tag = 'scoped memory for tpu_custom_call.1']
    #allocation13 [shape = 'u8[512]{0}', space=vmem, size = 0x400, scoped, tag = 'input window, operand 6, single buffered']
    #allocation14 [shape = 'u8[262144]{0}', space=vmem, size = 0x40000, scoped, tag = 'output window, operand 0']
    %12 = vsyncpa [#allocation3], 0
    %s13 = scalar_lea.sflag [#allocation3], 1
    %14 = vsyncpa %s13, 0
    %15 = vsyncpa [#allocation6], 0
    %16 = vsyncpa [#allocation9], 0
    %17 = vsyncpa [#allocation12], 0
    %18 = vsyncpa [#allocation4], 0
    %s19 = scalar_lea.sflag [#allocation4], 1
    %20 = vsyncpa %s19, 0
    loop: start=0, step=1, limit=4
    $region2: #{tpu_custom_call.1} parent=1 // loop_pre_header
      _
    $region3: #{tpu_custom_call.1} parent=1 // loop_header
      %s22 = sphi 0, %s26
      %p23 = scmp.ge.s32.totalorder %s22, 4
      %s32 = sphi 0, %s34
      %s35 = sphi 0, %s32
      %s36 = sphi 0, %s35
      %s52 = sphi 0, %s36
      %s56 = sphi 0, %s56
      %s58 = sphi 0, %s56
      %s59 = sphi 0, %s58
      %s73 = sphi 0, %s59
      %s77 = sphi 0, %s77
      %s79 = sphi 0, %s77
      %s80 = sphi 0, %s79
      %s94 = sphi 0, %s80
      %s98 = sphi 0, %s98
      %s100 = sphi 0, %s98
      %s101 = sphi 0, %s100
      %s115 = sphi 0, %s101
      %s119 = sphi 0, %s119
      %s121 = sphi 0, %s119
      %s122 = sphi 0, %s121
      %s136 = sphi 0, %s122
      %s140 = sphi 0, %s140
      %s142 = sphi 0, %s140
      %s143 = sphi 0, %s142
      %s157 = sphi 0, %s143
      %s161 = sphi 0, %s161
      %s163 = sphi 0, %s161
      %s164 = sphi 0, %s163
      %s178 = sphi 0, %s164
      %s184 = sphi 0, %s186
      %s187 = sphi 0, %s184
      %s188 = sphi 0, %s187
      %s204 = sphi 0, %s188
    $region4: #{tpu_custom_call.1} parent=1 // loop_header_branch
      %25 = sbr.rel (%p23) target = $region8
    $region5: #{tpu_custom_call.1} parent=1 // loop_body
      %s27 = ssub.s32 %s22, 1
      %s28 = ssub.s32 %s22, 2
      %s29 = sadd.s32 %s22, 1
      %s30 = ssub.s32 %s22, %s29
      %p31 = scmp.eq.s32.totalorder %s30, 0
      %s33 = sadd.s32 %s32, 1
      %s34 = scalar_select %p31, %s32, %s33
      %p37 = pneg %p31
      %p38 = scmp.eq.s32.totalorder %s22, 1
      %p39 = por %p37, %p38
      %p40 = scmp.ne.s32.totalorder %s32, %s35
      %p41 = scmp.eq.s32.totalorder %s22, 0
      %p42 = por %p40, %p41
      %p43 = scmp.ne.s32.totalorder %s32, %s35
      %p44 = scmp.eq.s32.totalorder %s27, 1
      %p45 = por %p43, %p44
      %p46 = scmp.ne.s32.totalorder %s35, %s36
      %p47 = scmp.eq.s32.totalorder %s27, 0
      %p48 = por %p46, %p47
      %p49 = scmp.ne.s32.totalorder %s35, %s36
      %p50 = scmp.eq.s32.totalorder %s28, 1
      %p51 = por %p49, %p50
      %p53 = scmp.ne.s32.totalorder %s36, %s52
      %p54 = scmp.eq.s32.totalorder %s28, 0
      %p55 = por %p53, %p54
      %s57 = sadd.s32 %s56, 1
      %p60 = scmp.eq.s32.totalorder %s22, 1
      %p61 = scmp.ne.s32.totalorder %s56, %s58
      %p62 = scmp.eq.s32.totalorder %s22, 0
      %p63 = por %p61, %p62
      %p64 = scmp.ne.s32.totalorder %s56, %s58
      %p65 = scmp.eq.s32.totalorder %s27, 1
      %p66 = por %p64, %p65
      %p67 = scmp.ne.s32.totalorder %s58, %s59
      %p68 = scmp.eq.s32.totalorder %s27, 0
      %p69 = por %p67, %p68
      %p70 = scmp.ne.s32.totalorder %s58, %s59
      %p71 = scmp.eq.s32.totalorder %s28, 1
      %p72 = por %p70, %p71
      %p74 = scmp.ne.s32.totalorder %s59, %s73
      %p75 = scmp.eq.s32.totalorder %s28, 0
      %p76 = por %p74, %p75
      %s78 = sadd.s32 %s77, 1
      %p81 = scmp.eq.s32.totalorder %s22, 1
      %p82 = scmp.ne.s32.totalorder %s77, %s79
      %p83 = scmp.eq.s32.totalorder %s22, 0
      %p84 = por %p82, %p83
      %p85 = scmp.ne.s32.totalorder %s77, %s79
      %p86 = scmp.eq.s32.totalorder %s27, 1
      %p87 = por %p85, %p86
      %p88 = scmp.ne.s32.totalorder %s79, %s80
      %p89 = scmp.eq.s32.totalorder %s27, 0
      %p90 = por %p88, %p89
      %p91 = scmp.ne.s32.totalorder %s79, %s80
      %p92 = scmp.eq.s32.totalorder %s28, 1
      %p93 = por %p91, %p92
      %p95 = scmp.ne.s32.totalorder %s80, %s94
      %p96 = scmp.eq.s32.totalorder %s28, 0
      %p97 = por %p95, %p96
      %s99 = sadd.s32 %s98, 1
      %p102 = scmp.eq.s32.totalorder %s22, 1
      %p103 = scmp.ne.s32.totalorder %s98, %s100
      %p104 = scmp.eq.s32.totalorder %s22, 0
      %p105 = por %p103, %p104
      %p106 = scmp.ne.s32.totalorder %s98, %s100
      %p107 = scmp.eq.s32.totalorder %s27, 1
      %p108 = por %p106, %p107
      %p109 = scmp.ne.s32.totalorder %s100, %s101
      %p110 = scmp.eq.s32.totalorder %s27, 0
      %p111 = por %p109, %p110
      %p112 = scmp.ne.s32.totalorder %s100, %s101
      %p113 = scmp.eq.s32.totalorder %s28, 1
      %p114 = por %p112, %p113
      %p116 = scmp.ne.s32.totalorder %s101, %s115
      %p117 = scmp.eq.s32.totalorder %s28, 0
      %p118 = por %p116, %p117
      %s120 = sadd.s32 %s119, 1
      %p123 = scmp.eq.s32.totalorder %s22, 1
      %p124 = scmp.ne.s32.totalorder %s119, %s121
      %p125 = scmp.eq.s32.totalorder %s22, 0
      %p126 = por %p124, %p125
      %p127 = scmp.ne.s32.totalorder %s119, %s121
      %p128 = scmp.eq.s32.totalorder %s27, 1
      %p129 = por %p127, %p128
      %p130 = scmp.ne.s32.totalorder %s121, %s122
      %p131 = scmp.eq.s32.totalorder %s27, 0
      %p132 = por %p130, %p131
      %p133 = scmp.ne.s32.totalorder %s121, %s122
      %p134 = scmp.eq.s32.totalorder %s28, 1
      %p135 = por %p133, %p134
      %p137 = scmp.ne.s32.totalorder %s122, %s136
      %p138 = scmp.eq.s32.totalorder %s28, 0
      %p139 = por %p137, %p138
      %s141 = sadd.s32 %s140, 1
      %p144 = scmp.eq.s32.totalorder %s22, 1
      %p145 = scmp.ne.s32.totalorder %s140, %s142
      %p146 = scmp.eq.s32.totalorder %s22, 0
      %p147 = por %p145, %p146
      %p148 = scmp.ne.s32.totalorder %s140, %s142
      %p149 = scmp.eq.s32.totalorder %s27, 1
      %p150 = por %p148, %p149
      %p151 = scmp.ne.s32.totalorder %s142, %s143
      %p152 = scmp.eq.s32.totalorder %s27, 0
      %p153 = por %p151, %p152
      %p154 = scmp.ne.s32.totalorder %s142, %s143
      %p155 = scmp.eq.s32.totalorder %s28, 1
      %p156 = por %p154, %p155
      %p158 = scmp.ne.s32.totalorder %s143, %s157
      %p159 = scmp.eq.s32.totalorder %s28, 0
      %p160 = por %p158, %p159
      %s162 = sadd.s32 %s161, 1
      %p165 = scmp.eq.s32.totalorder %s22, 1
      %p166 = scmp.ne.s32.totalorder %s161, %s163
      %p167 = scmp.eq.s32.totalorder %s22, 0
      %p168 = por %p166, %p167
      %p169 = scmp.ne.s32.totalorder %s161, %s163
      %p170 = scmp.eq.s32.totalorder %s27, 1
      %p171 = por %p169, %p170
      %p172 = scmp.ne.s32.totalorder %s163, %s164
      %p173 = scmp.eq.s32.totalorder %s27, 0
      %p174 = por %p172, %p173
      %p175 = scmp.ne.s32.totalorder %s163, %s164
      %p176 = scmp.eq.s32.totalorder %s28, 1
      %p177 = por %p175, %p176
      %p179 = scmp.ne.s32.totalorder %s164, %s178
      %p180 = scmp.eq.s32.totalorder %s28, 0
      %p181 = por %p179, %p180
      %s182 = ssub.s32 %s22, %s29
      %p183 = scmp.eq.s32.totalorder %s182, 0
      %s185 = sadd.s32 %s184, 1
      %s186 = scalar_select %p183, %s184, %s185
      %p189 = pneg %p183
      %p190 = scmp.eq.s32.totalorder %s22, 1
      %p191 = por %p189, %p190
      %p192 = scmp.ne.s32.totalorder %s184, %s187
      %p193 = scmp.eq.s32.totalorder %s22, 0
      %p194 = por %p192, %p193
      %p195 = scmp.ne.s32.totalorder %s184, %s187
      %p196 = scmp.eq.s32.totalorder %s27, 1
      %p197 = por %p195, %p196
      %p198 = scmp.ne.s32.totalorder %s187, %s188
      %p199 = scmp.eq.s32.totalorder %s27, 0
      %p200 = por %p198, %p199
      %p201 = scmp.ne.s32.totalorder %s187, %s188
      %p202 = scmp.eq.s32.totalorder %s28, 1
      %p203 = por %p201, %p202
      %p205 = scmp.ne.s32.totalorder %s188, %s204
      %p206 = scmp.eq.s32.totalorder %s28, 0
      %p207 = por %p205, %p206
      %p208 = scmp.le.s32.totalorder 1, %s22
      %p209 = scmp.lt.s32.totalorder %s22, 3
      %p210 = pnand %p208, %p209
      %p211 = pneg %p210
      // Predicated region
      $region9: #{tpu_custom_call.1} parent=5 // pred_check
        _
      $region10: #{tpu_custom_call.1} parent=5 // pred_check_branch
        %213 = sbr.rel (%p210) target = $region12
      $region11: #{tpu_custom_call.1} parent=5 // pred_region
        %s214 = ssub.s32 %s22, 1
        // Predicated region
        $region13: #{tpu_custom_call.1} parent=11 // pred_check
          %p215 = pneg %p69
        $region14: #{tpu_custom_call.1} parent=11 // pred_check_branch
          %217 = sbr.rel (%p215) target = $region16
        $region15: #{tpu_custom_call.1} parent=11 // pred_region
          %s219 = ssub.s32 9216, 9216
          %220 = vsyncadd [#allocation6], %s219
          %s221 = sshll.u32 [#allocation5], 4
          %s222 = int_to_ptr.vmem [resolvable:$true] %s221
          %227 = dma.hbm_to_vmem [thread:$0]  %s1, 9216, %s222, [#allocation6], 64, 64, 4
        $region16: #{tpu_custom_call.1} parent=11 // pred_fallthru
          _
        // Predicated region
        $region17: #{tpu_custom_call.1} parent=11 // pred_check
          %p228 = pneg %p90
        $region18: #{tpu_custom_call.1} parent=11 // pred_check_branch
          %230 = sbr.rel (%p228) target = $region20
        $region19: #{tpu_custom_call.1} parent=11 // pred_region
          %s232 = ssub.s32 16, 16
          %233 = vsyncadd [#allocation6], %s232
          %s235 = sshll.u32 [#allocation7], 4
          %s236 = int_to_ptr.vmem [resolvable:$true] %s235
          %238 = dma.hbm_to_vmem [thread:$0]  %s2, 16, %s236, [#allocation6]
        $region20: #{tpu_custom_call.1} parent=11 // pred_fallthru
          _
        // Predicated region
        $region21: #{tpu_custom_call.1} parent=11 // pred_check
          %p239 = pneg %p111
        $region22: #{tpu_custom_call.1} parent=11 // pred_check_branch
          %241 = sbr.rel (%p239) target = $region24
        $region23: #{tpu_custom_call.1} parent=11 // pred_region
          %s243 = ssub.s32 16, 16
          %244 = vsyncadd [#allocation9], %s243
          %s246 = sshll.u32 [#allocation8], 4
          %s247 = int_to_ptr.vmem [resolvable:$true] %s246
          %249 = dma.hbm_to_vmem [thread:$0]  %s3, 16, %s247, [#allocation9]
        $region24: #{tpu_custom_call.1} parent=11 // pred_fallthru
          _
        // Predicated region
        $region25: #{tpu_custom_call.1} parent=11 // pred_check
          %p250 = pneg %p132
        $region26: #{tpu_custom_call.1} parent=11 // pred_check_branch
          %252 = sbr.rel (%p250) target = $region28
        $region27: #{tpu_custom_call.1} parent=11 // pred_region
          %s254 = ssub.s32 9216, 9216
          %255 = vsyncadd [#allocation9], %s254
          %s256 = sshll.u32 [#allocation10], 4
          %s257 = int_to_ptr.vmem [resolvable:$true] %s256
          %262 = dma.hbm_to_vmem [thread:$0]  %s4, 9216, %s257, [#allocation9], 64, 64, 4
        $region28: #{tpu_custom_call.1} parent=11 // pred_fallthru
          _
        // Predicated region
        $region29: #{tpu_custom_call.1} parent=11 // pred_check
          %p263 = pneg %p153
        $region30: #{tpu_custom_call.1} parent=11 // pred_check_branch
          %265 = sbr.rel (%p263) target = $region32
        $region31: #{tpu_custom_call.1} parent=11 // pred_region
          %s267 = ssub.s32 16, 16
          %268 = vsyncadd [#allocation12], %s267
          %s270 = sshll.u32 [#allocation11], 4
          %s271 = int_to_ptr.vmem [resolvable:$true] %s270
          %273 = dma.hbm_to_vmem [thread:$0]  %s5, 16, %s271, [#allocation12]
        $region32: #{tpu_custom_call.1} parent=11 // pred_fallthru
          _
        // Predicated region
        $region33: #{tpu_custom_call.1} parent=11 // pred_check
          %p274 = pneg %p174
        $region34: #{tpu_custom_call.1} parent=11 // pred_check_branch
          %276 = sbr.rel (%p274) target = $region36
        $region35: #{tpu_custom_call.1} parent=11 // pred_region
          %s278 = ssub.s32 16, 16
          %279 = vsyncadd [#allocation12], %s278
          %s281 = sshll.u32 [#allocation13], 4
          %s282 = int_to_ptr.vmem [resolvable:$true] %s281
          %284 = dma.hbm_to_vmem [thread:$0]  %s6, 16, %s282, [#allocation12]
        $region36: #{tpu_custom_call.1} parent=11 // pred_fallthru
          _
      $region12: #{tpu_custom_call.1} parent=5 // pred_fallthru
        _
      %p285 = scmp.lt.s32.totalorder %s22, 2
      // Predicated region
      $region37: #{tpu_custom_call.1} parent=5 // pred_check
        %p286 = pneg %p285
      $region38: #{tpu_custom_call.1} parent=5 // pred_check_branch
        %288 = sbr.rel (%p286) target = $region40
      $region39: #{tpu_custom_call.1} parent=5 // pred_region
        // Predicated region
        $region41: #{tpu_custom_call.1} parent=39 // pred_check
          %p289 = pneg %p42
        $region42: #{tpu_custom_call.1} parent=39 // pred_check_branch
          %291 = sbr.rel (%p289) target = $region44
        $region43: #{tpu_custom_call.1} parent=39 // pred_region
          %s292 = sand.u32 %s32, 1
          %s293 = scalar_lea.sflag [#allocation3], %s292
          %s294 = sand.u32 %s32, 1
          %s295 = smul.addr %s294, 432
          %s296 = scalar_lea.vmem [#allocation2], %s295
          %s298 = ssub.s32 6912, 6912
          %299 = vsyncadd %s293, %s298
          %s300 = smul.addr %s22, 54
          %s301 = smul.addr %s300, 128
          %s302 = scalar_lea.hbm %s0, %s301
          %s303 = sshll.u32 %s296, 4
          %s304 = int_to_ptr.vmem [resolvable:$true] %s303
          %309 = dma.hbm_to_vmem [thread:$0]  %s302, 6912, %s304, %s293, 128, 128, 8
        $region44: #{tpu_custom_call.1} parent=39 // pred_fallthru
          _
      $region40: #{tpu_custom_call.1} parent=5 // pred_fallthru
        _
      %p310 = scmp.le.s32.totalorder 1, %s22
      %p311 = scmp.lt.s32.totalorder %s22, 3
      %p312 = pnand %p310, %p311
      %p313 = pneg %p312
      // Predicated region
      $region45: #{tpu_custom_call.1} parent=5 // pred_check
        _
      $region46: #{tpu_custom_call.1} parent=5 // pred_check_branch
        %315 = sbr.rel (%p312) target = $region48
      $region47: #{tpu_custom_call.1} parent=5 // pred_region
        %s316 = ssub.s32 %s22, 1
        %s317 = sand.u32 %s35, 1
        %s318 = scalar_lea.sflag [#allocation3], %s317
        %s319 = sand.u32 %s35, 1
        %s320 = smul.addr %s319, 432
        %s321 = scalar_lea.vmem [#allocation2], %s320
        // Predicated region
        $region49: #{tpu_custom_call.1} parent=47 // pred_check
          %p322 = pneg %p48
        $region50: #{tpu_custom_call.1} parent=47 // pred_check_branch
          %324 = sbr.rel (%p322) target = $region52
        $region51: #{tpu_custom_call.1} parent=47 // pred_region
          %325 = dma.done %s318, 6912
        $region52: #{tpu_custom_call.1} parent=47 // pred_fallthru
          _
        // Predicated region
        $region53: #{tpu_custom_call.1} parent=47 // pred_check
          %p326 = pneg %p69
        $region54: #{tpu_custom_call.1} parent=47 // pred_check_branch
          %328 = sbr.rel (%p326) target = $region56
        $region55: #{tpu_custom_call.1} parent=47 // pred_region
          %329 = dma.done [#allocation6], 9216
        $region56: #{tpu_custom_call.1} parent=47 // pred_fallthru
          _
        // Predicated region
        $region57: #{tpu_custom_call.1} parent=47 // pred_check
          %p330 = pneg %p90
        $region58: #{tpu_custom_call.1} parent=47 // pred_check_branch
          %332 = sbr.rel (%p330) target = $region60
        $region59: #{tpu_custom_call.1} parent=47 // pred_region
          %333 = dma.done [#allocation6], 16
        $region60: #{tpu_custom_call.1} parent=47 // pred_fallthru
          _
        // Predicated region
        $region61: #{tpu_custom_call.1} parent=47 // pred_check
          %p334 = pneg %p111
        $region62: #{tpu_custom_call.1} parent=47 // pred_check_branch
          %336 = sbr.rel (%p334) target = $region64
        $region63: #{tpu_custom_call.1} parent=47 // pred_region
          %337 = dma.done [#allocation9], 16
        $region64: #{tpu_custom_call.1} parent=47 // pred_fallthru
          _
        // Predicated region
        $region65: #{tpu_custom_call.1} parent=47 // pred_check
          %p338 = pneg %p132
        $region66: #{tpu_custom_call.1} parent=47 // pred_check_branch
          %340 = sbr.rel (%p338) target = $region68
        $region67: #{tpu_custom_call.1} parent=47 // pred_region
          %341 = dma.done [#allocation9], 9216
        $region68: #{tpu_custom_call.1} parent=47 // pred_fallthru
          _
        // Predicated region
        $region69: #{tpu_custom_call.1} parent=47 // pred_check
          %p342 = pneg %p153
        $region70: #{tpu_custom_call.1} parent=47 // pred_check_branch
          %344 = sbr.rel (%p342) target = $region72
        $region71: #{tpu_custom_call.1} parent=47 // pred_region
          %345 = dma.done [#allocation12], 16
        $region72: #{tpu_custom_call.1} parent=47 // pred_fallthru
          _
        // Predicated region
        $region73: #{tpu_custom_call.1} parent=47 // pred_check
          %p346 = pneg %p174
        $region74: #{tpu_custom_call.1} parent=47 // pred_check_branch
          %348 = sbr.rel (%p346) target = $region76
        $region75: #{tpu_custom_call.1} parent=47 // pred_region
          %349 = dma.done [#allocation12], 16
        $region76: #{tpu_custom_call.1} parent=47 // pred_fallthru
          _
        %s350 = sand.u32 %s35, 1
        %s351 = scalar_lea.sflag [#allocation3], %s350
        %s352 = sand.u32 %s35, 1
        %s353 = smul.addr %s352, 432
        %s354 = scalar_lea.vmem [#allocation2], %s353
        %p355 = pneg %p48
        %p356 = pneg %p45
        %p357 = pneg %p69
        %p358 = pneg %p66
        %p359 = pneg %p90
        %p360 = pneg %p87
        %p361 = pneg %p111
        %p362 = pneg %p108
        %p363 = pneg %p132
        %p364 = pneg %p129
        %p365 = pneg %p153
        %p366 = pneg %p150
        %p367 = pneg %p174
        %p368 = pneg %p171
        %p369 = pneg %p200
        %p370 = pneg %p197
        %s371 = sand.u32 %s187, 1
        %s372 = scalar_lea.sflag [#allocation4], %s371
        %s373 = sand.u32 %s187, 1
        %s374 = smul.addr %s373, 256
        %s375 = scalar_lea.vmem [#allocation14], %s374
        %v377 = vld [vmem:[%s321] sm:$0xff]
        %v378 = vld [vmem:[%s321 + $0x8] sm:$0xff]
        %v379 = vld [vmem:[%s321 + $0x10] sm:$0x3]
        %v380 = vld [vmem:[%s321 + $0x18] sm:$0xff]
        %v381 = vld [vmem:[%s321 + $0x20] sm:$0xff]
        %v382 = vld [vmem:[%s321 + $0x28] sm:$0x3]
        %v383 = vld [vmem:[%s321 + $0x30] sm:$0xff]
        %v384 = vld [vmem:[%s321 + $0x38] sm:$0xff]
        %v385 = vld [vmem:[%s321 + $0x40] sm:$0x3]
        %v386 = vld [vmem:[%s321 + $0x48] sm:$0xff]
        %v387 = vld [vmem:[%s321 + $0x50] sm:$0xff]
        %v388 = vld [vmem:[%s321 + $0x58] sm:$0x3]
        %v389 = vld [vmem:[%s321 + $0x60] sm:$0xff]
        %v390 = vld [vmem:[%s321 + $0x68] sm:$0xff]
        %v391 = vld [vmem:[%s321 + $0x70] sm:$0x3]
        %v392 = vld [vmem:[%s321 + $0x78] sm:$0xff]
        %v393 = vld [vmem:[%s321 + $0x80] sm:$0xff]
        %v394 = vld [vmem:[%s321 + $0x88] sm:$0x3]
        %v395 = vld [vmem:[%s321 + $0x90] sm:$0xff]
        %v396 = vld [vmem:[%s321 + $0x98] sm:$0xff]
        %v397 = vld [vmem:[%s321 + $0xa0] sm:$0x3]
        %v398 = vld [vmem:[%s321 + $0xa8] sm:$0xff]
        %v399 = vld [vmem:[%s321 + $0xb0] sm:$0xff]
        %v400 = vld [vmem:[%s321 + $0xb8] sm:$0x3]
        %v401 = vld [vmem:[%s321 + $0xc0] sm:$0xff]
        %v402 = vld [vmem:[%s321 + $0xc8] sm:$0xff]
        %v403 = vld [vmem:[%s321 + $0xd0] sm:$0x3]
        %v404 = vld [vmem:[%s321 + $0xd8] sm:$0xff]
        %v405 = vld [vmem:[%s321 + $0xe0] sm:$0xff]
        %v406 = vld [vmem:[%s321 + $0xe8] sm:$0x3]
        %v407 = vld [vmem:[%s321 + $0xf0] sm:$0xff]
        %v408 = vld [vmem:[%s321 + $0xf8] sm:$0xff]
        %v409 = vld [vmem:[%s321 + $0x100] sm:$0x3]
        %v410 = vld [vmem:[%s321 + $0x108] sm:$0xff]
        %v411 = vld [vmem:[%s321 + $0x110] sm:$0xff]
        %v412 = vld [vmem:[%s321 + $0x118] sm:$0x3]
        %v413 = vld [vmem:[%s321 + $0x120] sm:$0xff]
        %v414 = vld [vmem:[%s321 + $0x128] sm:$0xff]
        %v415 = vld [vmem:[%s321 + $0x130] sm:$0x3]
        %v416 = vld [vmem:[%s321 + $0x138] sm:$0xff]
        %v417 = vld [vmem:[%s321 + $0x140] sm:$0xff]
        %v418 = vld [vmem:[%s321 + $0x148] sm:$0x3]
        %v419 = vld [vmem:[%s321 + $0x150] sm:$0xff]
        %v420 = vld [vmem:[%s321 + $0x158] sm:$0xff]
        %v421 = vld [vmem:[%s321 + $0x160] sm:$0x3]
        %v422 = vld [vmem:[%s321 + $0x168] sm:$0xff]
        %v423 = vld [vmem:[%s321 + $0x170] sm:$0xff]
        %v424 = vld [vmem:[%s321 + $0x178] sm:$0x3]
        %v425 = vld [vmem:[%s321 + $0x180] sm:$0xff]
        %v426 = vld [vmem:[%s321 + $0x188] sm:$0xff]
        %v427 = vld [vmem:[%s321 + $0x190] sm:$0x3]
        %v428 = vld [vmem:[%s321 + $0x198] sm:$0xff]
        %v429 = vld [vmem:[%s321 + $0x1a0] sm:$0xff]
        %v430 = vld [vmem:[%s321 + $0x1a8] sm:$0x3]
        %vm479 = vcmask 1046528
        %v480 = vrot.slane %v377, 1
        %v481 = vrot.slane %v378, 1
        %v482 = vsel %vm479, %v480, %v481
        %v483 = vrot.slane %v379, 1
        %v484 = vsel %vm479, %v481, %v483
        %v485 = vrot.slane %v380, 1
        %v486 = vrot.slane %v381, 1
        %v487 = vsel %vm479, %v485, %v486
        %v488 = vrot.slane %v382, 1
        %v489 = vsel %vm479, %v486, %v488
        %v490 = vrot.slane %v383, 1
        %v491 = vrot.slane %v384, 1
        %v492 = vsel %vm479, %v490, %v491
        %v493 = vrot.slane %v385, 1
        %v494 = vsel %vm479, %v491, %v493
        %v495 = vrot.slane %v386, 1
        %v496 = vrot.slane %v387, 1
        %v497 = vsel %vm479, %v495, %v496
        %v498 = vrot.slane %v388, 1
        %v499 = vsel %vm479, %v496, %v498
        %v500 = vrot.slane %v389, 1
        %v501 = vrot.slane %v390, 1
        %v502 = vsel %vm479, %v500, %v501
        %v503 = vrot.slane %v391, 1
        %v504 = vsel %vm479, %v501, %v503
        %v505 = vrot.slane %v392, 1
        %v506 = vrot.slane %v393, 1
        %v507 = vsel %vm479, %v505, %v506
        %v508 = vrot.slane %v394, 1
        %v509 = vsel %vm479, %v506, %v508
        %v510 = vrot.slane %v395, 1
        %v511 = vrot.slane %v396, 1
        %v512 = vsel %vm479, %v510, %v511
        %v513 = vrot.slane %v397, 1
        %v514 = vsel %vm479, %v511, %v513
        %v515 = vrot.slane %v398, 1
        %v516 = vrot.slane %v399, 1
        %v517 = vsel %vm479, %v515, %v516
        %v518 = vrot.slane %v400, 1
        %v519 = vsel %vm479, %v516, %v518
        %v520 = vrot.slane %v401, 1
        %v521 = vrot.slane %v402, 1
        %v522 = vsel %vm479, %v520, %v521
        %v523 = vrot.slane %v403, 1
        %v524 = vsel %vm479, %v521, %v523
        %v525 = vrot.slane %v404, 1
        %v526 = vrot.slane %v405, 1
        %v527 = vsel %vm479, %v525, %v526
        %v528 = vrot.slane %v406, 1
        %v529 = vsel %vm479, %v526, %v528
        %v530 = vrot.slane %v407, 1
        %v531 = vrot.slane %v408, 1
        %v532 = vsel %vm479, %v530, %v531
        %v533 = vrot.slane %v409, 1
        %v534 = vsel %vm479, %v531, %v533
        %v535 = vrot.slane %v410, 1
        %v536 = vrot.slane %v411, 1
        %v537 = vsel %vm479, %v535, %v536
        %v538 = vrot.slane %v412, 1
        %v539 = vsel %vm479, %v536, %v538
        %v540 = vrot.slane %v413, 1
        %v541 = vrot.slane %v414, 1
        %v542 = vsel %vm479, %v540, %v541
        %v543 = vrot.slane %v415, 1
        %v544 = vsel %vm479, %v541, %v543
        %v545 = vrot.slane %v416, 1
        %v546 = vrot.slane %v417, 1
        %v547 = vsel %vm479, %v545, %v546
        %v548 = vrot.slane %v418, 1
        %v549 = vsel %vm479, %v546, %v548
        %v550 = vrot.slane %v419, 1
        %v551 = vrot.slane %v420, 1
        %v552 = vsel %vm479, %v550, %v551
        %v553 = vrot.slane %v421, 1
        %v554 = vsel %vm479, %v551, %v553
        %v555 = vrot.slane %v422, 1
        %v556 = vrot.slane %v423, 1
        %v557 = vsel %vm479, %v555, %v556
        %v558 = vrot.slane %v424, 1
        %v559 = vsel %vm479, %v556, %v558
        %vm592 = vcmask 1045504
        %v593 = vrot.slane %v377, 2
        %v594 = vrot.slane %v378, 2
        %v595 = vsel %vm592, %v593, %v594
        %v596 = vrot.slane %v379, 2
        %v597 = vsel %vm592, %v594, %v596
        %v598 = vrot.slane %v380, 2
        %v599 = vrot.slane %v381, 2
        %v600 = vsel %vm592, %v598, %v599
        %v601 = vrot.slane %v382, 2
        %v602 = vsel %vm592, %v599, %v601
        %v603 = vrot.slane %v383, 2
        %v604 = vrot.slane %v384, 2
        %v605 = vsel %vm592, %v603, %v604
        %v606 = vrot.slane %v385, 2
        %v607 = vsel %vm592, %v604, %v606
        %v608 = vrot.slane %v386, 2
        %v609 = vrot.slane %v387, 2
        %v610 = vsel %vm592, %v608, %v609
        %v611 = vrot.slane %v388, 2
        %v612 = vsel %vm592, %v609, %v611
        %v613 = vrot.slane %v389, 2
        %v614 = vrot.slane %v390, 2
        %v615 = vsel %vm592, %v613, %v614
        %v616 = vrot.slane %v391, 2
        %v617 = vsel %vm592, %v614, %v616
        %v618 = vrot.slane %v392, 2
        %v619 = vrot.slane %v393, 2
        %v620 = vsel %vm592, %v618, %v619
        %v621 = vrot.slane %v394, 2
        %v622 = vsel %vm592, %v619, %v621
        %v623 = vrot.slane %v395, 2
        %v624 = vrot.slane %v396, 2
        %v625 = vsel %vm592, %v623, %v624
        %v626 = vrot.slane %v397, 2
        %v627 = vsel %vm592, %v624, %v626
        %v628 = vrot.slane %v398, 2
        %v629 = vrot.slane %v399, 2
        %v630 = vsel %vm592, %v628, %v629
        %v631 = vrot.slane %v400, 2
        %v632 = vsel %vm592, %v629, %v631
        %v633 = vrot.slane %v401, 2
        %v634 = vrot.slane %v402, 2
        %v635 = vsel %vm592, %v633, %v634
        %v636 = vrot.slane %v403, 2
        %v637 = vsel %vm592, %v634, %v636
        %v638 = vrot.slane %v404, 2
        %v639 = vrot.slane %v405, 2
        %v640 = vsel %vm592, %v638, %v639
        %v641 = vrot.slane %v406, 2
        %v642 = vsel %vm592, %v639, %v641
        %v643 = vrot.slane %v407, 2
        %v644 = vrot.slane %v408, 2
        %v645 = vsel %vm592, %v643, %v644
        %v646 = vrot.slane %v409, 2
        %v647 = vsel %vm592, %v644, %v646
        %v648 = vrot.slane %v410, 2
        %v649 = vrot.slane %v411, 2
        %v650 = vsel %vm592, %v648, %v649
        %v651 = vrot.slane %v412, 2
        %v652 = vsel %vm592, %v649, %v651
        %v653 = vrot.slane %v413, 2
        %v654 = vrot.slane %v414, 2
        %v655 = vsel %vm592, %v653, %v654
        %v656 = vrot.slane %v415, 2
        %v657 = vsel %vm592, %v654, %v656
        %v658 = vrot.slane %v416, 2
        %v659 = vrot.slane %v417, 2
        %v660 = vsel %vm592, %v658, %v659
        %v661 = vrot.slane %v418, 2
        %v662 = vsel %vm592, %v659, %v661
        %v663 = vrot.slane %v419, 2
        %v664 = vrot.slane %v420, 2
        %v665 = vsel %vm592, %v663, %v664
        %v666 = vrot.slane %v421, 2
        %v667 = vsel %vm592, %v664, %v666
        %v668 = vrot.slane %v422, 2
        %v669 = vrot.slane %v423, 2
        %v670 = vsel %vm592, %v668, %v669
        %v671 = vrot.slane %v424, 2
        %v672 = vsel %vm592, %v669, %v671
        %v708 = vrot.slane %v425, 1
        %v709 = vrot.slane %v426, 1
        %v710 = vsel %vm479, %v708, %v709
        %v711 = vrot.slane %v427, 1
        %v712 = vsel %vm479, %v709, %v711
        %v715 = vrot.slane %v425, 2
        %v716 = vrot.slane %v426, 2
        %v717 = vsel %vm592, %v715, %v716
        %v718 = vrot.slane %v427, 2
        %v719 = vsel %vm592, %v716, %v718
        %v725 = vrot.slane %v428, 1
        %v726 = vrot.slane %v429, 1
        %v727 = vsel %vm479, %v725, %v726
        %v728 = vrot.slane %v430, 1
        %v729 = vsel %vm479, %v726, %v728
        %v732 = vrot.slane %v428, 2
        %v733 = vrot.slane %v429, 2
        %v734 = vsel %vm592, %v732, %v733
        %v735 = vrot.slane %v430, 2
        %v736 = vsel %vm592, %v733, %v735
        %v739 = vpack.c.bf16 %v378, %v377
        %v740 = vpack.c.bf16 %v484, %v482
        %v741 = vpack.c.bf16 %v597, %v595
        %v742 = vpack.c.bf16 %v381, %v380
        %v743 = vpack.c.bf16 %v489, %v487
        %v744 = vpack.c.bf16 %v602, %v600
        %v745 = vpack.c.bf16 %v384, %v383
        %v746 = vpack.c.bf16 %v494, %v492
        %v747 = vpack.c.bf16 %v607, %v605
        %v748 = vpack.c.bf16 %v387, %v386
        %v749 = vpack.c.bf16 %v499, %v497
        %v750 = vpack.c.bf16 %v612, %v610
        %v751 = vpack.c.bf16 %v390, %v389
        %v752 = vpack.c.bf16 %v504, %v502
        %v753 = vpack.c.bf16 %v617, %v615
        %v754 = vpack.c.bf16 %v393, %v392
        %v755 = vpack.c.bf16 %v509, %v507
        %v756 = vpack.c.bf16 %v622, %v620
        %v757 = vpack.c.bf16 %v396, %v395
        %v758 = vpack.c.bf16 %v514, %v512
        %v759 = vpack.c.bf16 %v627, %v625
        %v760 = vpack.c.bf16 %v399, %v398
        %v761 = vpack.c.bf16 %v519, %v517
        %v762 = vpack.c.bf16 %v632, %v630
        %v763 = vpack.c.bf16 %v402, %v401
        %v764 = vpack.c.bf16 %v524, %v522
        %v765 = vpack.c.bf16 %v637, %v635
        %v766 = vpack.c.bf16 %v405, %v404
        %v767 = vpack.c.bf16 %v529, %v527
        %v768 = vpack.c.bf16 %v642, %v640
        %v769 = vpack.c.bf16 %v408, %v407
        %v770 = vpack.c.bf16 %v534, %v532
        %v771 = vpack.c.bf16 %v647, %v645
        %v772 = vpack.c.bf16 %v411, %v410
        %v773 = vpack.c.bf16 %v539, %v537
        %v774 = vpack.c.bf16 %v652, %v650
        %v775 = vpack.c.bf16 %v414, %v413
        %v776 = vpack.c.bf16 %v544, %v542
        %v777 = vpack.c.bf16 %v657, %v655
        %v778 = vpack.c.bf16 %v417, %v416
        %v779 = vpack.c.bf16 %v549, %v547
        %v780 = vpack.c.bf16 %v662, %v660
        %v781 = vpack.c.bf16 %v420, %v419
        %v782 = vpack.c.bf16 %v554, %v552
        %v783 = vpack.c.bf16 %v667, %v665
        %v784 = vpack.c.bf16 %v423, %v422
        %v785 = vpack.c.bf16 %v559, %v557
        %v786 = vpack.c.bf16 %v672, %v670
        %v787 = vpack.c.bf16 %v426, %v425
        %v788 = vpack.c.bf16 %v712, %v710
        %v789 = vpack.c.bf16 %v719, %v717
        %v790 = vpack.c.bf16 %v429, %v428
        %v791 = vpack.c.bf16 %v729, %v727
        %v792 = vpack.c.bf16 %v736, %v734
        %v793 = vld [vmem:[#allocation5] sm:$0xf]
        %v794 = vld [vmem:[#allocation5 + $0x4] sm:$0xf]
        %v795 = vld [vmem:[#allocation5 + $0x8] sm:$0xf]
        %v796 = vld [vmem:[#allocation5 + $0xc] sm:$0xf]
        %v797 = vld [vmem:[#allocation5 + $0x10] sm:$0xf]
        %v798 = vld [vmem:[#allocation5 + $0x14] sm:$0xf]
        %v799 = vld [vmem:[#allocation5 + $0x18] sm:$0xf]
        %v800 = vld [vmem:[#allocation5 + $0x1c] sm:$0xf]
        %v801 = vld [vmem:[#allocation5 + $0x20] sm:$0xf]
        %v802 = vld [vmem:[#allocation5 + $0x24] sm:$0xf]
        %v803 = vld [vmem:[#allocation5 + $0x28] sm:$0xf]
        %v804 = vld [vmem:[#allocation5 + $0x2c] sm:$0xf]
        %v805 = vld [vmem:[#allocation5 + $0x30] sm:$0xf]
        %v806 = vld [vmem:[#allocation5 + $0x34] sm:$0xf]
        %v807 = vld [vmem:[#allocation5 + $0x38] sm:$0xf]
        %v808 = vld [vmem:[#allocation5 + $0x3c] sm:$0xf]
        %v809 = vld [vmem:[#allocation5 + $0x40] sm:$0xf]
        %v810 = vld [vmem:[#allocation5 + $0x44] sm:$0xf]
        %v811 = vld [vmem:[#allocation5 + $0x48] sm:$0xf]
        %v812 = vld [vmem:[#allocation5 + $0x4c] sm:$0xf]
        %v813 = vld [vmem:[#allocation5 + $0x50] sm:$0xf]
        %v814 = vld [vmem:[#allocation5 + $0x54] sm:$0xf]
        %v815 = vld [vmem:[#allocation5 + $0x58] sm:$0xf]
        %v816 = vld [vmem:[#allocation5 + $0x5c] sm:$0xf]
        %v817 = vld [vmem:[#allocation5 + $0x60] sm:$0xf]
        %v818 = vld [vmem:[#allocation5 + $0x64] sm:$0xf]
        %v819 = vld [vmem:[#allocation5 + $0x68] sm:$0xf]
        %v820 = vld [vmem:[#allocation5 + $0x6c] sm:$0xf]
        %v821 = vld [vmem:[#allocation5 + $0x70] sm:$0xf]
        %v822 = vld [vmem:[#allocation5 + $0x74] sm:$0xf]
        %v823 = vld [vmem:[#allocation5 + $0x78] sm:$0xf]
        %v824 = vld [vmem:[#allocation5 + $0x7c] sm:$0xf]
        %v825 = vld [vmem:[#allocation5 + $0x80] sm:$0xf]
        %v826 = vld [vmem:[#allocation5 + $0x84] sm:$0xf]
        %v827 = vld [vmem:[#allocation5 + $0x88] sm:$0xf]
        %v828 = vld [vmem:[#allocation5 + $0x8c] sm:$0xf]
        %v829 = vld [vmem:[#allocation5 + $0x90] sm:$0xf]
        %v830 = vld [vmem:[#allocation5 + $0x94] sm:$0xf]
        %v831 = vld [vmem:[#allocation5 + $0x98] sm:$0xf]
        %v832 = vld [vmem:[#allocation5 + $0x9c] sm:$0xf]
        %v833 = vld [vmem:[#allocation5 + $0xa0] sm:$0xf]
        %v834 = vld [vmem:[#allocation5 + $0xa4] sm:$0xf]
        %v835 = vld [vmem:[#allocation5 + $0xa8] sm:$0xf]
        %v836 = vld [vmem:[#allocation5 + $0xac] sm:$0xf]
        %v837 = vld [vmem:[#allocation5 + $0xb0] sm:$0xf]
        %v838 = vld [vmem:[#allocation5 + $0xb4] sm:$0xf]
        %v839 = vld [vmem:[#allocation5 + $0xb8] sm:$0xf]
        %v840 = vld [vmem:[#allocation5 + $0xbc] sm:$0xf]
        %v841 = vld [vmem:[#allocation5 + $0xc0] sm:$0xf]
        %v842 = vld [vmem:[#allocation5 + $0xc4] sm:$0xf]
        %v843 = vld [vmem:[#allocation5 + $0xc8] sm:$0xf]
        %v844 = vld [vmem:[#allocation5 + $0xcc] sm:$0xf]
        %v845 = vld [vmem:[#allocation5 + $0xd0] sm:$0xf]
        %v846 = vld [vmem:[#allocation5 + $0xd4] sm:$0xf]
        %v847 = vld [vmem:[#allocation5 + $0xd8] sm:$0xf]
        %v848 = vld [vmem:[#allocation5 + $0xdc] sm:$0xf]
        %v849 = vld [vmem:[#allocation5 + $0xe0] sm:$0xf]
        %v850 = vld [vmem:[#allocation5 + $0xe4] sm:$0xf]
        %v851 = vld [vmem:[#allocation5 + $0xe8] sm:$0xf]
        %v852 = vld [vmem:[#allocation5 + $0xec] sm:$0xf]
        %v853 = vld [vmem:[#allocation5 + $0xf0] sm:$0xf]
        %v854 = vld [vmem:[#allocation5 + $0xf4] sm:$0xf]
        %v855 = vld [vmem:[#allocation5 + $0xf8] sm:$0xf]
        %v856 = vld [vmem:[#allocation5 + $0xfc] sm:$0xf]
        %v857 = vld [vmem:[#allocation5 + $0x100] sm:$0xf]
        %v858 = vld [vmem:[#allocation5 + $0x104] sm:$0xf]
        %v859 = vld [vmem:[#allocation5 + $0x108] sm:$0xf]
        %v860 = vld [vmem:[#allocation5 + $0x10c] sm:$0xf]
        %v861 = vld [vmem:[#allocation5 + $0x110] sm:$0xf]
        %v862 = vld [vmem:[#allocation5 + $0x114] sm:$0xf]
        %v863 = vld [vmem:[#allocation5 + $0x118] sm:$0xf]
        %v864 = vld [vmem:[#allocation5 + $0x11c] sm:$0xf]
        %v865 = vld [vmem:[#allocation5 + $0x120] sm:$0xf]
        %v866 = vld [vmem:[#allocation5 + $0x124] sm:$0xf]
        %v867 = vld [vmem:[#allocation5 + $0x128] sm:$0xf]
        %v868 = vld [vmem:[#allocation5 + $0x12c] sm:$0xf]
        %v869 = vld [vmem:[#allocation5 + $0x130] sm:$0xf]
        %v870 = vld [vmem:[#allocation5 + $0x134] sm:$0xf]
        %v871 = vld [vmem:[#allocation5 + $0x138] sm:$0xf]
        %v872 = vld [vmem:[#allocation5 + $0x13c] sm:$0xf]
        %v873 = vld [vmem:[#allocation5 + $0x140] sm:$0xf]
        %v874 = vld [vmem:[#allocation5 + $0x144] sm:$0xf]
        %v875 = vld [vmem:[#allocation5 + $0x148] sm:$0xf]
        %v876 = vld [vmem:[#allocation5 + $0x14c] sm:$0xf]
        %v877 = vld [vmem:[#allocation5 + $0x150] sm:$0xf]
        %v878 = vld [vmem:[#allocation5 + $0x154] sm:$0xf]
        %v879 = vld [vmem:[#allocation5 + $0x158] sm:$0xf]
        %v880 = vld [vmem:[#allocation5 + $0x15c] sm:$0xf]
        %v881 = vld [vmem:[#allocation5 + $0x160] sm:$0xf]
        %v882 = vld [vmem:[#allocation5 + $0x164] sm:$0xf]
        %v883 = vld [vmem:[#allocation5 + $0x168] sm:$0xf]
        %v884 = vld [vmem:[#allocation5 + $0x16c] sm:$0xf]
        %v885 = vld [vmem:[#allocation5 + $0x170] sm:$0xf]
        %v886 = vld [vmem:[#allocation5 + $0x174] sm:$0xf]
        %v887 = vld [vmem:[#allocation5 + $0x178] sm:$0xf]
        %v888 = vld [vmem:[#allocation5 + $0x17c] sm:$0xf]
        %v889 = vld [vmem:[#allocation5 + $0x180] sm:$0xf]
        %v890 = vld [vmem:[#allocation5 + $0x184] sm:$0xf]
        %v891 = vld [vmem:[#allocation5 + $0x188] sm:$0xf]
        %v892 = vld [vmem:[#allocation5 + $0x18c] sm:$0xf]
        %v893 = vld [vmem:[#allocation5 + $0x190] sm:$0xf]
        %v894 = vld [vmem:[#allocation5 + $0x194] sm:$0xf]
        %v895 = vld [vmem:[#allocation5 + $0x198] sm:$0xf]
        %v896 = vld [vmem:[#allocation5 + $0x19c] sm:$0xf]
        %v897 = vld [vmem:[#allocation5 + $0x1a0] sm:$0xf]
        %v898 = vld [vmem:[#allocation5 + $0x1a4] sm:$0xf]
        %v899 = vld [vmem:[#allocation5 + $0x1a8] sm:$0xf]
        %v900 = vld [vmem:[#allocation5 + $0x1ac] sm:$0xf]
        %v901 = vld [vmem:[#allocation5 + $0x1b0] sm:$0xf]
        %v902 = vld [vmem:[#allocation5 + $0x1b4] sm:$0xf]
        %v903 = vld [vmem:[#allocation5 + $0x1b8] sm:$0xf]
        %v904 = vld [vmem:[#allocation5 + $0x1bc] sm:$0xf]
        %v905 = vld [vmem:[#allocation5 + $0x1c0] sm:$0xf]
        %v906 = vld [vmem:[#allocation5 + $0x1c4] sm:$0xf]
        %v907 = vld [vmem:[#allocation5 + $0x1c8] sm:$0xf]
        %v908 = vld [vmem:[#allocation5 + $0x1cc] sm:$0xf]
        %v909 = vld [vmem:[#allocation5 + $0x1d0] sm:$0xf]
        %v910 = vld [vmem:[#allocation5 + $0x1d4] sm:$0xf]
        %v911 = vld [vmem:[#allocation5 + $0x1d8] sm:$0xf]
        %v912 = vld [vmem:[#allocation5 + $0x1dc] sm:$0xf]
        %v913 = vld [vmem:[#allocation5 + $0x1e0] sm:$0xf]
        %v914 = vld [vmem:[#allocation5 + $0x1e4] sm:$0xf]
        %v915 = vld [vmem:[#allocation5 + $0x1e8] sm:$0xf]
        %v916 = vld [vmem:[#allocation5 + $0x1ec] sm:$0xf]
        %v917 = vld [vmem:[#allocation5 + $0x1f0] sm:$0xf]
        %v918 = vld [vmem:[#allocation5 + $0x1f4] sm:$0xf]
        %v919 = vld [vmem:[#allocation5 + $0x1f8] sm:$0xf]
        %v920 = vld [vmem:[#allocation5 + $0x1fc] sm:$0xf]
        %v921 = vld [vmem:[#allocation5 + $0x200] sm:$0xf]
        %v922 = vld [vmem:[#allocation5 + $0x204] sm:$0xf]
        %v923 = vld [vmem:[#allocation5 + $0x208] sm:$0xf]
        %v924 = vld [vmem:[#allocation5 + $0x20c] sm:$0xf]
        %v925 = vld [vmem:[#allocation5 + $0x210] sm:$0xf]
        %v926 = vld [vmem:[#allocation5 + $0x214] sm:$0xf]
        %v927 = vld [vmem:[#allocation5 + $0x218] sm:$0xf]
        %v928 = vld [vmem:[#allocation5 + $0x21c] sm:$0xf]
        %v929 = vld [vmem:[#allocation5 + $0x220] sm:$0xf]
        %v930 = vld [vmem:[#allocation5 + $0x224] sm:$0xf]
        %v931 = vld [vmem:[#allocation5 + $0x228] sm:$0xf]
        %v932 = vld [vmem:[#allocation5 + $0x22c] sm:$0xf]
        %v933 = vld [vmem:[#allocation5 + $0x230] sm:$0xf]
        %v934 = vld [vmem:[#allocation5 + $0x234] sm:$0xf]
        %v935 = vld [vmem:[#allocation5 + $0x238] sm:$0xf]
        %v936 = vld [vmem:[#allocation5 + $0x23c] sm:$0xf]
        %v1081 = vunpack.c.l.b16 %v793
        %v1082 = vunpack.c.l.b16 %v794
        %v1083 = vunpack.c.l.b16 %v795
        %v1084 = vunpack.c.l.b16 %v796
        %v1085 = vunpack.c.l.b16 %v797
        %v1086 = vunpack.c.l.b16 %v798
        %v1087 = vunpack.c.l.b16 %v799
        %v1088 = vunpack.c.l.b16 %v800
        %v1089 = vunpack.c.l.b16 %v801
        %v1090 = vunpack.c.l.b16 %v802
        %v1091 = vunpack.c.l.b16 %v803
        %v1092 = vunpack.c.l.b16 %v804
        %v1093 = vunpack.c.l.b16 %v805
        %v1094 = vunpack.c.l.b16 %v806
        %v1095 = vunpack.c.l.b16 %v807
        %v1096 = vunpack.c.l.b16 %v808
        %v1097 = vunpack.c.l.b16 %v809
        %v1098 = vunpack.c.l.b16 %v810
        %v1099 = vunpack.c.l.b16 %v811
        %v1100 = vunpack.c.l.b16 %v812
        %v1101 = vunpack.c.l.b16 %v813
        %v1102 = vunpack.c.l.b16 %v814
        %v1103 = vunpack.c.l.b16 %v815
        %v1104 = vunpack.c.l.b16 %v816
        %v1105 = vunpack.c.l.b16 %v817
        %v1106 = vunpack.c.l.b16 %v818
        %v1107 = vunpack.c.l.b16 %v819
        %v1108 = vunpack.c.l.b16 %v820
        %v1109 = vunpack.c.l.b16 %v821
        %v1110 = vunpack.c.l.b16 %v822
        %v1111 = vunpack.c.l.b16 %v823
        %v1112 = vunpack.c.l.b16 %v824
        %v1113 = vunpack.c.l.b16 %v825
        %v1114 = vunpack.c.l.b16 %v826
        %v1115 = vunpack.c.l.b16 %v827
        %v1116 = vunpack.c.l.b16 %v828
        %v1117 = vunpack.c.l.b16 %v829
        %v1118 = vunpack.c.l.b16 %v830
        %v1119 = vunpack.c.l.b16 %v831
        %v1120 = vunpack.c.l.b16 %v832
        %v1121 = vunpack.c.l.b16 %v833
        %v1122 = vunpack.c.l.b16 %v834
        %v1123 = vunpack.c.l.b16 %v835
        %v1124 = vunpack.c.l.b16 %v836
        %v1125 = vunpack.c.l.b16 %v837
        %v1126 = vunpack.c.l.b16 %v838
        %v1127 = vunpack.c.l.b16 %v839
        %v1128 = vunpack.c.l.b16 %v840
        %v1129 = vunpack.c.l.b16 %v841
        %v1130 = vunpack.c.l.b16 %v842
        %v1131 = vunpack.c.l.b16 %v843
        %v1132 = vunpack.c.l.b16 %v844
        %v1133 = vunpack.c.l.b16 %v845
        %v1134 = vunpack.c.l.b16 %v846
        %v1135 = vunpack.c.l.b16 %v847
        %v1136 = vunpack.c.l.b16 %v848
        %v1137 = vunpack.c.l.b16 %v849
        %v1138 = vunpack.c.l.b16 %v850
        %v1139 = vunpack.c.l.b16 %v851
        %v1140 = vunpack.c.l.b16 %v852
        %v1141 = vunpack.c.l.b16 %v853
        %v1142 = vunpack.c.l.b16 %v854
        %v1143 = vunpack.c.l.b16 %v855
        %v1144 = vunpack.c.l.b16 %v856
        %v1145 = vunpack.c.l.b16 %v857
        %v1146 = vunpack.c.l.b16 %v858
        %v1147 = vunpack.c.l.b16 %v859
        %v1148 = vunpack.c.l.b16 %v860
        %v1149 = vunpack.c.l.b16 %v861
        %v1150 = vunpack.c.l.b16 %v862
        %v1151 = vunpack.c.l.b16 %v863
        %v1152 = vunpack.c.l.b16 %v864
        %v1153 = vunpack.c.l.b16 %v865
        %v1154 = vunpack.c.l.b16 %v866
        %v1155 = vunpack.c.l.b16 %v867
        %v1156 = vunpack.c.l.b16 %v868
        %v1157 = vunpack.c.l.b16 %v869
        %v1158 = vunpack.c.l.b16 %v870
        %v1159 = vunpack.c.l.b16 %v871
        %v1160 = vunpack.c.l.b16 %v872
        %v1161 = vunpack.c.l.b16 %v873
        %v1162 = vunpack.c.l.b16 %v874
        %v1163 = vunpack.c.l.b16 %v875
        %v1164 = vunpack.c.l.b16 %v876
        %v1165 = vunpack.c.l.b16 %v877
        %v1166 = vunpack.c.l.b16 %v878
        %v1167 = vunpack.c.l.b16 %v879
        %v1168 = vunpack.c.l.b16 %v880
        %v1169 = vunpack.c.l.b16 %v881
        %v1170 = vunpack.c.l.b16 %v882
        %v1171 = vunpack.c.l.b16 %v883
        %v1172 = vunpack.c.l.b16 %v884
        %v1173 = vunpack.c.l.b16 %v885
        %v1174 = vunpack.c.l.b16 %v886
        %v1175 = vunpack.c.l.b16 %v887
        %v1176 = vunpack.c.l.b16 %v888
        %v1177 = vunpack.c.l.b16 %v889
        %v1178 = vunpack.c.l.b16 %v890
        %v1179 = vunpack.c.l.b16 %v891
        %v1180 = vunpack.c.l.b16 %v892
        %v1181 = vunpack.c.l.b16 %v893
        %v1182 = vunpack.c.l.b16 %v894
        %v1183 = vunpack.c.l.b16 %v895
        %v1184 = vunpack.c.l.b16 %v896
        %v1185 = vunpack.c.l.b16 %v897
        %v1186 = vunpack.c.l.b16 %v898
        %v1187 = vunpack.c.l.b16 %v899
        %v1188 = vunpack.c.l.b16 %v900
        %v1189 = vunpack.c.l.b16 %v901
        %v1190 = vunpack.c.l.b16 %v902
        %v1191 = vunpack.c.l.b16 %v903
        %v1192 = vunpack.c.l.b16 %v904
        %v1193 = vunpack.c.l.b16 %v905
        %v1194 = vunpack.c.l.b16 %v906
        %v1195 = vunpack.c.l.b16 %v907
        %v1196 = vunpack.c.l.b16 %v908
        %v1197 = vunpack.c.l.b16 %v909
        %v1198 = vunpack.c.l.b16 %v910
        %v1199 = vunpack.c.l.b16 %v911
        %v1200 = vunpack.c.l.b16 %v912
        %v1201 = vunpack.c.l.b16 %v913
        %v1202 = vunpack.c.l.b16 %v914
        %v1203 = vunpack.c.l.b16 %v915
        %v1204 = vunpack.c.l.b16 %v916
        %v1205 = vunpack.c.l.b16 %v917
        %v1206 = vunpack.c.l.b16 %v918
        %v1207 = vunpack.c.l.b16 %v919
        %v1208 = vunpack.c.l.b16 %v920
        %v1209 = vunpack.c.l.b16 %v921
        %v1210 = vunpack.c.l.b16 %v922
        %v1211 = vunpack.c.l.b16 %v923
        %v1212 = vunpack.c.l.b16 %v924
        %v1213 = vunpack.c.l.b16 %v925
        %v1214 = vunpack.c.l.b16 %v926
        %v1215 = vunpack.c.l.b16 %v927
        %v1216 = vunpack.c.l.b16 %v928
        %v1217 = vunpack.c.l.b16 %v929
        %v1218 = vunpack.c.l.b16 %v930
        %v1219 = vunpack.c.l.b16 %v931
        %v1220 = vunpack.c.l.b16 %v932
        %v1221 = vunpack.c.l.b16 %v933
        %v1222 = vunpack.c.l.b16 %v934
        %v1223 = vunpack.c.l.b16 %v935
        %v1224 = vunpack.c.l.b16 %v936
        %v1225 = vpack.c.b16 %v1082, %v1081
        %v1226 = vpack.c.b16 %v1084, %v1083
        %v1227 = vpack.c.b16 %v1086, %v1085
        %v1228 = vpack.c.b16 %v1088, %v1087
        %v1229 = vpack.c.b16 %v1090, %v1089
        %v1230 = vpack.c.b16 %v1092, %v1091
        %v1231 = vpack.c.b16 %v1094, %v1093
        %v1232 = vpack.c.b16 %v1096, %v1095
        %v1233 = vpack.c.b16 %v1098, %v1097
        %v1234 = vpack.c.b16 %v1100, %v1099
        %v1235 = vpack.c.b16 %v1102, %v1101
        %v1236 = vpack.c.b16 %v1104, %v1103
        %v1237 = vpack.c.b16 %v1106, %v1105
        %v1238 = vpack.c.b16 %v1108, %v1107
        %v1239 = vpack.c.b16 %v1110, %v1109
        %v1240 = vpack.c.b16 %v1112, %v1111
        %v1241 = vpack.c.b16 %v1114, %v1113
        %v1242 = vpack.c.b16 %v1116, %v1115
        %v1243 = vpack.c.b16 %v1118, %v1117
        %v1244 = vpack.c.b16 %v1120, %v1119
        %v1245 = vpack.c.b16 %v1122, %v1121
        %v1246 = vpack.c.b16 %v1124, %v1123
        %v1247 = vpack.c.b16 %v1126, %v1125
        %v1248 = vpack.c.b16 %v1128, %v1127
        %v1249 = vpack.c.b16 %v1130, %v1129
        %v1250 = vpack.c.b16 %v1132, %v1131
        %v1251 = vpack.c.b16 %v1134, %v1133
        %v1252 = vpack.c.b16 %v1136, %v1135
        %v1253 = vpack.c.b16 %v1138, %v1137
        %v1254 = vpack.c.b16 %v1140, %v1139
        %v1255 = vpack.c.b16 %v1142, %v1141
        %v1256 = vpack.c.b16 %v1144, %v1143
        %v1257 = vpack.c.b16 %v1146, %v1145
        %v1258 = vpack.c.b16 %v1148, %v1147
        %v1259 = vpack.c.b16 %v1150, %v1149
        %v1260 = vpack.c.b16 %v1152, %v1151
        %v1261 = vpack.c.b16 %v1154, %v1153
        %v1262 = vpack.c.b16 %v1156, %v1155
        %v1263 = vpack.c.b16 %v1158, %v1157
        %v1264 = vpack.c.b16 %v1160, %v1159
        %v1265 = vpack.c.b16 %v1162, %v1161
        %v1266 = vpack.c.b16 %v1164, %v1163
        %v1267 = vpack.c.b16 %v1166, %v1165
        %v1268 = vpack.c.b16 %v1168, %v1167
        %v1269 = vpack.c.b16 %v1170, %v1169
        %v1270 = vpack.c.b16 %v1172, %v1171
        %v1271 = vpack.c.b16 %v1174, %v1173
        %v1272 = vpack.c.b16 %v1176, %v1175
        %v1273 = vpack.c.b16 %v1178, %v1177
        %v1274 = vpack.c.b16 %v1180, %v1179
        %v1275 = vpack.c.b16 %v1182, %v1181
        %v1276 = vpack.c.b16 %v1184, %v1183
        %v1277 = vpack.c.b16 %v1186, %v1185
        %v1278 = vpack.c.b16 %v1188, %v1187
        %v1279 = vpack.c.b16 %v1190, %v1189
        %v1280 = vpack.c.b16 %v1192, %v1191
        %v1281 = vpack.c.b16 %v1194, %v1193
        %v1282 = vpack.c.b16 %v1196, %v1195
        %v1283 = vpack.c.b16 %v1198, %v1197
        %v1284 = vpack.c.b16 %v1200, %v1199
        %v1285 = vpack.c.b16 %v1202, %v1201
        %v1286 = vpack.c.b16 %v1204, %v1203
        %v1287 = vpack.c.b16 %v1206, %v1205
        %v1288 = vpack.c.b16 %v1208, %v1207
        %v1289 = vpack.c.b16 %v1210, %v1209
        %v1290 = vpack.c.b16 %v1212, %v1211
        %v1291 = vpack.c.b16 %v1214, %v1213
        %v1292 = vpack.c.b16 %v1216, %v1215
        %v1293 = vpack.c.b16 %v1218, %v1217
        %v1294 = vpack.c.b16 %v1220, %v1219
        %v1295 = vpack.c.b16 %v1222, %v1221
        %v1296 = vpack.c.b16 %v1224, %v1223
        %1369 = vmatprep.subr.bf16.mxu0 0
        %1370 = vmatpush1.bf16.msra.mxu0 %v1225
        %1371 = vmatprep.subr.bf16.mxu0 0
        %1372 = vmatpush1.bf16.msra.mxu0 %v1226
        %1373 = vmatprep.subr.bf16.mxu0 0
        %1374 = vmatpush1.bf16.msra.mxu0 %v1227
        %1375 = vmatprep.subr.bf16.mxu0 0
        %1376 = vmatpush1.bf16.msra.mxu0 %v1228
        %1377 = vmatprep.subr.bf16.mxu0 0
        %1378 = vmatpush1.bf16.msra.mxu0 %v1229
        %1379 = vmatprep.subr.bf16.mxu0 0
        %1380 = vmatpush1.bf16.msra.mxu0 %v1230
        %1381 = vmatprep.subr.bf16.mxu0 0
        %1382 = vmatpush1.bf16.msra.mxu0 %v1231
        %1383 = vmatprep.subr.bf16.mxu0 0
        %1384 = vmatpush1.bf16.msra.mxu0 %v1232
        %1385 = vmatprep.subr.bf16.mxu0 0
        %1386 = vmatpush1.bf16.msra.mxu0 %v1233
        %1387 = vmatprep.subr.bf16.mxu0 0
        %1388 = vmatpush1.bf16.msra.mxu0 %v1234
        %1389 = vmatprep.subr.bf16.mxu0 0
        %1390 = vmatpush1.bf16.msra.mxu0 %v1235
        %1391 = vmatprep.subr.bf16.mxu0 0
        %1392 = vmatpush1.bf16.msra.mxu0 %v1236
        %1393 = vmatprep.subr.bf16.mxu0 0
        %1394 = vmatpush1.bf16.msra.mxu0 %v1237
        %1395 = vmatprep.subr.bf16.mxu0 0
        %1396 = vmatpush1.bf16.msra.mxu0 %v1238
        %1397 = vmatprep.subr.bf16.mxu0 0
        %1398 = vmatpush1.bf16.msra.mxu0 %v1239
        %1399 = vmatprep.subr.bf16.mxu0 0
        %1400 = vmatpush1.bf16.msra.mxu0 %v1240
        %1401 = vmatprep.mubr.bf16.mxu0 %v740
        %1402 = vmatmul.mubr.bf16.gmra.mrb[0].mxu0 %v739
        %v1403 = vpop.f32.mrb[0].mxu0
        %v1404 = vadd.f32 0.0, %v1403
        %v1405 = vpop.f32.mrb[0].mxu0
        %v1406 = vpop.f32.mrb[0].mxu0
        %v1407 = vadd.f32 0.0, %v1406
        %v1408 = vpop.f32.mrb[0].mxu0
        %1409 = vmatprep.mubr.bf16.mxu0 %v743
        %1410 = vmatmul.mubr.bf16.gmra.mrb[0].mxu0 %v742
        %v1411 = vpop.f32.mrb[0].mxu0
        %v1412 = vadd.f32 0.0, %v1411
        %v1413 = vpop.f32.mrb[0].mxu0
        %v1414 = vpop.f32.mrb[0].mxu0
        %v1415 = vadd.f32 0.0, %v1414
        %v1416 = vpop.f32.mrb[0].mxu0
        %1417 = vmatprep.mubr.bf16.mxu0 %v746
        %1418 = vmatmul.mubr.bf16.gmra.mrb[0].mxu0 %v745
        %v1419 = vpop.f32.mrb[0].mxu0
        %v1420 = vadd.f32 0.0, %v1419
        %v1421 = vpop.f32.mrb[0].mxu0
        %v1422 = vpop.f32.mrb[0].mxu0
        %v1423 = vadd.f32 0.0, %v1422
        %v1424 = vpop.f32.mrb[0].mxu0
        %1425 = vmatprep.mubr.bf16.mxu0 %v749
        %1426 = vmatmul.mubr.bf16.gmra.mrb[0].mxu0 %v748
        %v1427 = vpop.f32.mrb[0].mxu0
        %v1428 = vadd.f32 0.0, %v1427
        %v1429 = vpop.f32.mrb[0].mxu0
        %v1430 = vpop.f32.mrb[0].mxu0
        %v1431 = vadd.f32 0.0, %v1430
        %v1432 = vpop.f32.mrb[0].mxu0
        %1433 = vmatprep.mubr.bf16.mxu0 %v752
        %1434 = vmatmul.mubr.bf16.gmra.mrb[0].mxu0 %v751
        %v1435 = vpop.f32.mrb[0].mxu0
        %v1436 = vadd.f32 0.0, %v1435
        %v1437 = vpop.f32.mrb[0].mxu0
        %v1438 = vpop.f32.mrb[0].mxu0
        %v1439 = vadd.f32 0.0, %v1438
        %v1440 = vpop.f32.mrb[0].mxu0
        %1441 = vmatprep.mubr.bf16.mxu0 %v755
        %1442 = vmatmul.mubr.bf16.gmra.mrb[0].mxu0 %v754
        %v1443 = vpop.f32.mrb[0].mxu0
        %v1444 = vadd.f32 0.0, %v1443
        %v1445 = vpop.f32.mrb[0].mxu0
        %v1446 = vpop.f32.mrb[0].mxu0
        %v1447 = vadd.f32 0.0, %v1446
        %v1448 = vpop.f32.mrb[0].mxu0
        %1449 = vmatprep.mubr.bf16.mxu0 %v758
        %1450 = vmatmul.mubr.bf16.gmra.mrb[0].mxu0 %v757
        %v1451 = vpop.f32.mrb[0].mxu0
        %v1452 = vadd.f32 0.0, %v1451
        %v1453 = vpop.f32.mrb[0].mxu0
        %v1454 = vpop.f32.mrb[0].mxu0
        %v1455 = vadd.f32 0.0, %v1454
        %v1456 = vpop.f32.mrb[0].mxu0
        %1457 = vmatprep.mubr.bf16.mxu0 %v761
        %1458 = vmatmul.mubr.bf16.gmra.mrb[0].mxu0 %v760
        %v1459 = vpop.f32.mrb[0].mxu0
        %v1460 = vadd.f32 0.0, %v1459
        %v1461 = vpop.f32.mrb[0].mxu0
        %v1462 = vpop.f32.mrb[0].mxu0
        %v1463 = vadd.f32 0.0, %v1462
        %v1464 = vpop.f32.mrb[0].mxu0
        %1465 = vmatprep.mubr.bf16.mxu0 %v764
        %1466 = vmatmul.mubr.bf16.gmra.mrb[0].mxu0 %v763
        %v1467 = vpop.f32.mrb[0].mxu0
        %v1468 = vadd.f32 0.0, %v1467
        %v1469 = vpop.f32.mrb[0].mxu0
        %v1470 = vpop.f32.mrb[0].mxu0
        %v1471 = vadd.f32 0.0, %v1470
        %v1472 = vpop.f32.mrb[0].mxu0
        %1473 = vmatprep.mubr.bf16.mxu0 %v767
        %1474 = vmatmul.mubr.bf16.gmra.mrb[0].mxu0 %v766
        %v1475 = vpop.f32.mrb[0].mxu0
        %v1476 = vadd.f32 0.0, %v1475
        %v1477 = vpop.f32.mrb[0].mxu0
        %v1478 = vpop.f32.mrb[0].mxu0
        %v1479 = vadd.f32 0.0, %v1478
        %v1480 = vpop.f32.mrb[0].mxu0
        %1481 = vmatprep.mubr.bf16.mxu0 %v770
        %1482 = vmatmul.mubr.bf16.gmra.mrb[0].mxu0 %v769
        %v1483 = vpop.f32.mrb[0].mxu0
        %v1484 = vadd.f32 0.0, %v1483
        %v1485 = vpop.f32.mrb[0].mxu0
        %v1486 = vpop.f32.mrb[0].mxu0
        %v1487 = vadd.f32 0.0, %v1486
        %v1488 = vpop.f32.mrb[0].mxu0
        %1489 = vmatprep.mubr.bf16.mxu0 %v773
        %1490 = vmatmul.mubr.bf16.gmra.mrb[0].mxu0 %v772
        %v1491 = vpop.f32.mrb[0].mxu0
        %v1492 = vadd.f32 0.0, %v1491
        %v1493 = vpop.f32.mrb[0].mxu0
        %v1494 = vpop.f32.mrb[0].mxu0
        %v1495 = vadd.f32 0.0, %v1494
        %v1496 = vpop.f32.mrb[0].mxu0
        %1497 = vmatprep.mubr.bf16.mxu0 %v776
        %1498 = vmatmul.mubr.bf16.gmra.mrb[0].mxu0 %v775
        %v1499 = vpop.f32.mrb[0].mxu0
        %v1500 = vadd.f32 0.0, %v1499
        %v1501 = vpop.f32.mrb[0].mxu0
        %v1502 = vpop.f32.mrb[0].mxu0
        %v1503 = vadd.f32 0.0, %v1502
        %v1504 = vpop.f32.mrb[0].mxu0
        %1505 = vmatprep.mubr.bf16.mxu0 %v779
        %1506 = vmatmul.mubr.bf16.gmra.mrb[0].mxu0 %v778
        %v1507 = vpop.f32.mrb[0].mxu0
        %v1508 = vadd.f32 0.0, %v1507
        %v1509 = vpop.f32.mrb[0].mxu0
        %v1510 = vpop.f32.mrb[0].mxu0
        %v1511 = vadd.f32 0.0, %v1510
        %v1512 = vpop.f32.mrb[0].mxu0
        %1513 = vmatprep.mubr.bf16.mxu0 %v782
        %1514 = vmatmul.mubr.bf16.gmra.mrb[0].mxu0 %v781
        %v1515 = vpop.f32.mrb[0].mxu0
        %v1516 = vadd.f32 0.0, %v1515
        %v1517 = vpop.f32.mrb[0].mxu0
        %v1518 = vpop.f32.mrb[0].mxu0
        %v1519 = vadd.f32 0.0, %v1518
        %v1520 = vpop.f32.mrb[0].mxu0
        %1521 = vmatprep.mubr.bf16.mxu0 %v785
        %1522 = vmatmul.mubr.bf16.gmra.mrb[0].mxu0 %v784
        %v1523 = vpop.f32.mrb[0].mxu0
        %v1524 = vadd.f32 0.0, %v1523
        %v1525 = vpop.f32.mrb[0].mxu0
        %v1526 = vpop.f32.mrb[0].mxu0
        %v1527 = vadd.f32 0.0, %v1526
        %v1528 = vpop.f32.mrb[0].mxu0
        %1529 = vdwg.mxu0
        %1530 = vmatprep.subr.bf16.mxu0 0
        %1531 = vmatpush1.bf16.msra.mxu0 %v1241
        %1532 = vmatprep.subr.bf16.mxu0 0
        %1533 = vmatpush1.bf16.msra.mxu0 %v1242
        %1534 = vmatprep.subr.bf16.mxu0 0
        %1535 = vmatpush1.bf16.msra.mxu0 %v1243
        %1536 = vmatprep.subr.bf16.mxu0 0
        %1537 = vmatpush1.bf16.msra.mxu0 %v1244
        %1538 = vmatprep.subr.bf16.mxu0 0
        %1539 = vmatpush1.bf16.msra.mxu0 %v1245
        %1540 = vmatprep.subr.bf16.mxu0 0
        %1541 = vmatpush1.bf16.msra.mxu0 %v1246
        %1542 = vmatprep.subr.bf16.mxu0 0
        %1543 = vmatpush1.bf16.msra.mxu0 %v1247
        %1544 = vmatprep.subr.bf16.mxu0 0
        %1545 = vmatpush1.bf16.msra.mxu0 %v1248
        %1546 = vmatprep.subr.bf16.mxu0 0
        %1547 = vmatpush1.bf16.msra.mxu0 %v1249
        %1548 = vmatprep.subr.bf16.mxu0 0
        %1549 = vmatpush1.bf16.msra.mxu0 %v1250
        %1550 = vmatprep.subr.bf16.mxu0 0
        %1551 = vmatpush1.bf16.msra.mxu0 %v1251
        %1552 = vmatprep.subr.bf16.mxu0 0
        %1553 = vmatpush1.bf16.msra.mxu0 %v1252
        %1554 = vmatprep.subr.bf16.mxu0 0
        %1555 = vmatpush1.bf16.msra.mxu0 %v1253
        %1556 = vmatprep.subr.bf16.mxu0 0
        %1557 = vmatpush1.bf16.msra.mxu0 %v1254
        %1558 = vmatprep.subr.bf16.mxu0 0
        %1559 = vmatpush1.bf16.msra.mxu0 %v1255
        %1560 = vmatprep.subr.bf16.mxu0 0
        %1561 = vmatpush1.bf16.msra.mxu0 %v1256
        %1562 = vmatprep.mubr.bf16.mxu0 %v742
        %1563 = vmatmul.mubr.bf16.gmra.mrb[0].mxu0 %v741
        %v1564 = vpop.f32.mrb[0].mxu0
        %v1565 = vadd.f32 %v1404, %v1564
        %v1566 = vpop.f32.mrb[0].mxu0
        %v1567 = vpop.f32.mrb[0].mxu0
        %v1568 = vadd.f32 %v1407, %v1567
        %v1569 = vpop.f32.mrb[0].mxu0
        %1570 = vmatprep.mubr.bf16.mxu0 %v745
        %1571 = vmatmul.mubr.bf16.gmra.mrb[0].mxu0 %v744
        %v1572 = vpop.f32.mrb[0].mxu0
        %v1573 = vadd.f32 %v1412, %v1572
        %v1574 = vpop.f32.mrb[0].mxu0
        %v1575 = vpop.f32.mrb[0].mxu0
        %v1576 = vadd.f32 %v1415, %v1575
        %v1577 = vpop.f32.mrb[0].mxu0
        %1578 = vmatprep.mubr.bf16.mxu0 %v748
        %1579 = vmatmul.mubr.bf16.gmra.mrb[0].mxu0 %v747
        %v1580 = vpop.f32.mrb[0].mxu0
        %v1581 = vadd.f32 %v1420, %v1580
        %v1582 = vpop.f32.mrb[0].mxu0
        %v1583 = vpop.f32.mrb[0].mxu0
        %v1584 = vadd.f32 %v1423, %v1583
        %v1585 = vpop.f32.mrb[0].mxu0
        %1586 = vmatprep.mubr.bf16.mxu0 %v751
        %1587 = vmatmul.mubr.bf16.gmra.mrb[0].mxu0 %v750
        %v1588 = vpop.f32.mrb[0].mxu0
        %v1589 = vadd.f32 %v1428, %v1588
        %v1590 = vpop.f32.mrb[0].mxu0
        %v1591 = vpop.f32.mrb[0].mxu0
        %v1592 = vadd.f32 %v1431, %v1591
        %v1593 = vpop.f32.mrb[0].mxu0
        %1594 = vmatprep.mubr.bf16.mxu0 %v754
        %1595 = vmatmul.mubr.bf16.gmra.mrb[0].mxu0 %v753
        %v1596 = vpop.f32.mrb[0].mxu0
        %v1597 = vadd.f32 %v1436, %v1596
        %v1598 = vpop.f32.mrb[0].mxu0
        %v1599 = vpop.f32.mrb[0].mxu0
        %v1600 = vadd.f32 %v1439, %v1599
        %v1601 = vpop.f32.mrb[0].mxu0
        %1602 = vmatprep.mubr.bf16.mxu0 %v757
        %1603 = vmatmul.mubr.bf16.gmra.mrb[0].mxu0 %v756
        %v1604 = vpop.f32.mrb[0].mxu0
        %v1605 = vadd.f32 %v1444, %v1604
        %v1606 = vpop.f32.mrb[0].mxu0
        %v1607 = vpop.f32.mrb[0].mxu0
        %v1608 = vadd.f32 %v1447, %v1607
        %v1609 = vpop.f32.mrb[0].mxu0
        %1610 = vmatprep.mubr.bf16.mxu0 %v760
        %1611 = vmatmul.mubr.bf16.gmra.mrb[0].mxu0 %v759
        %v1612 = vpop.f32.mrb[0].mxu0
        %v1613 = vadd.f32 %v1452, %v1612
        %v1614 = vpop.f32.mrb[0].mxu0
        %v1615 = vpop.f32.mrb[0].mxu0
        %v1616 = vadd.f32 %v1455, %v1615
        %v1617 = vpop.f32.mrb[0].mxu0
        %1618 = vmatprep.mubr.bf16.mxu0 %v763
        %1619 = vmatmul.mubr.bf16.gmra.mrb[0].mxu0 %v762
        %v1620 = vpop.f32.mrb[0].mxu0
        %v1621 = vadd.f32 %v1460, %v1620
        %v1622 = vpop.f32.mrb[0].mxu0
        %v1623 = vpop.f32.mrb[0].mxu0
        %v1624 = vadd.f32 %v1463, %v1623
        %v1625 = vpop.f32.mrb[0].mxu0
        %1626 = vmatprep.mubr.bf16.mxu0 %v766
        %1627 = vmatmul.mubr.bf16.gmra.mrb[0].mxu0 %v765
        %v1628 = vpop.f32.mrb[0].mxu0
        %v1629 = vadd.f32 %v1468, %v1628
        %v1630 = vpop.f32.mrb[0].mxu0
        %v1631 = vpop.f32.mrb[0].mxu0
        %v1632 = vadd.f32 %v1471, %v1631
        %v1633 = vpop.f32.mrb[0].mxu0
        %1634 = vmatprep.mubr.bf16.mxu0 %v769
        %1635 = vmatmul.mubr.bf16.gmra.mrb[0].mxu0 %v768
        %v1636 = vpop.f32.mrb[0].mxu0
        %v1637 = vadd.f32 %v1476, %v1636
        %v1638 = vpop.f32.mrb[0].mxu0
        %v1639 = vpop.f32.mrb[0].mxu0
        %v1640 = vadd.f32 %v1479, %v1639
        %v1641 = vpop.f32.mrb[0].mxu0
        %1642 = vmatprep.mubr.bf16.mxu0 %v772
        %1643 = vmatmul.mubr.bf16.gmra.mrb[0].mxu0 %v771
        %v1644 = vpop.f32.mrb[0].mxu0
        %v1645 = vadd.f32 %v1484, %v1644
        %v1646 = vpop.f32.mrb[0].mxu0
        %v1647 = vpop.f32.mrb[0].mxu0
        %v1648 = vadd.f32 %v1487, %v1647
        %v1649 = vpop.f32.mrb[0].mxu0
        %1650 = vmatprep.mubr.bf16.mxu0 %v775
        %1651 = vmatmul.mubr.bf16.gmra.mrb[0].mxu0 %v774
        %v1652 = vpop.f32.mrb[0].mxu0
        %v1653 = vadd.f32 %v1492, %v1652
        %v1654 = vpop.f32.mrb[0].mxu0
        %v1655 = vpop.f32.mrb[0].mxu0
        %v1656 = vadd.f32 %v1495, %v1655
        %v1657 = vpop.f32.mrb[0].mxu0
        %1658 = vmatprep.mubr.bf16.mxu0 %v778
        %1659 = vmatmul.mubr.bf16.gmra.mrb[0].mxu0 %v777
        %v1660 = vpop.f32.mrb[0].mxu0
        %v1661 = vadd.f32 %v1500, %v1660
        %v1662 = vpop.f32.mrb[0].mxu0
        %v1663 = vpop.f32.mrb[0].mxu0
        %v1664 = vadd.f32 %v1503, %v1663
        %v1665 = vpop.f32.mrb[0].mxu0
        %1666 = vmatprep.mubr.bf16.mxu0 %v781
        %1667 = vmatmul.mubr.bf16.gmra.mrb[0].mxu0 %v780
        %v1668 = vpop.f32.mrb[0].mxu0
        %v1669 = vadd.f32 %v1508, %v1668
        %v1670 = vpop.f32.mrb[0].mxu0
        %v1671 = vpop.f32.mrb[0].mxu0
        %v1672 = vadd.f32 %v1511, %v1671
        %v1673 = vpop.f32.mrb[0].mxu0
        %1674 = vmatprep.mubr.bf16.mxu0 %v784
        %1675 = vmatmul.mubr.bf16.gmra.mrb[0].mxu0 %v783
        %v1676 = vpop.f32.mrb[0].mxu0
        %v1677 = vadd.f32 %v1516, %v1676
        %v1678 = vpop.f32.mrb[0].mxu0
        %v1679 = vpop.f32.mrb[0].mxu0
        %v1680 = vadd.f32 %v1519, %v1679
        %v1681 = vpop.f32.mrb[0].mxu0
        %1682 = vmatprep.mubr.bf16.mxu0 %v787
        %1683 = vmatmul.mubr.bf16.gmra.mrb[0].mxu0 %v786
        %v1684 = vpop.f32.mrb[0].mxu0
        %v1685 = vadd.f32 %v1524, %v1684
        %v1686 = vpop.f32.mrb[0].mxu0
        %v1687 = vpop.f32.mrb[0].mxu0
        %v1688 = vadd.f32 %v1527, %v1687
        %v1689 = vpop.f32.mrb[0].mxu0
        %1690 = vdwg.mxu0
        %1691 = vmatprep.subr.bf16.mxu0 0
        %1692 = vmatpush1.bf16.msra.mxu0 %v1257
        %1693 = vmatprep.subr.bf16.mxu0 0
        %1694 = vmatpush1.bf16.msra.mxu0 %v1258
        %1695 = vmatprep.subr.bf16.mxu0 0
        %1696 = vmatpush1.bf16.msra.mxu0 %v1259
        %1697 = vmatprep.subr.bf16.mxu0 0
        %1698 = vmatpush1.bf16.msra.mxu0 %v1260
        %1699 = vmatprep.subr.bf16.mxu0 0
        %1700 = vmatpush1.bf16.msra.mxu0 %v1261
        %1701 = vmatprep.subr.bf16.mxu0 0
        %1702 = vmatpush1.bf16.msra.mxu0 %v1262
        %1703 = vmatprep.subr.bf16.mxu0 0
        %1704 = vmatpush1.bf16.msra.mxu0 %v1263
        %1705 = vmatprep.subr.bf16.mxu0 0
        %1706 = vmatpush1.bf16.msra.mxu0 %v1264
        %1707 = vmatprep.subr.bf16.mxu0 0
        %1708 = vmatpush1.bf16.msra.mxu0 %v1265
        %1709 = vmatprep.subr.bf16.mxu0 0
        %1710 = vmatpush1.bf16.msra.mxu0 %v1266
        %1711 = vmatprep.subr.bf16.mxu0 0
        %1712 = vmatpush1.bf16.msra.mxu0 %v1267
        %1713 = vmatprep.subr.bf16.mxu0 0
        %1714 = vmatpush1.bf16.msra.mxu0 %v1268
        %1715 = vmatprep.subr.bf16.mxu0 0
        %1716 = vmatpush1.bf16.msra.mxu0 %v1269
        %1717 = vmatprep.subr.bf16.mxu0 0
        %1718 = vmatpush1.bf16.msra.mxu0 %v1270
        %1719 = vmatprep.subr.bf16.mxu0 0
        %1720 = vmatpush1.bf16.msra.mxu0 %v1271
        %1721 = vmatprep.subr.bf16.mxu0 0
        %1722 = vmatpush1.bf16.msra.mxu0 %v1272
        %1723 = vmatprep.mubr.bf16.mxu0 %v744
        %1724 = vmatmul.mubr.bf16.gmra.mrb[0].mxu0 %v743
        %v1725 = vpop.f32.mrb[0].mxu0
        %v1726 = vadd.f32 %v1565, %v1725
        %v1727 = vpop.f32.mrb[0].mxu0
        %v1728 = vpop.f32.mrb[0].mxu0
        %v1729 = vadd.f32 %v1568, %v1728
        %v1730 = vpop.f32.mrb[0].mxu0
        %1731 = vmatprep.mubr.bf16.mxu0 %v747
        %1732 = vmatmul.mubr.bf16.gmra.mrb[0].mxu0 %v746
        %v1733 = vpop.f32.mrb[0].mxu0
        %v1734 = vadd.f32 %v1573, %v1733
        %v1735 = vpop.f32.mrb[0].mxu0
        %v1736 = vpop.f32.mrb[0].mxu0
        %v1737 = vadd.f32 %v1576, %v1736
        %v1738 = vpop.f32.mrb[0].mxu0
        %1739 = vmatprep.mubr.bf16.mxu0 %v750
        %1740 = vmatmul.mubr.bf16.gmra.mrb[0].mxu0 %v749
        %v1741 = vpop.f32.mrb[0].mxu0
        %v1742 = vadd.f32 %v1581, %v1741
        %v1743 = vpop.f32.mrb[0].mxu0
        %v1744 = vpop.f32.mrb[0].mxu0
        %v1745 = vadd.f32 %v1584, %v1744
        %v1746 = vpop.f32.mrb[0].mxu0
        %1747 = vmatprep.mubr.bf16.mxu0 %v753
        %1748 = vmatmul.mubr.bf16.gmra.mrb[0].mxu0 %v752
        %v1749 = vpop.f32.mrb[0].mxu0
        %v1750 = vadd.f32 %v1589, %v1749
        %v1751 = vpop.f32.mrb[0].mxu0
        %v1752 = vpop.f32.mrb[0].mxu0
        %v1753 = vadd.f32 %v1592, %v1752
        %v1754 = vpop.f32.mrb[0].mxu0
        %1755 = vmatprep.mubr.bf16.mxu0 %v756
        %1756 = vmatmul.mubr.bf16.gmra.mrb[0].mxu0 %v755
        %v1757 = vpop.f32.mrb[0].mxu0
        %v1758 = vadd.f32 %v1597, %v1757
        %v1759 = vpop.f32.mrb[0].mxu0
        %v1760 = vpop.f32.mrb[0].mxu0
        %v1761 = vadd.f32 %v1600, %v1760
        %v1762 = vpop.f32.mrb[0].mxu0
        %1763 = vmatprep.mubr.bf16.mxu0 %v759
        %1764 = vmatmul.mubr.bf16.gmra.mrb[0].mxu0 %v758
        %v1765 = vpop.f32.mrb[0].mxu0
        %v1766 = vadd.f32 %v1605, %v1765
        %v1767 = vpop.f32.mrb[0].mxu0
        %v1768 = vpop.f32.mrb[0].mxu0
        %v1769 = vadd.f32 %v1608, %v1768
        %v1770 = vpop.f32.mrb[0].mxu0
        %1771 = vmatprep.mubr.bf16.mxu0 %v762
        %1772 = vmatmul.mubr.bf16.gmra.mrb[0].mxu0 %v761
        %v1773 = vpop.f32.mrb[0].mxu0
        %v1774 = vadd.f32 %v1613, %v1773
        %v1775 = vpop.f32.mrb[0].mxu0
        %v1776 = vpop.f32.mrb[0].mxu0
        %v1777 = vadd.f32 %v1616, %v1776
        %v1778 = vpop.f32.mrb[0].mxu0
        %1779 = vmatprep.mubr.bf16.mxu0 %v765
        %1780 = vmatmul.mubr.bf16.gmra.mrb[0].mxu0 %v764
        %v1781 = vpop.f32.mrb[0].mxu0
        %v1782 = vadd.f32 %v1621, %v1781
        %v1783 = vpop.f32.mrb[0].mxu0
        %v1784 = vpop.f32.mrb[0].mxu0
        %v1785 = vadd.f32 %v1624, %v1784
        %v1786 = vpop.f32.mrb[0].mxu0
        %1787 = vmatprep.mubr.bf16.mxu0 %v768
        %1788 = vmatmul.mubr.bf16.gmra.mrb[0].mxu0 %v767
        %v1789 = vpop.f32.mrb[0].mxu0
        %v1790 = vadd.f32 %v1629, %v1789
        %v1791 = vpop.f32.mrb[0].mxu0
        %v1792 = vpop.f32.mrb[0].mxu0
        %v1793 = vadd.f32 %v1632, %v1792
        %v1794 = vpop.f32.mrb[0].mxu0
        %1795 = vmatprep.mubr.bf16.mxu0 %v771
        %1796 = vmatmul.mubr.bf16.gmra.mrb[0].mxu0 %v770
        %v1797 = vpop.f32.mrb[0].mxu0
        %v1798 = vadd.f32 %v1637, %v1797
        %v1799 = vpop.f32.mrb[0].mxu0
        %v1800 = vpop.f32.mrb[0].mxu0
        %v1801 = vadd.f32 %v1640, %v1800
        %v1802 = vpop.f32.mrb[0].mxu0
        %1803 = vmatprep.mubr.bf16.mxu0 %v774
        %1804 = vmatmul.mubr.bf16.gmra.mrb[0].mxu0 %v773
        %v1805 = vpop.f32.mrb[0].mxu0
        %v1806 = vadd.f32 %v1645, %v1805
        %v1807 = vpop.f32.mrb[0].mxu0
        %v1808 = vpop.f32.mrb[0].mxu0
        %v1809 = vadd.f32 %v1648, %v1808
        %v1810 = vpop.f32.mrb[0].mxu0
        %1811 = vmatprep.mubr.bf16.mxu0 %v777
        %1812 = vmatmul.mubr.bf16.gmra.mrb[0].mxu0 %v776
        %v1813 = vpop.f32.mrb[0].mxu0
        %v1814 = vadd.f32 %v1653, %v1813
        %v1815 = vpop.f32.mrb[0].mxu0
        %v1816 = vpop.f32.mrb[0].mxu0
        %v1817 = vadd.f32 %v1656, %v1816
        %v1818 = vpop.f32.mrb[0].mxu0
        %1819 = vmatprep.mubr.bf16.mxu0 %v780
        %1820 = vmatmul.mubr.bf16.gmra.mrb[0].mxu0 %v779
        %v1821 = vpop.f32.mrb[0].mxu0
        %v1822 = vadd.f32 %v1661, %v1821
        %v1823 = vpop.f32.mrb[0].mxu0
        %v1824 = vpop.f32.mrb[0].mxu0
        %v1825 = vadd.f32 %v1664, %v1824
        %v1826 = vpop.f32.mrb[0].mxu0
        %1827 = vmatprep.mubr.bf16.mxu0 %v783
        %1828 = vmatmul.mubr.bf16.gmra.mrb[0].mxu0 %v782
        %v1829 = vpop.f32.mrb[0].mxu0
        %v1830 = vadd.f32 %v1669, %v1829
        %v1831 = vpop.f32.mrb[0].mxu0
        %v1832 = vpop.f32.mrb[0].mxu0
        %v1833 = vadd.f32 %v1672, %v1832
        %v1834 = vpop.f32.mrb[0].mxu0
        %1835 = vmatprep.mubr.bf16.mxu0 %v786
        %1836 = vmatmul.mubr.bf16.gmra.mrb[0].mxu0 %v785
        %v1837 = vpop.f32.mrb[0].mxu0
        %v1838 = vadd.f32 %v1677, %v1837
        %v1839 = vpop.f32.mrb[0].mxu0
        %v1840 = vpop.f32.mrb[0].mxu0
        %v1841 = vadd.f32 %v1680, %v1840
        %v1842 = vpop.f32.mrb[0].mxu0
        %1843 = vmatprep.mubr.bf16.mxu0 %v789
        %1844 = vmatmul.mubr.bf16.gmra.mrb[0].mxu0 %v788
        %v1845 = vpop.f32.mrb[0].mxu0
        %v1846 = vadd.f32 %v1685, %v1845
        %v1847 = vpop.f32.mrb[0].mxu0
        %v1848 = vpop.f32.mrb[0].mxu0
        %v1849 = vadd.f32 %v1688, %v1848
        %v1850 = vpop.f32.mrb[0].mxu0
        %1851 = vdwg.mxu0
        %1852 = vmatprep.subr.bf16.mxu0 0
        %1853 = vmatpush1.bf16.msra.mxu0 %v1273
        %1854 = vmatprep.subr.bf16.mxu0 0
        %1855 = vmatpush1.bf16.msra.mxu0 %v1274
        %1856 = vmatprep.subr.bf16.mxu0 0
        %1857 = vmatpush1.bf16.msra.mxu0 %v1275
        %1858 = vmatprep.subr.bf16.mxu0 0
        %1859 = vmatpush1.bf16.msra.mxu0 %v1276
        %1860 = vmatprep.subr.bf16.mxu0 0
        %1861 = vmatpush1.bf16.msra.mxu0 %v1277
        %1862 = vmatprep.subr.bf16.mxu0 0
        %1863 = vmatpush1.bf16.msra.mxu0 %v1278
        %1864 = vmatprep.subr.bf16.mxu0 0
        %1865 = vmatpush1.bf16.msra.mxu0 %v1279
        %1866 = vmatprep.subr.bf16.mxu0 0
        %1867 = vmatpush1.bf16.msra.mxu0 %v1280
        %1868 = vmatprep.subr.bf16.mxu0 0
        %1869 = vmatpush1.bf16.msra.mxu0 %v1281
        %1870 = vmatprep.subr.bf16.mxu0 0
        %1871 = vmatpush1.bf16.msra.mxu0 %v1282
        %1872 = vmatprep.subr.bf16.mxu0 0
        %1873 = vmatpush1.bf16.msra.mxu0 %v1283
        %1874 = vmatprep.subr.bf16.mxu0 0
        %1875 = vmatpush1.bf16.msra.mxu0 %v1284
        %1876 = vmatprep.subr.bf16.mxu0 0
        %1877 = vmatpush1.bf16.msra.mxu0 %v1285
        %1878 = vmatprep.subr.bf16.mxu0 0
        %1879 = vmatpush1.bf16.msra.mxu0 %v1286
        %1880 = vmatprep.subr.bf16.mxu0 0
        %1881 = vmatpush1.bf16.msra.mxu0 %v1287
        %1882 = vmatprep.subr.bf16.mxu0 0
        %1883 = vmatpush1.bf16.msra.mxu0 %v1288
        %1884 = vmatprep.mubr.bf16.mxu0 %v746
        %1885 = vmatmul.mubr.bf16.gmra.mrb[0].mxu0 %v745
        %v1886 = vpop.f32.mrb[0].mxu0
        %v1887 = vadd.f32 %v1726, %v1886
        %v1888 = vpop.f32.mrb[0].mxu0
        %v1889 = vpop.f32.mrb[0].mxu0
        %v1890 = vadd.f32 %v1729, %v1889
        %v1891 = vpop.f32.mrb[0].mxu0
        %1892 = vmatprep.mubr.bf16.mxu0 %v749
        %1893 = vmatmul.mubr.bf16.gmra.mrb[0].mxu0 %v748
        %v1894 = vpop.f32.mrb[0].mxu0
        %v1895 = vadd.f32 %v1734, %v1894
        %v1896 = vpop.f32.mrb[0].mxu0
        %v1897 = vpop.f32.mrb[0].mxu0
        %v1898 = vadd.f32 %v1737, %v1897
        %v1899 = vpop.f32.mrb[0].mxu0
        %1900 = vmatprep.mubr.bf16.mxu0 %v752
        %1901 = vmatmul.mubr.bf16.gmra.mrb[0].mxu0 %v751
        %v1902 = vpop.f32.mrb[0].mxu0
        %v1903 = vadd.f32 %v1742, %v1902
        %v1904 = vpop.f32.mrb[0].mxu0
        %v1905 = vpop.f32.mrb[0].mxu0
        %v1906 = vadd.f32 %v1745, %v1905
        %v1907 = vpop.f32.mrb[0].mxu0
        %1908 = vmatprep.mubr.bf16.mxu0 %v755
        %1909 = vmatmul.mubr.bf16.gmra.mrb[0].mxu0 %v754
        %v1910 = vpop.f32.mrb[0].mxu0
        %v1911 = vadd.f32 %v1750, %v1910
        %v1912 = vpop.f32.mrb[0].mxu0
        %v1913 = vpop.f32.mrb[0].mxu0
        %v1914 = vadd.f32 %v1753, %v1913
        %v1915 = vpop.f32.mrb[0].mxu0
        %1916 = vmatprep.mubr.bf16.mxu0 %v758
        %1917 = vmatmul.mubr.bf16.gmra.mrb[0].mxu0 %v757
        %v1918 = vpop.f32.mrb[0].mxu0
        %v1919 = vadd.f32 %v1758, %v1918
        %v1920 = vpop.f32.mrb[0].mxu0
        %v1921 = vpop.f32.mrb[0].mxu0
        %v1922 = vadd.f32 %v1761, %v1921
        %v1923 = vpop.f32.mrb[0].mxu0
        %1924 = vmatprep.mubr.bf16.mxu0 %v761
        %1925 = vmatmul.mubr.bf16.gmra.mrb[0].mxu0 %v760
        %v1926 = vpop.f32.mrb[0].mxu0
        %v1927 = vadd.f32 %v1766, %v1926
        %v1928 = vpop.f32.mrb[0].mxu0
        %v1929 = vpop.f32.mrb[0].mxu0
        %v1930 = vadd.f32 %v1769, %v1929
        %v1931 = vpop.f32.mrb[0].mxu0
        %1932 = vmatprep.mubr.bf16.mxu0 %v764
        %1933 = vmatmul.mubr.bf16.gmra.mrb[0].mxu0 %v763
        %v1934 = vpop.f32.mrb[0].mxu0
        %v1935 = vadd.f32 %v1774, %v1934
        %v1936 = vpop.f32.mrb[0].mxu0
        %v1937 = vpop.f32.mrb[0].mxu0
        %v1938 = vadd.f32 %v1777, %v1937
        %v1939 = vpop.f32.mrb[0].mxu0
        %1940 = vmatprep.mubr.bf16.mxu0 %v767
        %1941 = vmatmul.mubr.bf16.gmra.mrb[0].mxu0 %v766
        %v1942 = vpop.f32.mrb[0].mxu0
        %v1943 = vadd.f32 %v1782, %v1942
        %v1944 = vpop.f32.mrb[0].mxu0
        %v1945 = vpop.f32.mrb[0].mxu0
        %v1946 = vadd.f32 %v1785, %v1945
        %v1947 = vpop.f32.mrb[0].mxu0
        %1948 = vmatprep.mubr.bf16.mxu0 %v770
        %1949 = vmatmul.mubr.bf16.gmra.mrb[0].mxu0 %v769
        %v1950 = vpop.f32.mrb[0].mxu0
        %v1951 = vadd.f32 %v1790, %v1950
        %v1952 = vpop.f32.mrb[0].mxu0
        %v1953 = vpop.f32.mrb[0].mxu0
        %v1954 = vadd.f32 %v1793, %v1953
        %v1955 = vpop.f32.mrb[0].mxu0
        %1956 = vmatprep.mubr.bf16.mxu0 %v773
        %1957 = vmatmul.mubr.bf16.gmra.mrb[0].mxu0 %v772
        %v1958 = vpop.f32.mrb[0].mxu0
        %v1959 = vadd.f32 %v1798, %v1958
        %v1960 = vpop.f32.mrb[0].mxu0
        %v1961 = vpop.f32.mrb[0].mxu0
        %v1962 = vadd.f32 %v1801, %v1961
        %v1963 = vpop.f32.mrb[0].mxu0
        %1964 = vmatprep.mubr.bf16.mxu0 %v776
        %1965 = vmatmul.mubr.bf16.gmra.mrb[0].mxu0 %v775
        %v1966 = vpop.f32.mrb[0].mxu0
        %v1967 = vadd.f32 %v1806, %v1966
        %v1968 = vpop.f32.mrb[0].mxu0
        %v1969 = vpop.f32.mrb[0].mxu0
        %v1970 = vadd.f32 %v1809, %v1969
        %v1971 = vpop.f32.mrb[0].mxu0
        %1972 = vmatprep.mubr.bf16.mxu0 %v779
        %1973 = vmatmul.mubr.bf16.gmra.mrb[0].mxu0 %v778
        %v1974 = vpop.f32.mrb[0].mxu0
        %v1975 = vadd.f32 %v1814, %v1974
        %v1976 = vpop.f32.mrb[0].mxu0
        %v1977 = vpop.f32.mrb[0].mxu0
        %v1978 = vadd.f32 %v1817, %v1977
        %v1979 = vpop.f32.mrb[0].mxu0
        %1980 = vmatprep.mubr.bf16.mxu0 %v782
        %1981 = vmatmul.mubr.bf16.gmra.mrb[0].mxu0 %v781
        %v1982 = vpop.f32.mrb[0].mxu0
        %v1983 = vadd.f32 %v1822, %v1982
        %v1984 = vpop.f32.mrb[0].mxu0
        %v1985 = vpop.f32.mrb[0].mxu0
        %v1986 = vadd.f32 %v1825, %v1985
        %v1987 = vpop.f32.mrb[0].mxu0
        %1988 = vmatprep.mubr.bf16.mxu0 %v785
        %1989 = vmatmul.mubr.bf16.gmra.mrb[0].mxu0 %v784
        %v1990 = vpop.f32.mrb[0].mxu0
        %v1991 = vadd.f32 %v1830, %v1990
        %v1992 = vpop.f32.mrb[0].mxu0
        %v1993 = vpop.f32.mrb[0].mxu0
        %v1994 = vadd.f32 %v1833, %v1993
        %v1995 = vpop.f32.mrb[0].mxu0
        %1996 = vmatprep.mubr.bf16.mxu0 %v788
        %1997 = vmatmul.mubr.bf16.gmra.mrb[0].mxu0 %v787
        %v1998 = vpop.f32.mrb[0].mxu0
        %v1999 = vadd.f32 %v1838, %v1998
        %v2000 = vpop.f32.mrb[0].mxu0
        %v2001 = vpop.f32.mrb[0].mxu0
        %v2002 = vadd.f32 %v1841, %v2001
        %v2003 = vpop.f32.mrb[0].mxu0
        %2004 = vmatprep.mubr.bf16.mxu0 %v791
        %2005 = vmatmul.mubr.bf16.gmra.mrb[0].mxu0 %v790
        %v2006 = vpop.f32.mrb[0].mxu0
        %v2007 = vadd.f32 %v1846, %v2006
        %v2008 = vpop.f32.mrb[0].mxu0
        %v2009 = vpop.f32.mrb[0].mxu0
        %v2010 = vadd.f32 %v1849, %v2009
        %v2011 = vpop.f32.mrb[0].mxu0
        %2012 = vdwg.mxu0
        %2013 = vmatprep.subr.bf16.mxu0 0
        %2014 = vmatpush1.bf16.msra.mxu0 %v1289
        %2015 = vmatprep.subr.bf16.mxu0 0
        %2016 = vmatpush1.bf16.msra.mxu0 %v1290
        %2017 = vmatprep.subr.bf16.mxu0 0
        %2018 = vmatpush1.bf16.msra.mxu0 %v1291
        %2019 = vmatprep.subr.bf16.mxu0 0
        %2020 = vmatpush1.bf16.msra.mxu0 %v1292
        %2021 = vmatprep.subr.bf16.mxu0 0
        %2022 = vmatpush1.bf16.msra.mxu0 %v1293
        %2023 = vmatprep.subr.bf16.mxu0 0
        %2024 = vmatpush1.bf16.msra.mxu0 %v1294
        %2025 = vmatprep.subr.bf16.mxu0 0
        %2026 = vmatpush1.bf16.msra.mxu0 %v1295
        %2027 = vmatprep.subr.bf16.mxu0 0
        %2028 = vmatpush1.bf16.msra.mxu0 %v1296
        %2029 = vmatprep.subr.bf16.mxu0 0
        %2030 = vmatpush1.bf16.msra.mxu0 0
        %2031 = vmatprep.subr.bf16.mxu0 0
        %2032 = vmatpush1.bf16.msra.mxu0 0
        %2033 = vmatprep.subr.bf16.mxu0 0
        %2034 = vmatpush1.bf16.msra.mxu0 0
        %2035 = vmatprep.subr.bf16.mxu0 0
        %2036 = vmatpush1.bf16.msra.mxu0 0
        %2037 = vmatprep.subr.bf16.mxu0 0
        %2038 = vmatpush1.bf16.msra.mxu0 0
        %2039 = vmatprep.subr.bf16.mxu0 0
        %2040 = vmatpush1.bf16.msra.mxu0 0
        %2041 = vmatprep.subr.bf16.mxu0 0
        %2042 = vmatpush1.bf16.msra.mxu0 0
        %2043 = vmatprep.subr.bf16.mxu0 0
        %2044 = vmatpush1.bf16.msra.mxu0 0
        %2045 = vmatprep.mubr.bf16.mxu0 0
        %2046 = vmatmul.mubr.bf16.gmra.mrb[0].mxu0 %v747
        %v2047 = vpop.f32.mrb[0].mxu0
        %v2048 = vadd.f32 %v1887, %v2047
        %v2049 = vpop.f32.mrb[0].mxu0
        %v2050 = vpop.f32.mrb[0].mxu0
        %v2051 = vadd.f32 %v1890, %v2050
        %v2052 = vpop.f32.mrb[0].mxu0
        %2053 = vmatprep.mubr.bf16.mxu0 0
        %2054 = vmatmul.mubr.bf16.gmra.mrb[0].mxu0 %v750
        %v2055 = vpop.f32.mrb[0].mxu0
        %v2056 = vadd.f32 %v1895, %v2055
        %v2057 = vpop.f32.mrb[0].mxu0
        %v2058 = vpop.f32.mrb[0].mxu0
        %v2059 = vadd.f32 %v1898, %v2058
        %v2060 = vpop.f32.mrb[0].mxu0
        %2061 = vmatprep.mubr.bf16.mxu0 0
        %2062 = vmatmul.mubr.bf16.gmra.mrb[0].mxu0 %v753
        %v2063 = vpop.f32.mrb[0].mxu0
        %v2064 = vadd.f32 %v1903, %v2063
        %v2065 = vpop.f32.mrb[0].mxu0
        %v2066 = vpop.f32.mrb[0].mxu0
        %v2067 = vadd.f32 %v1906, %v2066
        %v2068 = vpop.f32.mrb[0].mxu0
        %2069 = vmatprep.mubr.bf16.mxu0 0
        %2070 = vmatmul.mubr.bf16.gmra.mrb[0].mxu0 %v756
        %v2071 = vpop.f32.mrb[0].mxu0
        %v2072 = vadd.f32 %v1911, %v2071
        %v2073 = vpop.f32.mrb[0].mxu0
        %v2074 = vpop.f32.mrb[0].mxu0
        %v2075 = vadd.f32 %v1914, %v2074
        %v2076 = vpop.f32.mrb[0].mxu0
        %2077 = vmatprep.mubr.bf16.mxu0 0
        %2078 = vmatmul.mubr.bf16.gmra.mrb[0].mxu0 %v759
        %v2079 = vpop.f32.mrb[0].mxu0
        %v2080 = vadd.f32 %v1919, %v2079
        %v2081 = vpop.f32.mrb[0].mxu0
        %v2082 = vpop.f32.mrb[0].mxu0
        %v2083 = vadd.f32 %v1922, %v2082
        %v2084 = vpop.f32.mrb[0].mxu0
        %2085 = vmatprep.mubr.bf16.mxu0 0
        %2086 = vmatmul.mubr.bf16.gmra.mrb[0].mxu0 %v762
        %v2087 = vpop.f32.mrb[0].mxu0
        %v2088 = vadd.f32 %v1927, %v2087
        %v2089 = vpop.f32.mrb[0].mxu0
        %v2090 = vpop.f32.mrb[0].mxu0
        %v2091 = vadd.f32 %v1930, %v2090
        %v2092 = vpop.f32.mrb[0].mxu0
        %2093 = vmatprep.mubr.bf16.mxu0 0
        %2094 = vmatmul.mubr.bf16.gmra.mrb[0].mxu0 %v765
        %v2095 = vpop.f32.mrb[0].mxu0
        %v2096 = vadd.f32 %v1935, %v2095
        %v2097 = vpop.f32.mrb[0].mxu0
        %v2098 = vpop.f32.mrb[0].mxu0
        %v2099 = vadd.f32 %v1938, %v2098
        %v2100 = vpop.f32.mrb[0].mxu0
        %2101 = vmatprep.mubr.bf16.mxu0 0
        %2102 = vmatmul.mubr.bf16.gmra.mrb[0].mxu0 %v768
        %v2103 = vpop.f32.mrb[0].mxu0
        %v2104 = vadd.f32 %v1943, %v2103
        %v2105 = vpop.f32.mrb[0].mxu0
        %v2106 = vpop.f32.mrb[0].mxu0
        %v2107 = vadd.f32 %v1946, %v2106
        %v2108 = vpop.f32.mrb[0].mxu0
        %2109 = vmatprep.mubr.bf16.mxu0 0
        %2110 = vmatmul.mubr.bf16.gmra.mrb[0].mxu0 %v771
        %v2111 = vpop.f32.mrb[0].mxu0
        %v2112 = vadd.f32 %v1951, %v2111
        %v2113 = vpop.f32.mrb[0].mxu0
        %v2114 = vpop.f32.mrb[0].mxu0
        %v2115 = vadd.f32 %v1954, %v2114
        %v2116 = vpop.f32.mrb[0].mxu0
        %2117 = vmatprep.mubr.bf16.mxu0 0
        %2118 = vmatmul.mubr.bf16.gmra.mrb[0].mxu0 %v774
        %v2119 = vpop.f32.mrb[0].mxu0
        %v2120 = vadd.f32 %v1959, %v2119
        %v2121 = vpop.f32.mrb[0].mxu0
        %v2122 = vpop.f32.mrb[0].mxu0
        %v2123 = vadd.f32 %v1962, %v2122
        %v2124 = vpop.f32.mrb[0].mxu0
        %2125 = vmatprep.mubr.bf16.mxu0 0
        %2126 = vmatmul.mubr.bf16.gmra.mrb[0].mxu0 %v777
        %v2127 = vpop.f32.mrb[0].mxu0
        %v2128 = vadd.f32 %v1967, %v2127
        %v2129 = vpop.f32.mrb[0].mxu0
        %v2130 = vpop.f32.mrb[0].mxu0
        %v2131 = vadd.f32 %v1970, %v2130
        %v2132 = vpop.f32.mrb[0].mxu0
        %2133 = vmatprep.mubr.bf16.mxu0 0
        %2134 = vmatmul.mubr.bf16.gmra.mrb[0].mxu0 %v780
        %v2135 = vpop.f32.mrb[0].mxu0
        %v2136 = vadd.f32 %v1975, %v2135
        %v2137 = vpop.f32.mrb[0].mxu0
        %v2138 = vpop.f32.mrb[0].mxu0
        %v2139 = vadd.f32 %v1978, %v2138
        %v2140 = vpop.f32.mrb[0].mxu0
        %2141 = vmatprep.mubr.bf16.mxu0 0
        %2142 = vmatmul.mubr.bf16.gmra.mrb[0].mxu0 %v783
        %v2143 = vpop.f32.mrb[0].mxu0
        %v2144 = vadd.f32 %v1983, %v2143
        %v2145 = vpop.f32.mrb[0].mxu0
        %v2146 = vpop.f32.mrb[0].mxu0
        %v2147 = vadd.f32 %v1986, %v2146
        %v2148 = vpop.f32.mrb[0].mxu0
        %2149 = vmatprep.mubr.bf16.mxu0 0
        %2150 = vmatmul.mubr.bf16.gmra.mrb[0].mxu0 %v786
        %v2151 = vpop.f32.mrb[0].mxu0
        %v2152 = vadd.f32 %v1991, %v2151
        %v2153 = vpop.f32.mrb[0].mxu0
        %v2154 = vpop.f32.mrb[0].mxu0
        %v2155 = vadd.f32 %v1994, %v2154
        %v2156 = vpop.f32.mrb[0].mxu0
        %2157 = vmatprep.mubr.bf16.mxu0 0
        %2158 = vmatmul.mubr.bf16.gmra.mrb[0].mxu0 %v789
        %v2159 = vpop.f32.mrb[0].mxu0
        %v2160 = vadd.f32 %v1999, %v2159
        %v2161 = vpop.f32.mrb[0].mxu0
        %v2162 = vpop.f32.mrb[0].mxu0
        %v2163 = vadd.f32 %v2002, %v2162
        %v2164 = vpop.f32.mrb[0].mxu0
        %2165 = vmatprep.mubr.bf16.mxu0 0
        %2166 = vmatmul.mubr.bf16.gmra.mrb[0].mxu0 %v792
        %v2167 = vpop.f32.mrb[0].mxu0
        %v2168 = vadd.f32 %v2007, %v2167
        %v2169 = vpop.f32.mrb[0].mxu0
        %v2170 = vpop.f32.mrb[0].mxu0
        %v2171 = vadd.f32 %v2010, %v2170
        %v2172 = vpop.f32.mrb[0].mxu0
        %2173 = vdwg.mxu0
        %v2174 = vld [vmem:[#allocation7] sm:$0x1]
        %v2176 = vlaneseq
        %v2177 = vshrl.u32 %v2176, 7
        %v2178 = vsub.s32 0, %v2177
        %v2179 = vrot.slane %v2174, %v2178
        %v2181 = vmul.f32 %v2048, %v2179
        %v2182 = vmul.f32 %v2051, %v2179
        %v2183 = vmul.f32 %v2056, %v2179
        %v2184 = vmul.f32 %v2059, %v2179
        %v2185 = vmul.f32 %v2064, %v2179
        %v2186 = vmul.f32 %v2067, %v2179
        %v2187 = vmul.f32 %v2072, %v2179
        %v2188 = vmul.f32 %v2075, %v2179
        %v2189 = vmul.f32 %v2080, %v2179
        %v2190 = vmul.f32 %v2083, %v2179
        %v2191 = vmul.f32 %v2088, %v2179
        %v2192 = vmul.f32 %v2091, %v2179
        %v2193 = vmul.f32 %v2096, %v2179
        %v2194 = vmul.f32 %v2099, %v2179
        %v2195 = vmul.f32 %v2104, %v2179
        %v2196 = vmul.f32 %v2107, %v2179
        %v2197 = vmul.f32 %v2112, %v2179
        %v2198 = vmul.f32 %v2115, %v2179
        %v2199 = vmul.f32 %v2120, %v2179
        %v2200 = vmul.f32 %v2123, %v2179
        %v2201 = vmul.f32 %v2128, %v2179
        %v2202 = vmul.f32 %v2131, %v2179
        %v2203 = vmul.f32 %v2136, %v2179
        %v2204 = vmul.f32 %v2139, %v2179
        %v2205 = vmul.f32 %v2144, %v2179
        %v2206 = vmul.f32 %v2147, %v2179
        %v2207 = vmul.f32 %v2152, %v2179
        %v2208 = vmul.f32 %v2155, %v2179
        %v2209 = vmul.f32 %v2160, %v2179
        %v2210 = vmul.f32 %v2163, %v2179
        %v2211 = vmul.f32 %v2168, %v2179
        %v2212 = vmul.f32 %v2171, %v2179
        %v2213 = vld [vmem:[#allocation8] sm:$0x1]
        %v2215 = vlaneseq
        %v2216 = vshrl.u32 %v2215, 7
        %v2217 = vsub.s32 0, %v2216
        %v2218 = vrot.slane %v2213, %v2217
        %v2220 = vadd.f32 %v2181, %v2218
        %v2221 = vadd.f32 %v2182, %v2218
        %v2222 = vadd.f32 %v2183, %v2218
        %v2223 = vadd.f32 %v2184, %v2218
        %v2224 = vadd.f32 %v2185, %v2218
        %v2225 = vadd.f32 %v2186, %v2218
        %v2226 = vadd.f32 %v2187, %v2218
        %v2227 = vadd.f32 %v2188, %v2218
        %v2228 = vadd.f32 %v2189, %v2218
        %v2229 = vadd.f32 %v2190, %v2218
        %v2230 = vadd.f32 %v2191, %v2218
        %v2231 = vadd.f32 %v2192, %v2218
        %v2232 = vadd.f32 %v2193, %v2218
        %v2233 = vadd.f32 %v2194, %v2218
        %v2234 = vadd.f32 %v2195, %v2218
        %v2235 = vadd.f32 %v2196, %v2218
        %v2236 = vadd.f32 %v2197, %v2218
        %v2237 = vadd.f32 %v2198, %v2218
        %v2238 = vadd.f32 %v2199, %v2218
        %v2239 = vadd.f32 %v2200, %v2218
        %v2240 = vadd.f32 %v2201, %v2218
        %v2241 = vadd.f32 %v2202, %v2218
        %v2242 = vadd.f32 %v2203, %v2218
        %v2243 = vadd.f32 %v2204, %v2218
        %v2244 = vadd.f32 %v2205, %v2218
        %v2245 = vadd.f32 %v2206, %v2218
        %v2246 = vadd.f32 %v2207, %v2218
        %v2247 = vadd.f32 %v2208, %v2218
        %v2248 = vadd.f32 %v2209, %v2218
        %v2249 = vadd.f32 %v2210, %v2218
        %v2250 = vadd.f32 %v2211, %v2218
        %v2251 = vadd.f32 %v2212, %v2218
        %v2252 = vmax.f32 %v2220, 0.0
        %v2253 = vmax.f32 %v2221, 0.0
        %v2254 = vmax.f32 %v2222, 0.0
        %v2255 = vmax.f32 %v2223, 0.0
        %v2256 = vmax.f32 %v2224, 0.0
        %v2257 = vmax.f32 %v2225, 0.0
        %v2258 = vmax.f32 %v2226, 0.0
        %v2259 = vmax.f32 %v2227, 0.0
        %v2260 = vmax.f32 %v2228, 0.0
        %v2261 = vmax.f32 %v2229, 0.0
        %v2262 = vmax.f32 %v2230, 0.0
        %v2263 = vmax.f32 %v2231, 0.0
        %v2264 = vmax.f32 %v2232, 0.0
        %v2265 = vmax.f32 %v2233, 0.0
        %v2266 = vmax.f32 %v2234, 0.0
        %v2267 = vmax.f32 %v2235, 0.0
        %v2268 = vmax.f32 %v2236, 0.0
        %v2269 = vmax.f32 %v2237, 0.0
        %v2270 = vmax.f32 %v2238, 0.0
        %v2271 = vmax.f32 %v2239, 0.0
        %v2272 = vmax.f32 %v2240, 0.0
        %v2273 = vmax.f32 %v2241, 0.0
        %v2274 = vmax.f32 %v2242, 0.0
        %v2275 = vmax.f32 %v2243, 0.0
        %v2276 = vmax.f32 %v2244, 0.0
        %v2277 = vmax.f32 %v2245, 0.0
        %v2278 = vmax.f32 %v2246, 0.0
        %v2279 = vmax.f32 %v2247, 0.0
        %v2280 = vmax.f32 %v2248, 0.0
        %v2281 = vmax.f32 %v2249, 0.0
        %v2282 = vmax.f32 %v2250, 0.0
        %v2283 = vmax.f32 %v2251, 0.0
        %vm2317 = vcmask 1040384
        %v2318 = vrot.slane 0.0, 7
        %v2319 = vsel %vm2317, %v2318, %v2318
        %v2320 = vrot.slane %v2252, 7
        %v2321 = vrot.slane %v2253, 7
        %v2322 = vsel %vm2317, %v2320, %v2321
        %v2323 = vrot.slane %v2254, 7
        %v2324 = vrot.slane %v2255, 7
        %v2325 = vsel %vm2317, %v2323, %v2324
        %v2326 = vrot.slane %v2256, 7
        %v2327 = vrot.slane %v2257, 7
        %v2328 = vsel %vm2317, %v2326, %v2327
        %v2329 = vrot.slane %v2258, 7
        %v2330 = vrot.slane %v2259, 7
        %v2331 = vsel %vm2317, %v2329, %v2330
        %v2332 = vrot.slane %v2260, 7
        %v2333 = vrot.slane %v2261, 7
        %v2334 = vsel %vm2317, %v2332, %v2333
        %v2335 = vrot.slane %v2262, 7
        %v2336 = vrot.slane %v2263, 7
        %v2337 = vsel %vm2317, %v2335, %v2336
        %v2338 = vrot.slane %v2264, 7
        %v2339 = vrot.slane %v2265, 7
        %v2340 = vsel %vm2317, %v2338, %v2339
        %v2341 = vrot.slane %v2266, 7
        %v2342 = vrot.slane %v2267, 7
        %v2343 = vsel %vm2317, %v2341, %v2342
        %v2344 = vrot.slane %v2268, 7
        %v2345 = vrot.slane %v2269, 7
        %v2346 = vsel %vm2317, %v2344, %v2345
        %v2347 = vrot.slane %v2270, 7
        %v2348 = vrot.slane %v2271, 7
        %v2349 = vsel %vm2317, %v2347, %v2348
        %v2350 = vrot.slane %v2272, 7
        %v2351 = vrot.slane %v2273, 7
        %v2352 = vsel %vm2317, %v2350, %v2351
        %v2353 = vrot.slane %v2274, 7
        %v2354 = vrot.slane %v2275, 7
        %v2355 = vsel %vm2317, %v2353, %v2354
        %v2356 = vrot.slane %v2276, 7
        %v2357 = vrot.slane %v2277, 7
        %v2358 = vsel %vm2317, %v2356, %v2357
        %v2359 = vrot.slane %v2278, 7
        %v2360 = vrot.slane %v2279, 7
        %v2361 = vsel %vm2317, %v2359, %v2360
        %v2362 = vrot.slane %v2280, 7
        %v2363 = vrot.slane %v2281, 7
        %v2364 = vsel %vm2317, %v2362, %v2363
        %v2365 = vrot.slane %v2282, 7
        %v2366 = vrot.slane %v2283, 7
        %v2367 = vsel %vm2317, %v2365, %v2366
        %v2418 = vsel %vm2317, 0.0, %v2318
        %v2419 = vsel %vm2317, 0.0, %v2320
        %v2420 = vsel %vm2317, 0.0, %v2323
        %v2421 = vsel %vm2317, 0.0, %v2326
        %v2422 = vsel %vm2317, 0.0, %v2329
        %v2423 = vsel %vm2317, 0.0, %v2332
        %v2424 = vsel %vm2317, 0.0, %v2335
        %v2425 = vsel %vm2317, 0.0, %v2338
        %v2426 = vsel %vm2317, 0.0, %v2341
        %v2427 = vsel %vm2317, 0.0, %v2344
        %v2428 = vsel %vm2317, 0.0, %v2347
        %v2429 = vsel %vm2317, 0.0, %v2350
        %v2430 = vsel %vm2317, 0.0, %v2353
        %v2431 = vsel %vm2317, 0.0, %v2356
        %v2432 = vsel %vm2317, 0.0, %v2359
        %v2433 = vsel %vm2317, 0.0, %v2362
        %v2434 = vsel %vm2317, 0.0, %v2365
        %v2435 = vsel %vm2317, %v2318, 0.0
        %v2436 = vsel %vm2317, %v2321, 0.0
        %v2437 = vsel %vm2317, %v2324, 0.0
        %v2438 = vsel %vm2317, %v2327, 0.0
        %v2439 = vsel %vm2317, %v2330, 0.0
        %v2440 = vsel %vm2317, %v2333, 0.0
        %v2441 = vsel %vm2317, %v2336, 0.0
        %v2442 = vsel %vm2317, %v2339, 0.0
        %v2443 = vsel %vm2317, %v2342, 0.0
        %v2444 = vsel %vm2317, %v2345, 0.0
        %v2445 = vsel %vm2317, %v2348, 0.0
        %v2446 = vsel %vm2317, %v2351, 0.0
        %v2447 = vsel %vm2317, %v2354, 0.0
        %v2448 = vsel %vm2317, %v2357, 0.0
        %v2449 = vsel %vm2317, %v2360, 0.0
        %v2450 = vsel %vm2317, %v2363, 0.0
        %v2451 = vsel %vm2317, %v2366, 0.0
        %v2484 = vrot.slane %v2418, 1
        %v2485 = vrot.slane %v2319, 1
        %v2486 = vsel %vm479, %v2484, %v2485
        %v2487 = vrot.slane %v2435, 1
        %v2488 = vsel %vm479, %v2485, %v2487
        %v2489 = vrot.slane %v2419, 1
        %v2490 = vrot.slane %v2322, 1
        %v2491 = vsel %vm479, %v2489, %v2490
        %v2492 = vrot.slane %v2436, 1
        %v2493 = vsel %vm479, %v2490, %v2492
        %v2494 = vrot.slane %v2420, 1
        %v2495 = vrot.slane %v2325, 1
        %v2496 = vsel %vm479, %v2494, %v2495
        %v2497 = vrot.slane %v2437, 1
        %v2498 = vsel %vm479, %v2495, %v2497
        %v2499 = vrot.slane %v2421, 1
        %v2500 = vrot.slane %v2328, 1
        %v2501 = vsel %vm479, %v2499, %v2500
        %v2502 = vrot.slane %v2438, 1
        %v2503 = vsel %vm479, %v2500, %v2502
        %v2504 = vrot.slane %v2422, 1
        %v2505 = vrot.slane %v2331, 1
        %v2506 = vsel %vm479, %v2504, %v2505
        %v2507 = vrot.slane %v2439, 1
        %v2508 = vsel %vm479, %v2505, %v2507
        %v2509 = vrot.slane %v2423, 1
        %v2510 = vrot.slane %v2334, 1
        %v2511 = vsel %vm479, %v2509, %v2510
        %v2512 = vrot.slane %v2440, 1
        %v2513 = vsel %vm479, %v2510, %v2512
        %v2514 = vrot.slane %v2424, 1
        %v2515 = vrot.slane %v2337, 1
        %v2516 = vsel %vm479, %v2514, %v2515
        %v2517 = vrot.slane %v2441, 1
        %v2518 = vsel %vm479, %v2515, %v2517
        %v2519 = vrot.slane %v2425, 1
        %v2520 = vrot.slane %v2340, 1
        %v2521 = vsel %vm479, %v2519, %v2520
        %v2522 = vrot.slane %v2442, 1
        %v2523 = vsel %vm479, %v2520, %v2522
        %v2524 = vrot.slane %v2426, 1
        %v2525 = vrot.slane %v2343, 1
        %v2526 = vsel %vm479, %v2524, %v2525
        %v2527 = vrot.slane %v2443, 1
        %v2528 = vsel %vm479, %v2525, %v2527
        %v2529 = vrot.slane %v2427, 1
        %v2530 = vrot.slane %v2346, 1
        %v2531 = vsel %vm479, %v2529, %v2530
        %v2532 = vrot.slane %v2444, 1
        %v2533 = vsel %vm479, %v2530, %v2532
        %v2534 = vrot.slane %v2428, 1
        %v2535 = vrot.slane %v2349, 1
        %v2536 = vsel %vm479, %v2534, %v2535
        %v2537 = vrot.slane %v2445, 1
        %v2538 = vsel %vm479, %v2535, %v2537
        %v2539 = vrot.slane %v2429, 1
        %v2540 = vrot.slane %v2352, 1
        %v2541 = vsel %vm479, %v2539, %v2540
        %v2542 = vrot.slane %v2446, 1
        %v2543 = vsel %vm479, %v2540, %v2542
        %v2544 = vrot.slane %v2430, 1
        %v2545 = vrot.slane %v2355, 1
        %v2546 = vsel %vm479, %v2544, %v2545
        %v2547 = vrot.slane %v2447, 1
        %v2548 = vsel %vm479, %v2545, %v2547
        %v2549 = vrot.slane %v2431, 1
        %v2550 = vrot.slane %v2358, 1
        %v2551 = vsel %vm479, %v2549, %v2550
        %v2552 = vrot.slane %v2448, 1
        %v2553 = vsel %vm479, %v2550, %v2552
        %v2554 = vrot.slane %v2432, 1
        %v2555 = vrot.slane %v2361, 1
        %v2556 = vsel %vm479, %v2554, %v2555
        %v2557 = vrot.slane %v2449, 1
        %v2558 = vsel %vm479, %v2555, %v2557
        %v2559 = vrot.slane %v2433, 1
        %v2560 = vrot.slane %v2364, 1
        %v2561 = vsel %vm479, %v2559, %v2560
        %v2562 = vrot.slane %v2450, 1
        %v2563 = vsel %vm479, %v2560, %v2562
        %v2596 = vrot.slane %v2418, 2
        %v2597 = vrot.slane %v2319, 2
        %v2598 = vsel %vm592, %v2596, %v2597
        %v2599 = vrot.slane %v2435, 2
        %v2600 = vsel %vm592, %v2597, %v2599
        %v2601 = vrot.slane %v2419, 2
        %v2602 = vrot.slane %v2322, 2
        %v2603 = vsel %vm592, %v2601, %v2602
        %v2604 = vrot.slane %v2436, 2
        %v2605 = vsel %vm592, %v2602, %v2604
        %v2606 = vrot.slane %v2420, 2
        %v2607 = vrot.slane %v2325, 2
        %v2608 = vsel %vm592, %v2606, %v2607
        %v2609 = vrot.slane %v2437, 2
        %v2610 = vsel %vm592, %v2607, %v2609
        %v2611 = vrot.slane %v2421, 2
        %v2612 = vrot.slane %v2328, 2
        %v2613 = vsel %vm592, %v2611, %v2612
        %v2614 = vrot.slane %v2438, 2
        %v2615 = vsel %vm592, %v2612, %v2614
        %v2616 = vrot.slane %v2422, 2
        %v2617 = vrot.slane %v2331, 2
        %v2618 = vsel %vm592, %v2616, %v2617
        %v2619 = vrot.slane %v2439, 2
        %v2620 = vsel %vm592, %v2617, %v2619
        %v2621 = vrot.slane %v2423, 2
        %v2622 = vrot.slane %v2334, 2
        %v2623 = vsel %vm592, %v2621, %v2622
        %v2624 = vrot.slane %v2440, 2
        %v2625 = vsel %vm592, %v2622, %v2624
        %v2626 = vrot.slane %v2424, 2
        %v2627 = vrot.slane %v2337, 2
        %v2628 = vsel %vm592, %v2626, %v2627
        %v2629 = vrot.slane %v2441, 2
        %v2630 = vsel %vm592, %v2627, %v2629
        %v2631 = vrot.slane %v2425, 2
        %v2632 = vrot.slane %v2340, 2
        %v2633 = vsel %vm592, %v2631, %v2632
        %v2634 = vrot.slane %v2442, 2
        %v2635 = vsel %vm592, %v2632, %v2634
        %v2636 = vrot.slane %v2426, 2
        %v2637 = vrot.slane %v2343, 2
        %v2638 = vsel %vm592, %v2636, %v2637
        %v2639 = vrot.slane %v2443, 2
        %v2640 = vsel %vm592, %v2637, %v2639
        %v2641 = vrot.slane %v2427, 2
        %v2642 = vrot.slane %v2346, 2
        %v2643 = vsel %vm592, %v2641, %v2642
        %v2644 = vrot.slane %v2444, 2
        %v2645 = vsel %vm592, %v2642, %v2644
        %v2646 = vrot.slane %v2428, 2
        %v2647 = vrot.slane %v2349, 2
        %v2648 = vsel %vm592, %v2646, %v2647
        %v2649 = vrot.slane %v2445, 2
        %v2650 = vsel %vm592, %v2647, %v2649
        %v2651 = vrot.slane %v2429, 2
        %v2652 = vrot.slane %v2352, 2
        %v2653 = vsel %vm592, %v2651, %v2652
        %v2654 = vrot.slane %v2446, 2
        %v2655 = vsel %vm592, %v2652, %v2654
        %v2656 = vrot.slane %v2430, 2
        %v2657 = vrot.slane %v2355, 2
        %v2658 = vsel %vm592, %v2656, %v2657
        %v2659 = vrot.slane %v2447, 2
        %v2660 = vsel %vm592, %v2657, %v2659
        %v2661 = vrot.slane %v2431, 2
        %v2662 = vrot.slane %v2358, 2
        %v2663 = vsel %vm592, %v2661, %v2662
        %v2664 = vrot.slane %v2448, 2
        %v2665 = vsel %vm592, %v2662, %v2664
        %v2666 = vrot.slane %v2432, 2
        %v2667 = vrot.slane %v2361, 2
        %v2668 = vsel %vm592, %v2666, %v2667
        %v2669 = vrot.slane %v2449, 2
        %v2670 = vsel %vm592, %v2667, %v2669
        %v2671 = vrot.slane %v2433, 2
        %v2672 = vrot.slane %v2364, 2
        %v2673 = vsel %vm592, %v2671, %v2672
        %v2674 = vrot.slane %v2450, 2
        %v2675 = vsel %vm592, %v2672, %v2674
        %v2710 = vrot.slane %v2434, 1
        %v2711 = vrot.slane %v2367, 1
        %v2712 = vsel %vm479, %v2710, %v2711
        %v2713 = vrot.slane %v2451, 1
        %v2714 = vsel %vm479, %v2711, %v2713
        %v2717 = vrot.slane %v2434, 2
        %v2718 = vrot.slane %v2367, 2
        %v2719 = vsel %vm592, %v2717, %v2718
        %v2720 = vrot.slane %v2451, 2
        %v2721 = vsel %vm592, %v2718, %v2720
        %v2724 = vpack.c.bf16 %v2319, %v2418
        %v2725 = vpack.c.bf16 %v2488, %v2486
        %v2726 = vpack.c.bf16 %v2600, %v2598
        %v2727 = vpack.c.bf16 %v2322, %v2419
        %v2728 = vpack.c.bf16 %v2493, %v2491
        %v2729 = vpack.c.bf16 %v2605, %v2603
        %v2730 = vpack.c.bf16 %v2325, %v2420
        %v2731 = vpack.c.bf16 %v2498, %v2496
        %v2732 = vpack.c.bf16 %v2610, %v2608
        %v2733 = vpack.c.bf16 %v2328, %v2421
        %v2734 = vpack.c.bf16 %v2503, %v2501
        %v2735 = vpack.c.bf16 %v2615, %v2613
        %v2736 = vpack.c.bf16 %v2331, %v2422
        %v2737 = vpack.c.bf16 %v2508, %v2506
        %v2738 = vpack.c.bf16 %v2620, %v2618
        %v2739 = vpack.c.bf16 %v2334, %v2423
        %v2740 = vpack.c.bf16 %v2513, %v2511
        %v2741 = vpack.c.bf16 %v2625, %v2623
        %v2742 = vpack.c.bf16 %v2337, %v2424
        %v2743 = vpack.c.bf16 %v2518, %v2516
        %v2744 = vpack.c.bf16 %v2630, %v2628
        %v2745 = vpack.c.bf16 %v2340, %v2425
        %v2746 = vpack.c.bf16 %v2523, %v2521
        %v2747 = vpack.c.bf16 %v2635, %v2633
        %v2748 = vpack.c.bf16 %v2343, %v2426
        %v2749 = vpack.c.bf16 %v2528, %v2526
        %v2750 = vpack.c.bf16 %v2640, %v2638
        %v2751 = vpack.c.bf16 %v2346, %v2427
        %v2752 = vpack.c.bf16 %v2533, %v2531
        %v2753 = vpack.c.bf16 %v2645, %v2643
        %v2754 = vpack.c.bf16 %v2349, %v2428
        %v2755 = vpack.c.bf16 %v2538, %v2536
        %v2756 = vpack.c.bf16 %v2650, %v2648
        %v2757 = vpack.c.bf16 %v2352, %v2429
        %v2758 = vpack.c.bf16 %v2543, %v2541
        %v2759 = vpack.c.bf16 %v2655, %v2653
        %v2760 = vpack.c.bf16 %v2355, %v2430
        %v2761 = vpack.c.bf16 %v2548, %v2546
        %v2762 = vpack.c.bf16 %v2660, %v2658
        %v2763 = vpack.c.bf16 %v2358, %v2431
        %v2764 = vpack.c.bf16 %v2553, %v2551
        %v2765 = vpack.c.bf16 %v2665, %v2663
        %v2766 = vpack.c.bf16 %v2361, %v2432
        %v2767 = vpack.c.bf16 %v2558, %v2556
        %v2768 = vpack.c.bf16 %v2670, %v2668
        %v2769 = vpack.c.bf16 %v2364, %v2433
        %v2770 = vpack.c.bf16 %v2563, %v2561
        %v2771 = vpack.c.bf16 %v2675, %v2673
        %v2772 = vpack.c.bf16 %v2367, %v2434
        %v2773 = vpack.c.bf16 %v2714, %v2712
        %v2774 = vpack.c.bf16 %v2721, %v2719
        %v2775 = vld [vmem:[#allocation10] sm:$0xf]
        %v2776 = vld [vmem:[#allocation10 + $0x4] sm:$0xf]
        %v2777 = vld [vmem:[#allocation10 + $0x8] sm:$0xf]
        %v2778 = vld [vmem:[#allocation10 + $0xc] sm:$0xf]
        %v2779 = vld [vmem:[#allocation10 + $0x10] sm:$0xf]
        %v2780 = vld [vmem:[#allocation10 + $0x14] sm:$0xf]
        %v2781 = vld [vmem:[#allocation10 + $0x18] sm:$0xf]
        %v2782 = vld [vmem:[#allocation10 + $0x1c] sm:$0xf]
        %v2783 = vld [vmem:[#allocation10 + $0x20] sm:$0xf]
        %v2784 = vld [vmem:[#allocation10 + $0x24] sm:$0xf]
        %v2785 = vld [vmem:[#allocation10 + $0x28] sm:$0xf]
        %v2786 = vld [vmem:[#allocation10 + $0x2c] sm:$0xf]
        %v2787 = vld [vmem:[#allocation10 + $0x30] sm:$0xf]
        %v2788 = vld [vmem:[#allocation10 + $0x34] sm:$0xf]
        %v2789 = vld [vmem:[#allocation10 + $0x38] sm:$0xf]
        %v2790 = vld [vmem:[#allocation10 + $0x3c] sm:$0xf]
        %v2791 = vld [vmem:[#allocation10 + $0x40] sm:$0xf]
        %v2792 = vld [vmem:[#allocation10 + $0x44] sm:$0xf]
        %v2793 = vld [vmem:[#allocation10 + $0x48] sm:$0xf]
        %v2794 = vld [vmem:[#allocation10 + $0x4c] sm:$0xf]
        %v2795 = vld [vmem:[#allocation10 + $0x50] sm:$0xf]
        %v2796 = vld [vmem:[#allocation10 + $0x54] sm:$0xf]
        %v2797 = vld [vmem:[#allocation10 + $0x58] sm:$0xf]
        %v2798 = vld [vmem:[#allocation10 + $0x5c] sm:$0xf]
        %v2799 = vld [vmem:[#allocation10 + $0x60] sm:$0xf]
        %v2800 = vld [vmem:[#allocation10 + $0x64] sm:$0xf]
        %v2801 = vld [vmem:[#allocation10 + $0x68] sm:$0xf]
        %v2802 = vld [vmem:[#allocation10 + $0x6c] sm:$0xf]
        %v2803 = vld [vmem:[#allocation10 + $0x70] sm:$0xf]
        %v2804 = vld [vmem:[#allocation10 + $0x74] sm:$0xf]
        %v2805 = vld [vmem:[#allocation10 + $0x78] sm:$0xf]
        %v2806 = vld [vmem:[#allocation10 + $0x7c] sm:$0xf]
        %v2807 = vld [vmem:[#allocation10 + $0x80] sm:$0xf]
        %v2808 = vld [vmem:[#allocation10 + $0x84] sm:$0xf]
        %v2809 = vld [vmem:[#allocation10 + $0x88] sm:$0xf]
        %v2810 = vld [vmem:[#allocation10 + $0x8c] sm:$0xf]
        %v2811 = vld [vmem:[#allocation10 + $0x90] sm:$0xf]
        %v2812 = vld [vmem:[#allocation10 + $0x94] sm:$0xf]
        %v2813 = vld [vmem:[#allocation10 + $0x98] sm:$0xf]
        %v2814 = vld [vmem:[#allocation10 + $0x9c] sm:$0xf]
        %v2815 = vld [vmem:[#allocation10 + $0xa0] sm:$0xf]
        %v2816 = vld [vmem:[#allocation10 + $0xa4] sm:$0xf]
        %v2817 = vld [vmem:[#allocation10 + $0xa8] sm:$0xf]
        %v2818 = vld [vmem:[#allocation10 + $0xac] sm:$0xf]
        %v2819 = vld [vmem:[#allocation10 + $0xb0] sm:$0xf]
        %v2820 = vld [vmem:[#allocation10 + $0xb4] sm:$0xf]
        %v2821 = vld [vmem:[#allocation10 + $0xb8] sm:$0xf]
        %v2822 = vld [vmem:[#allocation10 + $0xbc] sm:$0xf]
        %v2823 = vld [vmem:[#allocation10 + $0xc0] sm:$0xf]
        %v2824 = vld [vmem:[#allocation10 + $0xc4] sm:$0xf]
        %v2825 = vld [vmem:[#allocation10 + $0xc8] sm:$0xf]
        %v2826 = vld [vmem:[#allocation10 + $0xcc] sm:$0xf]
        %v2827 = vld [vmem:[#allocation10 + $0xd0] sm:$0xf]
        %v2828 = vld [vmem:[#allocation10 + $0xd4] sm:$0xf]
        %v2829 = vld [vmem:[#allocation10 + $0xd8] sm:$0xf]
        %v2830 = vld [vmem:[#allocation10 + $0xdc] sm:$0xf]
        %v2831 = vld [vmem:[#allocation10 + $0xe0] sm:$0xf]
        %v2832 = vld [vmem:[#allocation10 + $0xe4] sm:$0xf]
        %v2833 = vld [vmem:[#allocation10 + $0xe8] sm:$0xf]
        %v2834 = vld [vmem:[#allocation10 + $0xec] sm:$0xf]
        %v2835 = vld [vmem:[#allocation10 + $0xf0] sm:$0xf]
        %v2836 = vld [vmem:[#allocation10 + $0xf4] sm:$0xf]
        %v2837 = vld [vmem:[#allocation10 + $0xf8] sm:$0xf]
        %v2838 = vld [vmem:[#allocation10 + $0xfc] sm:$0xf]
        %v2839 = vld [vmem:[#allocation10 + $0x100] sm:$0xf]
        %v2840 = vld [vmem:[#allocation10 + $0x104] sm:$0xf]
        %v2841 = vld [vmem:[#allocation10 + $0x108] sm:$0xf]
        %v2842 = vld [vmem:[#allocation10 + $0x10c] sm:$0xf]
        %v2843 = vld [vmem:[#allocation10 + $0x110] sm:$0xf]
        %v2844 = vld [vmem:[#allocation10 + $0x114] sm:$0xf]
        %v2845 = vld [vmem:[#allocation10 + $0x118] sm:$0xf]
        %v2846 = vld [vmem:[#allocation10 + $0x11c] sm:$0xf]
        %v2847 = vld [vmem:[#allocation10 + $0x120] sm:$0xf]
        %v2848 = vld [vmem:[#allocation10 + $0x124] sm:$0xf]
        %v2849 = vld [vmem:[#allocation10 + $0x128] sm:$0xf]
        %v2850 = vld [vmem:[#allocation10 + $0x12c] sm:$0xf]
        %v2851 = vld [vmem:[#allocation10 + $0x130] sm:$0xf]
        %v2852 = vld [vmem:[#allocation10 + $0x134] sm:$0xf]
        %v2853 = vld [vmem:[#allocation10 + $0x138] sm:$0xf]
        %v2854 = vld [vmem:[#allocation10 + $0x13c] sm:$0xf]
        %v2855 = vld [vmem:[#allocation10 + $0x140] sm:$0xf]
        %v2856 = vld [vmem:[#allocation10 + $0x144] sm:$0xf]
        %v2857 = vld [vmem:[#allocation10 + $0x148] sm:$0xf]
        %v2858 = vld [vmem:[#allocation10 + $0x14c] sm:$0xf]
        %v2859 = vld [vmem:[#allocation10 + $0x150] sm:$0xf]
        %v2860 = vld [vmem:[#allocation10 + $0x154] sm:$0xf]
        %v2861 = vld [vmem:[#allocation10 + $0x158] sm:$0xf]
        %v2862 = vld [vmem:[#allocation10 + $0x15c] sm:$0xf]
        %v2863 = vld [vmem:[#allocation10 + $0x160] sm:$0xf]
        %v2864 = vld [vmem:[#allocation10 + $0x164] sm:$0xf]
        %v2865 = vld [vmem:[#allocation10 + $0x168] sm:$0xf]
        %v2866 = vld [vmem:[#allocation10 + $0x16c] sm:$0xf]
        %v2867 = vld [vmem:[#allocation10 + $0x170] sm:$0xf]
        %v2868 = vld [vmem:[#allocation10 + $0x174] sm:$0xf]
        %v2869 = vld [vmem:[#allocation10 + $0x178] sm:$0xf]
        %v2870 = vld [vmem:[#allocation10 + $0x17c] sm:$0xf]
        %v2871 = vld [vmem:[#allocation10 + $0x180] sm:$0xf]
        %v2872 = vld [vmem:[#allocation10 + $0x184] sm:$0xf]
        %v2873 = vld [vmem:[#allocation10 + $0x188] sm:$0xf]
        %v2874 = vld [vmem:[#allocation10 + $0x18c] sm:$0xf]
        %v2875 = vld [vmem:[#allocation10 + $0x190] sm:$0xf]
        %v2876 = vld [vmem:[#allocation10 + $0x194] sm:$0xf]
        %v2877 = vld [vmem:[#allocation10 + $0x198] sm:$0xf]
        %v2878 = vld [vmem:[#allocation10 + $0x19c] sm:$0xf]
        %v2879 = vld [vmem:[#allocation10 + $0x1a0] sm:$0xf]
        %v2880 = vld [vmem:[#allocation10 + $0x1a4] sm:$0xf]
        %v2881 = vld [vmem:[#allocation10 + $0x1a8] sm:$0xf]
        %v2882 = vld [vmem:[#allocation10 + $0x1ac] sm:$0xf]
        %v2883 = vld [vmem:[#allocation10 + $0x1b0] sm:$0xf]
        %v2884 = vld [vmem:[#allocation10 + $0x1b4] sm:$0xf]
        %v2885 = vld [vmem:[#allocation10 + $0x1b8] sm:$0xf]
        %v2886 = vld [vmem:[#allocation10 + $0x1bc] sm:$0xf]
        %v2887 = vld [vmem:[#allocation10 + $0x1c0] sm:$0xf]
        %v2888 = vld [vmem:[#allocation10 + $0x1c4] sm:$0xf]
        %v2889 = vld [vmem:[#allocation10 + $0x1c8] sm:$0xf]
        %v2890 = vld [vmem:[#allocation10 + $0x1cc] sm:$0xf]
        %v2891 = vld [vmem:[#allocation10 + $0x1d0] sm:$0xf]
        %v2892 = vld [vmem:[#allocation10 + $0x1d4] sm:$0xf]
        %v2893 = vld [vmem:[#allocation10 + $0x1d8] sm:$0xf]
        %v2894 = vld [vmem:[#allocation10 + $0x1dc] sm:$0xf]
        %v2895 = vld [vmem:[#allocation10 + $0x1e0] sm:$0xf]
        %v2896 = vld [vmem:[#allocation10 + $0x1e4] sm:$0xf]
        %v2897 = vld [vmem:[#allocation10 + $0x1e8] sm:$0xf]
        %v2898 = vld [vmem:[#allocation10 + $0x1ec] sm:$0xf]
        %v2899 = vld [vmem:[#allocation10 + $0x1f0] sm:$0xf]
        %v2900 = vld [vmem:[#allocation10 + $0x1f4] sm:$0xf]
        %v2901 = vld [vmem:[#allocation10 + $0x1f8] sm:$0xf]
        %v2902 = vld [vmem:[#allocation10 + $0x1fc] sm:$0xf]
        %v2903 = vld [vmem:[#allocation10 + $0x200] sm:$0xf]
        %v2904 = vld [vmem:[#allocation10 + $0x204] sm:$0xf]
        %v2905 = vld [vmem:[#allocation10 + $0x208] sm:$0xf]
        %v2906 = vld [vmem:[#allocation10 + $0x20c] sm:$0xf]
        %v2907 = vld [vmem:[#allocation10 + $0x210] sm:$0xf]
        %v2908 = vld [vmem:[#allocation10 + $0x214] sm:$0xf]
        %v2909 = vld [vmem:[#allocation10 + $0x218] sm:$0xf]
        %v2910 = vld [vmem:[#allocation10 + $0x21c] sm:$0xf]
        %v2911 = vld [vmem:[#allocation10 + $0x220] sm:$0xf]
        %v2912 = vld [vmem:[#allocation10 + $0x224] sm:$0xf]
        %v2913 = vld [vmem:[#allocation10 + $0x228] sm:$0xf]
        %v2914 = vld [vmem:[#allocation10 + $0x22c] sm:$0xf]
        %v2915 = vld [vmem:[#allocation10 + $0x230] sm:$0xf]
        %v2916 = vld [vmem:[#allocation10 + $0x234] sm:$0xf]
        %v2917 = vld [vmem:[#allocation10 + $0x238] sm:$0xf]
        %v2918 = vld [vmem:[#allocation10 + $0x23c] sm:$0xf]
        %v3063 = vunpack.c.l.b16 %v2775
        %v3064 = vunpack.c.l.b16 %v2776
        %v3065 = vunpack.c.l.b16 %v2777
        %v3066 = vunpack.c.l.b16 %v2778
        %v3067 = vunpack.c.l.b16 %v2779
        %v3068 = vunpack.c.l.b16 %v2780
        %v3069 = vunpack.c.l.b16 %v2781
        %v3070 = vunpack.c.l.b16 %v2782
        %v3071 = vunpack.c.l.b16 %v2783
        %v3072 = vunpack.c.l.b16 %v2784
        %v3073 = vunpack.c.l.b16 %v2785
        %v3074 = vunpack.c.l.b16 %v2786
        %v3075 = vunpack.c.l.b16 %v2787
        %v3076 = vunpack.c.l.b16 %v2788
        %v3077 = vunpack.c.l.b16 %v2789
        %v3078 = vunpack.c.l.b16 %v2790
        %v3079 = vunpack.c.l.b16 %v2791
        %v3080 = vunpack.c.l.b16 %v2792
        %v3081 = vunpack.c.l.b16 %v2793
        %v3082 = vunpack.c.l.b16 %v2794
        %v3083 = vunpack.c.l.b16 %v2795
        %v3084 = vunpack.c.l.b16 %v2796
        %v3085 = vunpack.c.l.b16 %v2797
        %v3086 = vunpack.c.l.b16 %v2798
        %v3087 = vunpack.c.l.b16 %v2799
        %v3088 = vunpack.c.l.b16 %v2800
        %v3089 = vunpack.c.l.b16 %v2801
        %v3090 = vunpack.c.l.b16 %v2802
        %v3091 = vunpack.c.l.b16 %v2803
        %v3092 = vunpack.c.l.b16 %v2804
        %v3093 = vunpack.c.l.b16 %v2805
        %v3094 = vunpack.c.l.b16 %v2806
        %v3095 = vunpack.c.l.b16 %v2807
        %v3096 = vunpack.c.l.b16 %v2808
        %v3097 = vunpack.c.l.b16 %v2809
        %v3098 = vunpack.c.l.b16 %v2810
        %v3099 = vunpack.c.l.b16 %v2811
        %v3100 = vunpack.c.l.b16 %v2812
        %v3101 = vunpack.c.l.b16 %v2813
        %v3102 = vunpack.c.l.b16 %v2814
        %v3103 = vunpack.c.l.b16 %v2815
        %v3104 = vunpack.c.l.b16 %v2816
        %v3105 = vunpack.c.l.b16 %v2817
        %v3106 = vunpack.c.l.b16 %v2818
        %v3107 = vunpack.c.l.b16 %v2819
        %v3108 = vunpack.c.l.b16 %v2820
        %v3109 = vunpack.c.l.b16 %v2821
        %v3110 = vunpack.c.l.b16 %v2822
        %v3111 = vunpack.c.l.b16 %v2823
        %v3112 = vunpack.c.l.b16 %v2824
        %v3113 = vunpack.c.l.b16 %v2825
        %v3114 = vunpack.c.l.b16 %v2826
        %v3115 = vunpack.c.l.b16 %v2827
        %v3116 = vunpack.c.l.b16 %v2828
        %v3117 = vunpack.c.l.b16 %v2829
        %v3118 = vunpack.c.l.b16 %v2830
        %v3119 = vunpack.c.l.b16 %v2831
        %v3120 = vunpack.c.l.b16 %v2832
        %v3121 = vunpack.c.l.b16 %v2833
        %v3122 = vunpack.c.l.b16 %v2834
        %v3123 = vunpack.c.l.b16 %v2835
        %v3124 = vunpack.c.l.b16 %v2836
        %v3125 = vunpack.c.l.b16 %v2837
        %v3126 = vunpack.c.l.b16 %v2838
        %v3127 = vunpack.c.l.b16 %v2839
        %v3128 = vunpack.c.l.b16 %v2840
        %v3129 = vunpack.c.l.b16 %v2841
        %v3130 = vunpack.c.l.b16 %v2842
        %v3131 = vunpack.c.l.b16 %v2843
        %v3132 = vunpack.c.l.b16 %v2844
        %v3133 = vunpack.c.l.b16 %v2845
        %v3134 = vunpack.c.l.b16 %v2846
        %v3135 = vunpack.c.l.b16 %v2847
        %v3136 = vunpack.c.l.b16 %v2848
        %v3137 = vunpack.c.l.b16 %v2849
        %v3138 = vunpack.c.l.b16 %v2850
        %v3139 = vunpack.c.l.b16 %v2851
        %v3140 = vunpack.c.l.b16 %v2852
        %v3141 = vunpack.c.l.b16 %v2853
        %v3142 = vunpack.c.l.b16 %v2854
        %v3143 = vunpack.c.l.b16 %v2855
        %v3144 = vunpack.c.l.b16 %v2856
        %v3145 = vunpack.c.l.b16 %v2857
        %v3146 = vunpack.c.l.b16 %v2858
        %v3147 = vunpack.c.l.b16 %v2859
        %v3148 = vunpack.c.l.b16 %v2860
        %v3149 = vunpack.c.l.b16 %v2861
        %v3150 = vunpack.c.l.b16 %v2862
        %v3151 = vunpack.c.l.b16 %v2863
        %v3152 = vunpack.c.l.b16 %v2864
        %v3153 = vunpack.c.l.b16 %v2865
        %v3154 = vunpack.c.l.b16 %v2866
        %v3155 = vunpack.c.l.b16 %v2867
        %v3156 = vunpack.c.l.b16 %v2868
        %v3157 = vunpack.c.l.b16 %v2869
        %v3158 = vunpack.c.l.b16 %v2870
        %v3159 = vunpack.c.l.b16 %v2871
        %v3160 = vunpack.c.l.b16 %v2872
        %v3161 = vunpack.c.l.b16 %v2873
        %v3162 = vunpack.c.l.b16 %v2874
        %v3163 = vunpack.c.l.b16 %v2875
        %v3164 = vunpack.c.l.b16 %v2876
        %v3165 = vunpack.c.l.b16 %v2877
        %v3166 = vunpack.c.l.b16 %v2878
        %v3167 = vunpack.c.l.b16 %v2879
        %v3168 = vunpack.c.l.b16 %v2880
        %v3169 = vunpack.c.l.b16 %v2881
        %v3170 = vunpack.c.l.b16 %v2882
        %v3171 = vunpack.c.l.b16 %v2883
        %v3172 = vunpack.c.l.b16 %v2884
        %v3173 = vunpack.c.l.b16 %v2885
        %v3174 = vunpack.c.l.b16 %v2886
        %v3175 = vunpack.c.l.b16 %v2887
        %v3176 = vunpack.c.l.b16 %v2888
        %v3177 = vunpack.c.l.b16 %v2889
        %v3178 = vunpack.c.l.b16 %v2890
        %v3179 = vunpack.c.l.b16 %v2891
        %v3180 = vunpack.c.l.b16 %v2892
        %v3181 = vunpack.c.l.b16 %v2893
        %v3182 = vunpack.c.l.b16 %v2894
        %v3183 = vunpack.c.l.b16 %v2895
        %v3184 = vunpack.c.l.b16 %v2896
        %v3185 = vunpack.c.l.b16 %v2897
        %v3186 = vunpack.c.l.b16 %v2898
        %v3187 = vunpack.c.l.b16 %v2899
        %v3188 = vunpack.c.l.b16 %v2900
        %v3189 = vunpack.c.l.b16 %v2901
        %v3190 = vunpack.c.l.b16 %v2902
        %v3191 = vunpack.c.l.b16 %v2903
        %v3192 = vunpack.c.l.b16 %v2904
        %v3193 = vunpack.c.l.b16 %v2905
        %v3194 = vunpack.c.l.b16 %v2906
        %v3195 = vunpack.c.l.b16 %v2907
        %v3196 = vunpack.c.l.b16 %v2908
        %v3197 = vunpack.c.l.b16 %v2909
        %v3198 = vunpack.c.l.b16 %v2910
        %v3199 = vunpack.c.l.b16 %v2911
        %v3200 = vunpack.c.l.b16 %v2912
        %v3201 = vunpack.c.l.b16 %v2913
        %v3202 = vunpack.c.l.b16 %v2914
        %v3203 = vunpack.c.l.b16 %v2915
        %v3204 = vunpack.c.l.b16 %v2916
        %v3205 = vunpack.c.l.b16 %v2917
        %v3206 = vunpack.c.l.b16 %v2918
        %v3207 = vpack.c.b16 %v3064, %v3063
        %v3208 = vpack.c.b16 %v3066, %v3065
        %v3209 = vpack.c.b16 %v3068, %v3067
        %v3210 = vpack.c.b16 %v3070, %v3069
        %v3211 = vpack.c.b16 %v3072, %v3071
        %v3212 = vpack.c.b16 %v3074, %v3073
        %v3213 = vpack.c.b16 %v3076, %v3075
        %v3214 = vpack.c.b16 %v3078, %v3077
        %v3215 = vpack.c.b16 %v3080, %v3079
        %v3216 = vpack.c.b16 %v3082, %v3081
        %v3217 = vpack.c.b16 %v3084, %v3083
        %v3218 = vpack.c.b16 %v3086, %v3085
        %v3219 = vpack.c.b16 %v3088, %v3087
        %v3220 = vpack.c.b16 %v3090, %v3089
        %v3221 = vpack.c.b16 %v3092, %v3091
        %v3222 = vpack.c.b16 %v3094, %v3093
        %v3223 = vpack.c.b16 %v3096, %v3095
        %v3224 = vpack.c.b16 %v3098, %v3097
        %v3225 = vpack.c.b16 %v3100, %v3099
        %v3226 = vpack.c.b16 %v3102, %v3101
        %v3227 = vpack.c.b16 %v3104, %v3103
        %v3228 = vpack.c.b16 %v3106, %v3105
        %v3229 = vpack.c.b16 %v3108, %v3107
        %v3230 = vpack.c.b16 %v3110, %v3109
        %v3231 = vpack.c.b16 %v3112, %v3111
        %v3232 = vpack.c.b16 %v3114, %v3113
        %v3233 = vpack.c.b16 %v3116, %v3115
        %v3234 = vpack.c.b16 %v3118, %v3117
        %v3235 = vpack.c.b16 %v3120, %v3119
        %v3236 = vpack.c.b16 %v3122, %v3121
        %v3237 = vpack.c.b16 %v3124, %v3123
        %v3238 = vpack.c.b16 %v3126, %v3125
        %v3239 = vpack.c.b16 %v3128, %v3127
        %v3240 = vpack.c.b16 %v3130, %v3129
        %v3241 = vpack.c.b16 %v3132, %v3131
        %v3242 = vpack.c.b16 %v3134, %v3133
        %v3243 = vpack.c.b16 %v3136, %v3135
        %v3244 = vpack.c.b16 %v3138, %v3137
        %v3245 = vpack.c.b16 %v3140, %v3139
        %v3246 = vpack.c.b16 %v3142, %v3141
        %v3247 = vpack.c.b16 %v3144, %v3143
        %v3248 = vpack.c.b16 %v3146, %v3145
        %v3249 = vpack.c.b16 %v3148, %v3147
        %v3250 = vpack.c.b16 %v3150, %v3149
        %v3251 = vpack.c.b16 %v3152, %v3151
        %v3252 = vpack.c.b16 %v3154, %v3153
        %v3253 = vpack.c.b16 %v3156, %v3155
        %v3254 = vpack.c.b16 %v3158, %v3157
        %v3255 = vpack.c.b16 %v3160, %v3159
        %v3256 = vpack.c.b16 %v3162, %v3161
        %v3257 = vpack.c.b16 %v3164, %v3163
        %v3258 = vpack.c.b16 %v3166, %v3165
        %v3259 = vpack.c.b16 %v3168, %v3167
        %v3260 = vpack.c.b16 %v3170, %v3169
        %v3261 = vpack.c.b16 %v3172, %v3171
        %v3262 = vpack.c.b16 %v3174, %v3173
        %v3263 = vpack.c.b16 %v3176, %v3175
        %v3264 = vpack.c.b16 %v3178, %v3177
        %v3265 = vpack.c.b16 %v3180, %v3179
        %v3266 = vpack.c.b16 %v3182, %v3181
        %v3267 = vpack.c.b16 %v3184, %v3183
        %v3268 = vpack.c.b16 %v3186, %v3185
        %v3269 = vpack.c.b16 %v3188, %v3187
        %v3270 = vpack.c.b16 %v3190, %v3189
        %v3271 = vpack.c.b16 %v3192, %v3191
        %v3272 = vpack.c.b16 %v3194, %v3193
        %v3273 = vpack.c.b16 %v3196, %v3195
        %v3274 = vpack.c.b16 %v3198, %v3197
        %v3275 = vpack.c.b16 %v3200, %v3199
        %v3276 = vpack.c.b16 %v3202, %v3201
        %v3277 = vpack.c.b16 %v3204, %v3203
        %v3278 = vpack.c.b16 %v3206, %v3205
        %3351 = vmatprep.subr.bf16.mxu0 0
        %3352 = vmatpush1.bf16.msra.mxu0 %v3207
        %3353 = vmatprep.subr.bf16.mxu0 0
        %3354 = vmatpush1.bf16.msra.mxu0 %v3208
        %3355 = vmatprep.subr.bf16.mxu0 0
        %3356 = vmatpush1.bf16.msra.mxu0 %v3209
        %3357 = vmatprep.subr.bf16.mxu0 0
        %3358 = vmatpush1.bf16.msra.mxu0 %v3210
        %3359 = vmatprep.subr.bf16.mxu0 0
        %3360 = vmatpush1.bf16.msra.mxu0 %v3211
        %3361 = vmatprep.subr.bf16.mxu0 0
        %3362 = vmatpush1.bf16.msra.mxu0 %v3212
        %3363 = vmatprep.subr.bf16.mxu0 0
        %3364 = vmatpush1.bf16.msra.mxu0 %v3213
        %3365 = vmatprep.subr.bf16.mxu0 0
        %3366 = vmatpush1.bf16.msra.mxu0 %v3214
        %3367 = vmatprep.subr.bf16.mxu0 0
        %3368 = vmatpush1.bf16.msra.mxu0 %v3215
        %3369 = vmatprep.subr.bf16.mxu0 0
        %3370 = vmatpush1.bf16.msra.mxu0 %v3216
        %3371 = vmatprep.subr.bf16.mxu0 0
        %3372 = vmatpush1.bf16.msra.mxu0 %v3217
        %3373 = vmatprep.subr.bf16.mxu0 0
        %3374 = vmatpush1.bf16.msra.mxu0 %v3218
        %3375 = vmatprep.subr.bf16.mxu0 0
        %3376 = vmatpush1.bf16.msra.mxu0 %v3219
        %3377 = vmatprep.subr.bf16.mxu0 0
        %3378 = vmatpush1.bf16.msra.mxu0 %v3220
        %3379 = vmatprep.subr.bf16.mxu0 0
        %3380 = vmatpush1.bf16.msra.mxu0 %v3221
        %3381 = vmatprep.subr.bf16.mxu0 0
        %3382 = vmatpush1.bf16.msra.mxu0 %v3222
        %3383 = vmatprep.mubr.bf16.mxu0 %v2725
        %3384 = vmatmul.mubr.bf16.gmra.mrb[0].mxu0 %v2724
        %v3385 = vpop.f32.mrb[0].mxu0
        %v3386 = vadd.f32 0.0, %v3385
        %v3387 = vpop.f32.mrb[0].mxu0
        %v3388 = vpop.f32.mrb[0].mxu0
        %v3389 = vadd.f32 0.0, %v3388
        %v3390 = vpop.f32.mrb[0].mxu0
        %3391 = vmatprep.mubr.bf16.mxu0 %v2728
        %3392 = vmatmul.mubr.bf16.gmra.mrb[0].mxu0 %v2727
        %v3393 = vpop.f32.mrb[0].mxu0
        %v3394 = vadd.f32 0.0, %v3393
        %v3395 = vpop.f32.mrb[0].mxu0
        %v3396 = vpop.f32.mrb[0].mxu0
        %v3397 = vadd.f32 0.0, %v3396
        %v3398 = vpop.f32.mrb[0].mxu0
        %3399 = vmatprep.mubr.bf16.mxu0 %v2731
        %3400 = vmatmul.mubr.bf16.gmra.mrb[0].mxu0 %v2730
        %v3401 = vpop.f32.mrb[0].mxu0
        %v3402 = vadd.f32 0.0, %v3401
        %v3403 = vpop.f32.mrb[0].mxu0
        %v3404 = vpop.f32.mrb[0].mxu0
        %v3405 = vadd.f32 0.0, %v3404
        %v3406 = vpop.f32.mrb[0].mxu0
        %3407 = vmatprep.mubr.bf16.mxu0 %v2734
        %3408 = vmatmul.mubr.bf16.gmra.mrb[0].mxu0 %v2733
        %v3409 = vpop.f32.mrb[0].mxu0
        %v3410 = vadd.f32 0.0, %v3409
        %v3411 = vpop.f32.mrb[0].mxu0
        %v3412 = vpop.f32.mrb[0].mxu0
        %v3413 = vadd.f32 0.0, %v3412
        %v3414 = vpop.f32.mrb[0].mxu0
        %3415 = vmatprep.mubr.bf16.mxu0 %v2737
        %3416 = vmatmul.mubr.bf16.gmra.mrb[0].mxu0 %v2736
        %v3417 = vpop.f32.mrb[0].mxu0
        %v3418 = vadd.f32 0.0, %v3417
        %v3419 = vpop.f32.mrb[0].mxu0
        %v3420 = vpop.f32.mrb[0].mxu0
        %v3421 = vadd.f32 0.0, %v3420
        %v3422 = vpop.f32.mrb[0].mxu0
        %3423 = vmatprep.mubr.bf16.mxu0 %v2740
        %3424 = vmatmul.mubr.bf16.gmra.mrb[0].mxu0 %v2739
        %v3425 = vpop.f32.mrb[0].mxu0
        %v3426 = vadd.f32 0.0, %v3425
        %v3427 = vpop.f32.mrb[0].mxu0
        %v3428 = vpop.f32.mrb[0].mxu0
        %v3429 = vadd.f32 0.0, %v3428
        %v3430 = vpop.f32.mrb[0].mxu0
        %3431 = vmatprep.mubr.bf16.mxu0 %v2743
        %3432 = vmatmul.mubr.bf16.gmra.mrb[0].mxu0 %v2742
        %v3433 = vpop.f32.mrb[0].mxu0
        %v3434 = vadd.f32 0.0, %v3433
        %v3435 = vpop.f32.mrb[0].mxu0
        %v3436 = vpop.f32.mrb[0].mxu0
        %v3437 = vadd.f32 0.0, %v3436
        %v3438 = vpop.f32.mrb[0].mxu0
        %3439 = vmatprep.mubr.bf16.mxu0 %v2746
        %3440 = vmatmul.mubr.bf16.gmra.mrb[0].mxu0 %v2745
        %v3441 = vpop.f32.mrb[0].mxu0
        %v3442 = vadd.f32 0.0, %v3441
        %v3443 = vpop.f32.mrb[0].mxu0
        %v3444 = vpop.f32.mrb[0].mxu0
        %v3445 = vadd.f32 0.0, %v3444
        %v3446 = vpop.f32.mrb[0].mxu0
        %3447 = vmatprep.mubr.bf16.mxu0 %v2749
        %3448 = vmatmul.mubr.bf16.gmra.mrb[0].mxu0 %v2748
        %v3449 = vpop.f32.mrb[0].mxu0
        %v3450 = vadd.f32 0.0, %v3449
        %v3451 = vpop.f32.mrb[0].mxu0
        %v3452 = vpop.f32.mrb[0].mxu0
        %v3453 = vadd.f32 0.0, %v3452
        %v3454 = vpop.f32.mrb[0].mxu0
        %3455 = vmatprep.mubr.bf16.mxu0 %v2752
        %3456 = vmatmul.mubr.bf16.gmra.mrb[0].mxu0 %v2751
        %v3457 = vpop.f32.mrb[0].mxu0
        %v3458 = vadd.f32 0.0, %v3457
        %v3459 = vpop.f32.mrb[0].mxu0
        %v3460 = vpop.f32.mrb[0].mxu0
        %v3461 = vadd.f32 0.0, %v3460
        %v3462 = vpop.f32.mrb[0].mxu0
        %3463 = vmatprep.mubr.bf16.mxu0 %v2755
        %3464 = vmatmul.mubr.bf16.gmra.mrb[0].mxu0 %v2754
        %v3465 = vpop.f32.mrb[0].mxu0
        %v3466 = vadd.f32 0.0, %v3465
        %v3467 = vpop.f32.mrb[0].mxu0
        %v3468 = vpop.f32.mrb[0].mxu0
        %v3469 = vadd.f32 0.0, %v3468
        %v3470 = vpop.f32.mrb[0].mxu0
        %3471 = vmatprep.mubr.bf16.mxu0 %v2758
        %3472 = vmatmul.mubr.bf16.gmra.mrb[0].mxu0 %v2757
        %v3473 = vpop.f32.mrb[0].mxu0
        %v3474 = vadd.f32 0.0, %v3473
        %v3475 = vpop.f32.mrb[0].mxu0
        %v3476 = vpop.f32.mrb[0].mxu0
        %v3477 = vadd.f32 0.0, %v3476
        %v3478 = vpop.f32.mrb[0].mxu0
        %3479 = vmatprep.mubr.bf16.mxu0 %v2761
        %3480 = vmatmul.mubr.bf16.gmra.mrb[0].mxu0 %v2760
        %v3481 = vpop.f32.mrb[0].mxu0
        %v3482 = vadd.f32 0.0, %v3481
        %v3483 = vpop.f32.mrb[0].mxu0
        %v3484 = vpop.f32.mrb[0].mxu0
        %v3485 = vadd.f32 0.0, %v3484
        %v3486 = vpop.f32.mrb[0].mxu0
        %3487 = vmatprep.mubr.bf16.mxu0 %v2764
        %3488 = vmatmul.mubr.bf16.gmra.mrb[0].mxu0 %v2763
        %v3489 = vpop.f32.mrb[0].mxu0
        %v3490 = vadd.f32 0.0, %v3489
        %v3491 = vpop.f32.mrb[0].mxu0
        %v3492 = vpop.f32.mrb[0].mxu0
        %v3493 = vadd.f32 0.0, %v3492
        %v3494 = vpop.f32.mrb[0].mxu0
        %3495 = vmatprep.mubr.bf16.mxu0 %v2767
        %3496 = vmatmul.mubr.bf16.gmra.mrb[0].mxu0 %v2766
        %v3497 = vpop.f32.mrb[0].mxu0
        %v3498 = vadd.f32 0.0, %v3497
        %v3499 = vpop.f32.mrb[0].mxu0
        %v3500 = vpop.f32.mrb[0].mxu0
        %v3501 = vadd.f32 0.0, %v3500
        %v3502 = vpop.f32.mrb[0].mxu0
        %3503 = vmatprep.mubr.bf16.mxu0 %v2770
        %3504 = vmatmul.mubr.bf16.gmra.mrb[0].mxu0 %v2769
        %v3505 = vpop.f32.mrb[0].mxu0
        %v3506 = vadd.f32 0.0, %v3505
        %v3507 = vpop.f32.mrb[0].mxu0
        %v3508 = vpop.f32.mrb[0].mxu0
        %v3509 = vadd.f32 0.0, %v3508
        %v3510 = vpop.f32.mrb[0].mxu0
        %3511 = vdwg.mxu0
        %3512 = vmatprep.subr.bf16.mxu0 0
        %3513 = vmatpush1.bf16.msra.mxu0 %v3223
        %3514 = vmatprep.subr.bf16.mxu0 0
        %3515 = vmatpush1.bf16.msra.mxu0 %v3224
        %3516 = vmatprep.subr.bf16.mxu0 0
        %3517 = vmatpush1.bf16.msra.mxu0 %v3225
        %3518 = vmatprep.subr.bf16.mxu0 0
        %3519 = vmatpush1.bf16.msra.mxu0 %v3226
        %3520 = vmatprep.subr.bf16.mxu0 0
        %3521 = vmatpush1.bf16.msra.mxu0 %v3227
        %3522 = vmatprep.subr.bf16.mxu0 0
        %3523 = vmatpush1.bf16.msra.mxu0 %v3228
        %3524 = vmatprep.subr.bf16.mxu0 0
        %3525 = vmatpush1.bf16.msra.mxu0 %v3229
        %3526 = vmatprep.subr.bf16.mxu0 0
        %3527 = vmatpush1.bf16.msra.mxu0 %v3230
        %3528 = vmatprep.subr.bf16.mxu0 0
        %3529 = vmatpush1.bf16.msra.mxu0 %v3231
        %3530 = vmatprep.subr.bf16.mxu0 0
        %3531 = vmatpush1.bf16.msra.mxu0 %v3232
        %3532 = vmatprep.subr.bf16.mxu0 0
        %3533 = vmatpush1.bf16.msra.mxu0 %v3233
        %3534 = vmatprep.subr.bf16.mxu0 0
        %3535 = vmatpush1.bf16.msra.mxu0 %v3234
        %3536 = vmatprep.subr.bf16.mxu0 0
        %3537 = vmatpush1.bf16.msra.mxu0 %v3235
        %3538 = vmatprep.subr.bf16.mxu0 0
        %3539 = vmatpush1.bf16.msra.mxu0 %v3236
        %3540 = vmatprep.subr.bf16.mxu0 0
        %3541 = vmatpush1.bf16.msra.mxu0 %v3237
        %3542 = vmatprep.subr.bf16.mxu0 0
        %3543 = vmatpush1.bf16.msra.mxu0 %v3238
        %3544 = vmatprep.mubr.bf16.mxu0 %v2727
        %3545 = vmatmul.mubr.bf16.gmra.mrb[0].mxu0 %v2726
        %v3546 = vpop.f32.mrb[0].mxu0
        %v3547 = vadd.f32 %v3386, %v3546
        %v3548 = vpop.f32.mrb[0].mxu0
        %v3549 = vpop.f32.mrb[0].mxu0
        %v3550 = vadd.f32 %v3389, %v3549
        %v3551 = vpop.f32.mrb[0].mxu0
        %3552 = vmatprep.mubr.bf16.mxu0 %v2730
        %3553 = vmatmul.mubr.bf16.gmra.mrb[0].mxu0 %v2729
        %v3554 = vpop.f32.mrb[0].mxu0
        %v3555 = vadd.f32 %v3394, %v3554
        %v3556 = vpop.f32.mrb[0].mxu0
        %v3557 = vpop.f32.mrb[0].mxu0
        %v3558 = vadd.f32 %v3397, %v3557
        %v3559 = vpop.f32.mrb[0].mxu0
        %3560 = vmatprep.mubr.bf16.mxu0 %v2733
        %3561 = vmatmul.mubr.bf16.gmra.mrb[0].mxu0 %v2732
        %v3562 = vpop.f32.mrb[0].mxu0
        %v3563 = vadd.f32 %v3402, %v3562
        %v3564 = vpop.f32.mrb[0].mxu0
        %v3565 = vpop.f32.mrb[0].mxu0
        %v3566 = vadd.f32 %v3405, %v3565
        %v3567 = vpop.f32.mrb[0].mxu0
        %3568 = vmatprep.mubr.bf16.mxu0 %v2736
        %3569 = vmatmul.mubr.bf16.gmra.mrb[0].mxu0 %v2735
        %v3570 = vpop.f32.mrb[0].mxu0
        %v3571 = vadd.f32 %v3410, %v3570
        %v3572 = vpop.f32.mrb[0].mxu0
        %v3573 = vpop.f32.mrb[0].mxu0
        %v3574 = vadd.f32 %v3413, %v3573
        %v3575 = vpop.f32.mrb[0].mxu0
        %3576 = vmatprep.mubr.bf16.mxu0 %v2739
        %3577 = vmatmul.mubr.bf16.gmra.mrb[0].mxu0 %v2738
        %v3578 = vpop.f32.mrb[0].mxu0
        %v3579 = vadd.f32 %v3418, %v3578
        %v3580 = vpop.f32.mrb[0].mxu0
        %v3581 = vpop.f32.mrb[0].mxu0
        %v3582 = vadd.f32 %v3421, %v3581
        %v3583 = vpop.f32.mrb[0].mxu0
        %3584 = vmatprep.mubr.bf16.mxu0 %v2742
        %3585 = vmatmul.mubr.bf16.gmra.mrb[0].mxu0 %v2741
        %v3586 = vpop.f32.mrb[0].mxu0
        %v3587 = vadd.f32 %v3426, %v3586
        %v3588 = vpop.f32.mrb[0].mxu0
        %v3589 = vpop.f32.mrb[0].mxu0
        %v3590 = vadd.f32 %v3429, %v3589
        %v3591 = vpop.f32.mrb[0].mxu0
        %3592 = vmatprep.mubr.bf16.mxu0 %v2745
        %3593 = vmatmul.mubr.bf16.gmra.mrb[0].mxu0 %v2744
        %v3594 = vpop.f32.mrb[0].mxu0
        %v3595 = vadd.f32 %v3434, %v3594
        %v3596 = vpop.f32.mrb[0].mxu0
        %v3597 = vpop.f32.mrb[0].mxu0
        %v3598 = vadd.f32 %v3437, %v3597
        %v3599 = vpop.f32.mrb[0].mxu0
        %3600 = vmatprep.mubr.bf16.mxu0 %v2748
        %3601 = vmatmul.mubr.bf16.gmra.mrb[0].mxu0 %v2747
        %v3602 = vpop.f32.mrb[0].mxu0
        %v3603 = vadd.f32 %v3442, %v3602
        %v3604 = vpop.f32.mrb[0].mxu0
        %v3605 = vpop.f32.mrb[0].mxu0
        %v3606 = vadd.f32 %v3445, %v3605
        %v3607 = vpop.f32.mrb[0].mxu0
        %3608 = vmatprep.mubr.bf16.mxu0 %v2751
        %3609 = vmatmul.mubr.bf16.gmra.mrb[0].mxu0 %v2750
        %v3610 = vpop.f32.mrb[0].mxu0
        %v3611 = vadd.f32 %v3450, %v3610
        %v3612 = vpop.f32.mrb[0].mxu0
        %v3613 = vpop.f32.mrb[0].mxu0
        %v3614 = vadd.f32 %v3453, %v3613
        %v3615 = vpop.f32.mrb[0].mxu0
        %3616 = vmatprep.mubr.bf16.mxu0 %v2754
        %3617 = vmatmul.mubr.bf16.gmra.mrb[0].mxu0 %v2753
        %v3618 = vpop.f32.mrb[0].mxu0
        %v3619 = vadd.f32 %v3458, %v3618
        %v3620 = vpop.f32.mrb[0].mxu0
        %v3621 = vpop.f32.mrb[0].mxu0
        %v3622 = vadd.f32 %v3461, %v3621
        %v3623 = vpop.f32.mrb[0].mxu0
        %3624 = vmatprep.mubr.bf16.mxu0 %v2757
        %3625 = vmatmul.mubr.bf16.gmra.mrb[0].mxu0 %v2756
        %v3626 = vpop.f32.mrb[0].mxu0
        %v3627 = vadd.f32 %v3466, %v3626
        %v3628 = vpop.f32.mrb[0].mxu0
        %v3629 = vpop.f32.mrb[0].mxu0
        %v3630 = vadd.f32 %v3469, %v3629
        %v3631 = vpop.f32.mrb[0].mxu0
        %3632 = vmatprep.mubr.bf16.mxu0 %v2760
        %3633 = vmatmul.mubr.bf16.gmra.mrb[0].mxu0 %v2759
        %v3634 = vpop.f32.mrb[0].mxu0
        %v3635 = vadd.f32 %v3474, %v3634
        %v3636 = vpop.f32.mrb[0].mxu0
        %v3637 = vpop.f32.mrb[0].mxu0
        %v3638 = vadd.f32 %v3477, %v3637
        %v3639 = vpop.f32.mrb[0].mxu0
        %3640 = vmatprep.mubr.bf16.mxu0 %v2763
        %3641 = vmatmul.mubr.bf16.gmra.mrb[0].mxu0 %v2762
        %v3642 = vpop.f32.mrb[0].mxu0
        %v3643 = vadd.f32 %v3482, %v3642
        %v3644 = vpop.f32.mrb[0].mxu0
        %v3645 = vpop.f32.mrb[0].mxu0
        %v3646 = vadd.f32 %v3485, %v3645
        %v3647 = vpop.f32.mrb[0].mxu0
        %3648 = vmatprep.mubr.bf16.mxu0 %v2766
        %3649 = vmatmul.mubr.bf16.gmra.mrb[0].mxu0 %v2765
        %v3650 = vpop.f32.mrb[0].mxu0
        %v3651 = vadd.f32 %v3490, %v3650
        %v3652 = vpop.f32.mrb[0].mxu0
        %v3653 = vpop.f32.mrb[0].mxu0
        %v3654 = vadd.f32 %v3493, %v3653
        %v3655 = vpop.f32.mrb[0].mxu0
        %3656 = vmatprep.mubr.bf16.mxu0 %v2769
        %3657 = vmatmul.mubr.bf16.gmra.mrb[0].mxu0 %v2768
        %v3658 = vpop.f32.mrb[0].mxu0
        %v3659 = vadd.f32 %v3498, %v3658
        %v3660 = vpop.f32.mrb[0].mxu0
        %v3661 = vpop.f32.mrb[0].mxu0
        %v3662 = vadd.f32 %v3501, %v3661
        %v3663 = vpop.f32.mrb[0].mxu0
        %3664 = vmatprep.mubr.bf16.mxu0 %v2772
        %3665 = vmatmul.mubr.bf16.gmra.mrb[0].mxu0 %v2771
        %v3666 = vpop.f32.mrb[0].mxu0
        %v3667 = vadd.f32 %v3506, %v3666
        %v3668 = vpop.f32.mrb[0].mxu0
        %v3669 = vpop.f32.mrb[0].mxu0
        %v3670 = vadd.f32 %v3509, %v3669
        %v3671 = vpop.f32.mrb[0].mxu0
        %3672 = vdwg.mxu0
        %3673 = vmatprep.subr.bf16.mxu0 0
        %3674 = vmatpush1.bf16.msra.mxu0 %v3239
        %3675 = vmatprep.subr.bf16.mxu0 0
        %3676 = vmatpush1.bf16.msra.mxu0 %v3240
        %3677 = vmatprep.subr.bf16.mxu0 0
        %3678 = vmatpush1.bf16.msra.mxu0 %v3241
        %3679 = vmatprep.subr.bf16.mxu0 0
        %3680 = vmatpush1.bf16.msra.mxu0 %v3242
        %3681 = vmatprep.subr.bf16.mxu0 0
        %3682 = vmatpush1.bf16.msra.mxu0 %v3243
        %3683 = vmatprep.subr.bf16.mxu0 0
        %3684 = vmatpush1.bf16.msra.mxu0 %v3244
        %3685 = vmatprep.subr.bf16.mxu0 0
        %3686 = vmatpush1.bf16.msra.mxu0 %v3245
        %3687 = vmatprep.subr.bf16.mxu0 0
        %3688 = vmatpush1.bf16.msra.mxu0 %v3246
        %3689 = vmatprep.subr.bf16.mxu0 0
        %3690 = vmatpush1.bf16.msra.mxu0 %v3247
        %3691 = vmatprep.subr.bf16.mxu0 0
        %3692 = vmatpush1.bf16.msra.mxu0 %v3248
        %3693 = vmatprep.subr.bf16.mxu0 0
        %3694 = vmatpush1.bf16.msra.mxu0 %v3249
        %3695 = vmatprep.subr.bf16.mxu0 0
        %3696 = vmatpush1.bf16.msra.mxu0 %v3250
        %3697 = vmatprep.subr.bf16.mxu0 0
        %3698 = vmatpush1.bf16.msra.mxu0 %v3251
        %3699 = vmatprep.subr.bf16.mxu0 0
        %3700 = vmatpush1.bf16.msra.mxu0 %v3252
        %3701 = vmatprep.subr.bf16.mxu0 0
        %3702 = vmatpush1.bf16.msra.mxu0 %v3253
        %3703 = vmatprep.subr.bf16.mxu0 0
        %3704 = vmatpush1.bf16.msra.mxu0 %v3254
        %3705 = vmatprep.mubr.bf16.mxu0 %v2729
        %3706 = vmatmul.mubr.bf16.gmra.mrb[0].mxu0 %v2728
        %v3707 = vpop.f32.mrb[0].mxu0
        %v3708 = vadd.f32 %v3547, %v3707
        %v3709 = vpop.f32.mrb[0].mxu0
        %v3710 = vpop.f32.mrb[0].mxu0
        %v3711 = vadd.f32 %v3550, %v3710
        %v3712 = vpop.f32.mrb[0].mxu0
        %3713 = vmatprep.mubr.bf16.mxu0 %v2732
        %3714 = vmatmul.mubr.bf16.gmra.mrb[0].mxu0 %v2731
        %v3715 = vpop.f32.mrb[0].mxu0
        %v3716 = vadd.f32 %v3555, %v3715
        %v3717 = vpop.f32.mrb[0].mxu0
        %v3718 = vpop.f32.mrb[0].mxu0
        %v3719 = vadd.f32 %v3558, %v3718
        %v3720 = vpop.f32.mrb[0].mxu0
        %3721 = vmatprep.mubr.bf16.mxu0 %v2735
        %3722 = vmatmul.mubr.bf16.gmra.mrb[0].mxu0 %v2734
        %v3723 = vpop.f32.mrb[0].mxu0
        %v3724 = vadd.f32 %v3563, %v3723
        %v3725 = vpop.f32.mrb[0].mxu0
        %v3726 = vpop.f32.mrb[0].mxu0
        %v3727 = vadd.f32 %v3566, %v3726
        %v3728 = vpop.f32.mrb[0].mxu0
        %3729 = vmatprep.mubr.bf16.mxu0 %v2738
        %3730 = vmatmul.mubr.bf16.gmra.mrb[0].mxu0 %v2737
        %v3731 = vpop.f32.mrb[0].mxu0
        %v3732 = vadd.f32 %v3571, %v3731
        %v3733 = vpop.f32.mrb[0].mxu0
        %v3734 = vpop.f32.mrb[0].mxu0
        %v3735 = vadd.f32 %v3574, %v3734
        %v3736 = vpop.f32.mrb[0].mxu0
        %3737 = vmatprep.mubr.bf16.mxu0 %v2741
        %3738 = vmatmul.mubr.bf16.gmra.mrb[0].mxu0 %v2740
        %v3739 = vpop.f32.mrb[0].mxu0
        %v3740 = vadd.f32 %v3579, %v3739
        %v3741 = vpop.f32.mrb[0].mxu0
        %v3742 = vpop.f32.mrb[0].mxu0
        %v3743 = vadd.f32 %v3582, %v3742
        %v3744 = vpop.f32.mrb[0].mxu0
        %3745 = vmatprep.mubr.bf16.mxu0 %v2744
        %3746 = vmatmul.mubr.bf16.gmra.mrb[0].mxu0 %v2743
        %v3747 = vpop.f32.mrb[0].mxu0
        %v3748 = vadd.f32 %v3587, %v3747
        %v3749 = vpop.f32.mrb[0].mxu0
        %v3750 = vpop.f32.mrb[0].mxu0
        %v3751 = vadd.f32 %v3590, %v3750
        %v3752 = vpop.f32.mrb[0].mxu0
        %3753 = vmatprep.mubr.bf16.mxu0 %v2747
        %3754 = vmatmul.mubr.bf16.gmra.mrb[0].mxu0 %v2746
        %v3755 = vpop.f32.mrb[0].mxu0
        %v3756 = vadd.f32 %v3595, %v3755
        %v3757 = vpop.f32.mrb[0].mxu0
        %v3758 = vpop.f32.mrb[0].mxu0
        %v3759 = vadd.f32 %v3598, %v3758
        %v3760 = vpop.f32.mrb[0].mxu0
        %3761 = vmatprep.mubr.bf16.mxu0 %v2750
        %3762 = vmatmul.mubr.bf16.gmra.mrb[0].mxu0 %v2749
        %v3763 = vpop.f32.mrb[0].mxu0
        %v3764 = vadd.f32 %v3603, %v3763
        %v3765 = vpop.f32.mrb[0].mxu0
        %v3766 = vpop.f32.mrb[0].mxu0
        %v3767 = vadd.f32 %v3606, %v3766
        %v3768 = vpop.f32.mrb[0].mxu0
        %3769 = vmatprep.mubr.bf16.mxu0 %v2753
        %3770 = vmatmul.mubr.bf16.gmra.mrb[0].mxu0 %v2752
        %v3771 = vpop.f32.mrb[0].mxu0
        %v3772 = vadd.f32 %v3611, %v3771
        %v3773 = vpop.f32.mrb[0].mxu0
        %v3774 = vpop.f32.mrb[0].mxu0
        %v3775 = vadd.f32 %v3614, %v3774
        %v3776 = vpop.f32.mrb[0].mxu0
        %3777 = vmatprep.mubr.bf16.mxu0 %v2756
        %3778 = vmatmul.mubr.bf16.gmra.mrb[0].mxu0 %v2755
        %v3779 = vpop.f32.mrb[0].mxu0
        %v3780 = vadd.f32 %v3619, %v3779
        %v3781 = vpop.f32.mrb[0].mxu0
        %v3782 = vpop.f32.mrb[0].mxu0
        %v3783 = vadd.f32 %v3622, %v3782
        %v3784 = vpop.f32.mrb[0].mxu0
        %3785 = vmatprep.mubr.bf16.mxu0 %v2759
        %3786 = vmatmul.mubr.bf16.gmra.mrb[0].mxu0 %v2758
        %v3787 = vpop.f32.mrb[0].mxu0
        %v3788 = vadd.f32 %v3627, %v3787
        %v3789 = vpop.f32.mrb[0].mxu0
        %v3790 = vpop.f32.mrb[0].mxu0
        %v3791 = vadd.f32 %v3630, %v3790
        %v3792 = vpop.f32.mrb[0].mxu0
        %3793 = vmatprep.mubr.bf16.mxu0 %v2762
        %3794 = vmatmul.mubr.bf16.gmra.mrb[0].mxu0 %v2761
        %v3795 = vpop.f32.mrb[0].mxu0
        %v3796 = vadd.f32 %v3635, %v3795
        %v3797 = vpop.f32.mrb[0].mxu0
        %v3798 = vpop.f32.mrb[0].mxu0
        %v3799 = vadd.f32 %v3638, %v3798
        %v3800 = vpop.f32.mrb[0].mxu0
        %3801 = vmatprep.mubr.bf16.mxu0 %v2765
        %3802 = vmatmul.mubr.bf16.gmra.mrb[0].mxu0 %v2764
        %v3803 = vpop.f32.mrb[0].mxu0
        %v3804 = vadd.f32 %v3643, %v3803
        %v3805 = vpop.f32.mrb[0].mxu0
        %v3806 = vpop.f32.mrb[0].mxu0
        %v3807 = vadd.f32 %v3646, %v3806
        %v3808 = vpop.f32.mrb[0].mxu0
        %3809 = vmatprep.mubr.bf16.mxu0 %v2768
        %3810 = vmatmul.mubr.bf16.gmra.mrb[0].mxu0 %v2767
        %v3811 = vpop.f32.mrb[0].mxu0
        %v3812 = vadd.f32 %v3651, %v3811
        %v3813 = vpop.f32.mrb[0].mxu0
        %v3814 = vpop.f32.mrb[0].mxu0
        %v3815 = vadd.f32 %v3654, %v3814
        %v3816 = vpop.f32.mrb[0].mxu0
        %3817 = vmatprep.mubr.bf16.mxu0 %v2771
        %3818 = vmatmul.mubr.bf16.gmra.mrb[0].mxu0 %v2770
        %v3819 = vpop.f32.mrb[0].mxu0
        %v3820 = vadd.f32 %v3659, %v3819
        %v3821 = vpop.f32.mrb[0].mxu0
        %v3822 = vpop.f32.mrb[0].mxu0
        %v3823 = vadd.f32 %v3662, %v3822
        %v3824 = vpop.f32.mrb[0].mxu0
        %3825 = vmatprep.mubr.bf16.mxu0 %v2774
        %3826 = vmatmul.mubr.bf16.gmra.mrb[0].mxu0 %v2773
        %v3827 = vpop.f32.mrb[0].mxu0
        %v3828 = vadd.f32 %v3667, %v3827
        %v3829 = vpop.f32.mrb[0].mxu0
        %v3830 = vpop.f32.mrb[0].mxu0
        %v3831 = vadd.f32 %v3670, %v3830
        %v3832 = vpop.f32.mrb[0].mxu0
        %3833 = vdwg.mxu0
        %3834 = vmatprep.subr.bf16.mxu0 0
        %3835 = vmatpush1.bf16.msra.mxu0 %v3255
        %3836 = vmatprep.subr.bf16.mxu0 0
        %3837 = vmatpush1.bf16.msra.mxu0 %v3256
        %3838 = vmatprep.subr.bf16.mxu0 0
        %3839 = vmatpush1.bf16.msra.mxu0 %v3257
        %3840 = vmatprep.subr.bf16.mxu0 0
        %3841 = vmatpush1.bf16.msra.mxu0 %v3258
        %3842 = vmatprep.subr.bf16.mxu0 0
        %3843 = vmatpush1.bf16.msra.mxu0 %v3259
        %3844 = vmatprep.subr.bf16.mxu0 0
        %3845 = vmatpush1.bf16.msra.mxu0 %v3260
        %3846 = vmatprep.subr.bf16.mxu0 0
        %3847 = vmatpush1.bf16.msra.mxu0 %v3261
        %3848 = vmatprep.subr.bf16.mxu0 0
        %3849 = vmatpush1.bf16.msra.mxu0 %v3262
        %3850 = vmatprep.subr.bf16.mxu0 0
        %3851 = vmatpush1.bf16.msra.mxu0 %v3263
        %3852 = vmatprep.subr.bf16.mxu0 0
        %3853 = vmatpush1.bf16.msra.mxu0 %v3264
        %3854 = vmatprep.subr.bf16.mxu0 0
        %3855 = vmatpush1.bf16.msra.mxu0 %v3265
        %3856 = vmatprep.subr.bf16.mxu0 0
        %3857 = vmatpush1.bf16.msra.mxu0 %v3266
        %3858 = vmatprep.subr.bf16.mxu0 0
        %3859 = vmatpush1.bf16.msra.mxu0 %v3267
        %3860 = vmatprep.subr.bf16.mxu0 0
        %3861 = vmatpush1.bf16.msra.mxu0 %v3268
        %3862 = vmatprep.subr.bf16.mxu0 0
        %3863 = vmatpush1.bf16.msra.mxu0 %v3269
        %3864 = vmatprep.subr.bf16.mxu0 0
        %3865 = vmatpush1.bf16.msra.mxu0 %v3270
        %3866 = vmatprep.mubr.bf16.mxu0 %v2731
        %3867 = vmatmul.mubr.bf16.gmra.mrb[0].mxu0 %v2730
        %v3868 = vpop.f32.mrb[0].mxu0
        %v3869 = vadd.f32 %v3708, %v3868
        %v3870 = vpop.f32.mrb[0].mxu0
        %v3871 = vpop.f32.mrb[0].mxu0
        %v3872 = vadd.f32 %v3711, %v3871
        %v3873 = vpop.f32.mrb[0].mxu0
        %3874 = vmatprep.mubr.bf16.mxu0 %v2734
        %3875 = vmatmul.mubr.bf16.gmra.mrb[0].mxu0 %v2733
        %v3876 = vpop.f32.mrb[0].mxu0
        %v3877 = vadd.f32 %v3716, %v3876
        %v3878 = vpop.f32.mrb[0].mxu0
        %v3879 = vpop.f32.mrb[0].mxu0
        %v3880 = vadd.f32 %v3719, %v3879
        %v3881 = vpop.f32.mrb[0].mxu0
        %3882 = vmatprep.mubr.bf16.mxu0 %v2737
        %3883 = vmatmul.mubr.bf16.gmra.mrb[0].mxu0 %v2736
        %v3884 = vpop.f32.mrb[0].mxu0
        %v3885 = vadd.f32 %v3724, %v3884
        %v3886 = vpop.f32.mrb[0].mxu0
        %v3887 = vpop.f32.mrb[0].mxu0
        %v3888 = vadd.f32 %v3727, %v3887
        %v3889 = vpop.f32.mrb[0].mxu0
        %3890 = vmatprep.mubr.bf16.mxu0 %v2740
        %3891 = vmatmul.mubr.bf16.gmra.mrb[0].mxu0 %v2739
        %v3892 = vpop.f32.mrb[0].mxu0
        %v3893 = vadd.f32 %v3732, %v3892
        %v3894 = vpop.f32.mrb[0].mxu0
        %v3895 = vpop.f32.mrb[0].mxu0
        %v3896 = vadd.f32 %v3735, %v3895
        %v3897 = vpop.f32.mrb[0].mxu0
        %3898 = vmatprep.mubr.bf16.mxu0 %v2743
        %3899 = vmatmul.mubr.bf16.gmra.mrb[0].mxu0 %v2742
        %v3900 = vpop.f32.mrb[0].mxu0
        %v3901 = vadd.f32 %v3740, %v3900
        %v3902 = vpop.f32.mrb[0].mxu0
        %v3903 = vpop.f32.mrb[0].mxu0
        %v3904 = vadd.f32 %v3743, %v3903
        %v3905 = vpop.f32.mrb[0].mxu0
        %3906 = vmatprep.mubr.bf16.mxu0 %v2746
        %3907 = vmatmul.mubr.bf16.gmra.mrb[0].mxu0 %v2745
        %v3908 = vpop.f32.mrb[0].mxu0
        %v3909 = vadd.f32 %v3748, %v3908
        %v3910 = vpop.f32.mrb[0].mxu0
        %v3911 = vpop.f32.mrb[0].mxu0
        %v3912 = vadd.f32 %v3751, %v3911
        %v3913 = vpop.f32.mrb[0].mxu0
        %3914 = vmatprep.mubr.bf16.mxu0 %v2749
        %3915 = vmatmul.mubr.bf16.gmra.mrb[0].mxu0 %v2748
        %v3916 = vpop.f32.mrb[0].mxu0
        %v3917 = vadd.f32 %v3756, %v3916
        %v3918 = vpop.f32.mrb[0].mxu0
        %v3919 = vpop.f32.mrb[0].mxu0
        %v3920 = vadd.f32 %v3759, %v3919
        %v3921 = vpop.f32.mrb[0].mxu0
        %3922 = vmatprep.mubr.bf16.mxu0 %v2752
        %3923 = vmatmul.mubr.bf16.gmra.mrb[0].mxu0 %v2751
        %v3924 = vpop.f32.mrb[0].mxu0
        %v3925 = vadd.f32 %v3764, %v3924
        %v3926 = vpop.f32.mrb[0].mxu0
        %v3927 = vpop.f32.mrb[0].mxu0
        %v3928 = vadd.f32 %v3767, %v3927
        %v3929 = vpop.f32.mrb[0].mxu0
        %3930 = vmatprep.mubr.bf16.mxu0 %v2755
        %3931 = vmatmul.mubr.bf16.gmra.mrb[0].mxu0 %v2754
        %v3932 = vpop.f32.mrb[0].mxu0
        %v3933 = vadd.f32 %v3772, %v3932
        %v3934 = vpop.f32.mrb[0].mxu0
        %v3935 = vpop.f32.mrb[0].mxu0
        %v3936 = vadd.f32 %v3775, %v3935
        %v3937 = vpop.f32.mrb[0].mxu0
        %3938 = vmatprep.mubr.bf16.mxu0 %v2758
        %3939 = vmatmul.mubr.bf16.gmra.mrb[0].mxu0 %v2757
        %v3940 = vpop.f32.mrb[0].mxu0
        %v3941 = vadd.f32 %v3780, %v3940
        %v3942 = vpop.f32.mrb[0].mxu0
        %v3943 = vpop.f32.mrb[0].mxu0
        %v3944 = vadd.f32 %v3783, %v3943
        %v3945 = vpop.f32.mrb[0].mxu0
        %3946 = vmatprep.mubr.bf16.mxu0 %v2761
        %3947 = vmatmul.mubr.bf16.gmra.mrb[0].mxu0 %v2760
        %v3948 = vpop.f32.mrb[0].mxu0
        %v3949 = vadd.f32 %v3788, %v3948
        %v3950 = vpop.f32.mrb[0].mxu0
        %v3951 = vpop.f32.mrb[0].mxu0
        %v3952 = vadd.f32 %v3791, %v3951
        %v3953 = vpop.f32.mrb[0].mxu0
        %3954 = vmatprep.mubr.bf16.mxu0 %v2764
        %3955 = vmatmul.mubr.bf16.gmra.mrb[0].mxu0 %v2763
        %v3956 = vpop.f32.mrb[0].mxu0
        %v3957 = vadd.f32 %v3796, %v3956
        %v3958 = vpop.f32.mrb[0].mxu0
        %v3959 = vpop.f32.mrb[0].mxu0
        %v3960 = vadd.f32 %v3799, %v3959
        %v3961 = vpop.f32.mrb[0].mxu0
        %3962 = vmatprep.mubr.bf16.mxu0 %v2767
        %3963 = vmatmul.mubr.bf16.gmra.mrb[0].mxu0 %v2766
        %v3964 = vpop.f32.mrb[0].mxu0
        %v3965 = vadd.f32 %v3804, %v3964
        %v3966 = vpop.f32.mrb[0].mxu0
        %v3967 = vpop.f32.mrb[0].mxu0
        %v3968 = vadd.f32 %v3807, %v3967
        %v3969 = vpop.f32.mrb[0].mxu0
        %3970 = vmatprep.mubr.bf16.mxu0 %v2770
        %3971 = vmatmul.mubr.bf16.gmra.mrb[0].mxu0 %v2769
        %v3972 = vpop.f32.mrb[0].mxu0
        %v3973 = vadd.f32 %v3812, %v3972
        %v3974 = vpop.f32.mrb[0].mxu0
        %v3975 = vpop.f32.mrb[0].mxu0
        %v3976 = vadd.f32 %v3815, %v3975
        %v3977 = vpop.f32.mrb[0].mxu0
        %3978 = vmatprep.mubr.bf16.mxu0 %v2773
        %3979 = vmatmul.mubr.bf16.gmra.mrb[0].mxu0 %v2772
        %v3980 = vpop.f32.mrb[0].mxu0
        %v3981 = vadd.f32 %v3820, %v3980
        %v3982 = vpop.f32.mrb[0].mxu0
        %v3983 = vpop.f32.mrb[0].mxu0
        %v3984 = vadd.f32 %v3823, %v3983
        %v3985 = vpop.f32.mrb[0].mxu0
        %3986 = vmatprep.mubr.bf16.mxu0 %v2725
        %3987 = vmatmul.mubr.bf16.gmra.mrb[0].mxu0 %v2724
        %v3988 = vpop.f32.mrb[0].mxu0
        %v3989 = vadd.f32 %v3828, %v3988
        %v3990 = vpop.f32.mrb[0].mxu0
        %v3991 = vpop.f32.mrb[0].mxu0
        %v3992 = vadd.f32 %v3831, %v3991
        %v3993 = vpop.f32.mrb[0].mxu0
        %3994 = vdwg.mxu0
        %3995 = vmatprep.subr.bf16.mxu0 0
        %3996 = vmatpush1.bf16.msra.mxu0 %v3271
        %3997 = vmatprep.subr.bf16.mxu0 0
        %3998 = vmatpush1.bf16.msra.mxu0 %v3272
        %3999 = vmatprep.subr.bf16.mxu0 0
        %4000 = vmatpush1.bf16.msra.mxu0 %v3273
        %4001 = vmatprep.subr.bf16.mxu0 0
        %4002 = vmatpush1.bf16.msra.mxu0 %v3274
        %4003 = vmatprep.subr.bf16.mxu0 0
        %4004 = vmatpush1.bf16.msra.mxu0 %v3275
        %4005 = vmatprep.subr.bf16.mxu0 0
        %4006 = vmatpush1.bf16.msra.mxu0 %v3276
        %4007 = vmatprep.subr.bf16.mxu0 0
        %4008 = vmatpush1.bf16.msra.mxu0 %v3277
        %4009 = vmatprep.subr.bf16.mxu0 0
        %4010 = vmatpush1.bf16.msra.mxu0 %v3278
        %4011 = vmatprep.subr.bf16.mxu0 0
        %4012 = vmatpush1.bf16.msra.mxu0 0
        %4013 = vmatprep.subr.bf16.mxu0 0
        %4014 = vmatpush1.bf16.msra.mxu0 0
        %4015 = vmatprep.subr.bf16.mxu0 0
        %4016 = vmatpush1.bf16.msra.mxu0 0
        %4017 = vmatprep.subr.bf16.mxu0 0
        %4018 = vmatpush1.bf16.msra.mxu0 0
        %4019 = vmatprep.subr.bf16.mxu0 0
        %4020 = vmatpush1.bf16.msra.mxu0 0
        %4021 = vmatprep.subr.bf16.mxu0 0
        %4022 = vmatpush1.bf16.msra.mxu0 0
        %4023 = vmatprep.subr.bf16.mxu0 0
        %4024 = vmatpush1.bf16.msra.mxu0 0
        %4025 = vmatprep.subr.bf16.mxu0 0
        %4026 = vmatpush1.bf16.msra.mxu0 0
        %4027 = vmatprep.mubr.bf16.mxu0 0
        %4028 = vmatmul.mubr.bf16.gmra.mrb[0].mxu0 %v2732
        %v4029 = vpop.f32.mrb[0].mxu0
        %v4030 = vadd.f32 %v3869, %v4029
        %v4031 = vpop.f32.mrb[0].mxu0
        %v4032 = vpop.f32.mrb[0].mxu0
        %v4033 = vadd.f32 %v3872, %v4032
        %v4034 = vpop.f32.mrb[0].mxu0
        %4035 = vmatprep.mubr.bf16.mxu0 0
        %4036 = vmatmul.mubr.bf16.gmra.mrb[0].mxu0 %v2735
        %v4037 = vpop.f32.mrb[0].mxu0
        %v4038 = vadd.f32 %v3877, %v4037
        %v4039 = vpop.f32.mrb[0].mxu0
        %v4040 = vpop.f32.mrb[0].mxu0
        %v4041 = vadd.f32 %v3880, %v4040
        %v4042 = vpop.f32.mrb[0].mxu0
        %4043 = vmatprep.mubr.bf16.mxu0 0
        %4044 = vmatmul.mubr.bf16.gmra.mrb[0].mxu0 %v2738
        %v4045 = vpop.f32.mrb[0].mxu0
        %v4046 = vadd.f32 %v3885, %v4045
        %v4047 = vpop.f32.mrb[0].mxu0
        %v4048 = vpop.f32.mrb[0].mxu0
        %v4049 = vadd.f32 %v3888, %v4048
        %v4050 = vpop.f32.mrb[0].mxu0
        %4051 = vmatprep.mubr.bf16.mxu0 0
        %4052 = vmatmul.mubr.bf16.gmra.mrb[0].mxu0 %v2741
        %v4053 = vpop.f32.mrb[0].mxu0
        %v4054 = vadd.f32 %v3893, %v4053
        %v4055 = vpop.f32.mrb[0].mxu0
        %v4056 = vpop.f32.mrb[0].mxu0
        %v4057 = vadd.f32 %v3896, %v4056
        %v4058 = vpop.f32.mrb[0].mxu0
        %4059 = vmatprep.mubr.bf16.mxu0 0
        %4060 = vmatmul.mubr.bf16.gmra.mrb[0].mxu0 %v2744
        %v4061 = vpop.f32.mrb[0].mxu0
        %v4062 = vadd.f32 %v3901, %v4061
        %v4063 = vpop.f32.mrb[0].mxu0
        %v4064 = vpop.f32.mrb[0].mxu0
        %v4065 = vadd.f32 %v3904, %v4064
        %v4066 = vpop.f32.mrb[0].mxu0
        %4067 = vmatprep.mubr.bf16.mxu0 0
        %4068 = vmatmul.mubr.bf16.gmra.mrb[0].mxu0 %v2747
        %v4069 = vpop.f32.mrb[0].mxu0
        %v4070 = vadd.f32 %v3909, %v4069
        %v4071 = vpop.f32.mrb[0].mxu0
        %v4072 = vpop.f32.mrb[0].mxu0
        %v4073 = vadd.f32 %v3912, %v4072
        %v4074 = vpop.f32.mrb[0].mxu0
        %4075 = vmatprep.mubr.bf16.mxu0 0
        %4076 = vmatmul.mubr.bf16.gmra.mrb[0].mxu0 %v2750
        %v4077 = vpop.f32.mrb[0].mxu0
        %v4078 = vadd.f32 %v3917, %v4077
        %v4079 = vpop.f32.mrb[0].mxu0
        %v4080 = vpop.f32.mrb[0].mxu0
        %v4081 = vadd.f32 %v3920, %v4080
        %v4082 = vpop.f32.mrb[0].mxu0
        %4083 = vmatprep.mubr.bf16.mxu0 0
        %4084 = vmatmul.mubr.bf16.gmra.mrb[0].mxu0 %v2753
        %v4085 = vpop.f32.mrb[0].mxu0
        %v4086 = vadd.f32 %v3925, %v4085
        %v4087 = vpop.f32.mrb[0].mxu0
        %v4088 = vpop.f32.mrb[0].mxu0
        %v4089 = vadd.f32 %v3928, %v4088
        %v4090 = vpop.f32.mrb[0].mxu0
        %4091 = vmatprep.mubr.bf16.mxu0 0
        %4092 = vmatmul.mubr.bf16.gmra.mrb[0].mxu0 %v2756
        %v4093 = vpop.f32.mrb[0].mxu0
        %v4094 = vadd.f32 %v3933, %v4093
        %v4095 = vpop.f32.mrb[0].mxu0
        %v4096 = vpop.f32.mrb[0].mxu0
        %v4097 = vadd.f32 %v3936, %v4096
        %v4098 = vpop.f32.mrb[0].mxu0
        %4099 = vmatprep.mubr.bf16.mxu0 0
        %4100 = vmatmul.mubr.bf16.gmra.mrb[0].mxu0 %v2759
        %v4101 = vpop.f32.mrb[0].mxu0
        %v4102 = vadd.f32 %v3941, %v4101
        %v4103 = vpop.f32.mrb[0].mxu0
        %v4104 = vpop.f32.mrb[0].mxu0
        %v4105 = vadd.f32 %v3944, %v4104
        %v4106 = vpop.f32.mrb[0].mxu0
        %4107 = vmatprep.mubr.bf16.mxu0 0
        %4108 = vmatmul.mubr.bf16.gmra.mrb[0].mxu0 %v2762
        %v4109 = vpop.f32.mrb[0].mxu0
        %v4110 = vadd.f32 %v3949, %v4109
        %v4111 = vpop.f32.mrb[0].mxu0
        %v4112 = vpop.f32.mrb[0].mxu0
        %v4113 = vadd.f32 %v3952, %v4112
        %v4114 = vpop.f32.mrb[0].mxu0
        %4115 = vmatprep.mubr.bf16.mxu0 0
        %4116 = vmatmul.mubr.bf16.gmra.mrb[0].mxu0 %v2765
        %v4117 = vpop.f32.mrb[0].mxu0
        %v4118 = vadd.f32 %v3957, %v4117
        %v4119 = vpop.f32.mrb[0].mxu0
        %v4120 = vpop.f32.mrb[0].mxu0
        %v4121 = vadd.f32 %v3960, %v4120
        %v4122 = vpop.f32.mrb[0].mxu0
        %4123 = vmatprep.mubr.bf16.mxu0 0
        %4124 = vmatmul.mubr.bf16.gmra.mrb[0].mxu0 %v2768
        %v4125 = vpop.f32.mrb[0].mxu0
        %v4126 = vadd.f32 %v3965, %v4125
        %v4127 = vpop.f32.mrb[0].mxu0
        %v4128 = vpop.f32.mrb[0].mxu0
        %v4129 = vadd.f32 %v3968, %v4128
        %v4130 = vpop.f32.mrb[0].mxu0
        %4131 = vmatprep.mubr.bf16.mxu0 0
        %4132 = vmatmul.mubr.bf16.gmra.mrb[0].mxu0 %v2771
        %v4133 = vpop.f32.mrb[0].mxu0
        %v4134 = vadd.f32 %v3973, %v4133
        %v4135 = vpop.f32.mrb[0].mxu0
        %v4136 = vpop.f32.mrb[0].mxu0
        %v4137 = vadd.f32 %v3976, %v4136
        %v4138 = vpop.f32.mrb[0].mxu0
        %4139 = vmatprep.mubr.bf16.mxu0 0
        %4140 = vmatmul.mubr.bf16.gmra.mrb[0].mxu0 %v2774
        %v4141 = vpop.f32.mrb[0].mxu0
        %v4142 = vadd.f32 %v3981, %v4141
        %v4143 = vpop.f32.mrb[0].mxu0
        %v4144 = vpop.f32.mrb[0].mxu0
        %v4145 = vadd.f32 %v3984, %v4144
        %v4146 = vpop.f32.mrb[0].mxu0
        %4147 = vmatprep.mubr.bf16.mxu0 0
        %4148 = vmatmul.mubr.bf16.gmra.mrb[0].mxu0 %v2726
        %v4149 = vpop.f32.mrb[0].mxu0
        %v4150 = vadd.f32 %v3989, %v4149
        %v4151 = vpop.f32.mrb[0].mxu0
        %v4152 = vpop.f32.mrb[0].mxu0
        %v4153 = vadd.f32 %v3992, %v4152
        %v4154 = vpop.f32.mrb[0].mxu0
        %4155 = vdwg.mxu0
        %v4156 = vld [vmem:[#allocation11] sm:$0x1]
        %v4158 = vlaneseq
        %v4159 = vshrl.u32 %v4158, 7
        %v4160 = vsub.s32 0, %v4159
        %v4161 = vrot.slane %v4156, %v4160
        %v4163 = vmul.f32 %v4030, %v4161
        %v4164 = vmul.f32 %v4033, %v4161
        %v4165 = vmul.f32 %v4038, %v4161
        %v4166 = vmul.f32 %v4041, %v4161
        %v4167 = vmul.f32 %v4046, %v4161
        %v4168 = vmul.f32 %v4049, %v4161
        %v4169 = vmul.f32 %v4054, %v4161
        %v4170 = vmul.f32 %v4057, %v4161
        %v4171 = vmul.f32 %v4062, %v4161
        %v4172 = vmul.f32 %v4065, %v4161
        %v4173 = vmul.f32 %v4070, %v4161
        %v4174 = vmul.f32 %v4073, %v4161
        %v4175 = vmul.f32 %v4078, %v4161
        %v4176 = vmul.f32 %v4081, %v4161
        %v4177 = vmul.f32 %v4086, %v4161
        %v4178 = vmul.f32 %v4089, %v4161
        %v4179 = vmul.f32 %v4094, %v4161
        %v4180 = vmul.f32 %v4097, %v4161
        %v4181 = vmul.f32 %v4102, %v4161
        %v4182 = vmul.f32 %v4105, %v4161
        %v4183 = vmul.f32 %v4110, %v4161
        %v4184 = vmul.f32 %v4113, %v4161
        %v4185 = vmul.f32 %v4118, %v4161
        %v4186 = vmul.f32 %v4121, %v4161
        %v4187 = vmul.f32 %v4126, %v4161
        %v4188 = vmul.f32 %v4129, %v4161
        %v4189 = vmul.f32 %v4134, %v4161
        %v4190 = vmul.f32 %v4137, %v4161
        %v4191 = vmul.f32 %v4142, %v4161
        %v4192 = vmul.f32 %v4145, %v4161
        %v4193 = vmul.f32 %v4150, %v4161
        %v4194 = vmul.f32 %v4153, %v4161
        %v4195 = vld [vmem:[#allocation13] sm:$0x1]
        %v4197 = vlaneseq
        %v4198 = vshrl.u32 %v4197, 7
        %v4199 = vsub.s32 0, %v4198
        %v4200 = vrot.slane %v4195, %v4199
        %v4202 = vadd.f32 %v4163, %v4200
        %v4203 = vadd.f32 %v4164, %v4200
        %v4204 = vadd.f32 %v4165, %v4200
        %v4205 = vadd.f32 %v4166, %v4200
        %v4206 = vadd.f32 %v4167, %v4200
        %v4207 = vadd.f32 %v4168, %v4200
        %v4208 = vadd.f32 %v4169, %v4200
        %v4209 = vadd.f32 %v4170, %v4200
        %v4210 = vadd.f32 %v4171, %v4200
        %v4211 = vadd.f32 %v4172, %v4200
        %v4212 = vadd.f32 %v4173, %v4200
        %v4213 = vadd.f32 %v4174, %v4200
        %v4214 = vadd.f32 %v4175, %v4200
        %v4215 = vadd.f32 %v4176, %v4200
        %v4216 = vadd.f32 %v4177, %v4200
        %v4217 = vadd.f32 %v4178, %v4200
        %v4218 = vadd.f32 %v4179, %v4200
        %v4219 = vadd.f32 %v4180, %v4200
        %v4220 = vadd.f32 %v4181, %v4200
        %v4221 = vadd.f32 %v4182, %v4200
        %v4222 = vadd.f32 %v4183, %v4200
        %v4223 = vadd.f32 %v4184, %v4200
        %v4224 = vadd.f32 %v4185, %v4200
        %v4225 = vadd.f32 %v4186, %v4200
        %v4226 = vadd.f32 %v4187, %v4200
        %v4227 = vadd.f32 %v4188, %v4200
        %v4228 = vadd.f32 %v4189, %v4200
        %v4229 = vadd.f32 %v4190, %v4200
        %v4230 = vadd.f32 %v4191, %v4200
        %v4231 = vadd.f32 %v4192, %v4200
        %v4232 = vadd.f32 %v4193, %v4200
        %v4233 = vadd.f32 %v4194, %v4200
        %v4234 = vmax.f32 %v4202, 0.0
        %v4235 = vmax.f32 %v4203, 0.0
        %v4236 = vmax.f32 %v4204, 0.0
        %v4237 = vmax.f32 %v4205, 0.0
        %v4238 = vmax.f32 %v4206, 0.0
        %v4239 = vmax.f32 %v4207, 0.0
        %v4240 = vmax.f32 %v4208, 0.0
        %v4241 = vmax.f32 %v4209, 0.0
        %v4242 = vmax.f32 %v4210, 0.0
        %v4243 = vmax.f32 %v4211, 0.0
        %v4244 = vmax.f32 %v4212, 0.0
        %v4245 = vmax.f32 %v4213, 0.0
        %v4246 = vmax.f32 %v4214, 0.0
        %v4247 = vmax.f32 %v4215, 0.0
        %v4248 = vmax.f32 %v4216, 0.0
        %v4249 = vmax.f32 %v4217, 0.0
        %v4250 = vmax.f32 %v4218, 0.0
        %v4251 = vmax.f32 %v4219, 0.0
        %v4252 = vmax.f32 %v4220, 0.0
        %v4253 = vmax.f32 %v4221, 0.0
        %v4254 = vmax.f32 %v4222, 0.0
        %v4255 = vmax.f32 %v4223, 0.0
        %v4256 = vmax.f32 %v4224, 0.0
        %v4257 = vmax.f32 %v4225, 0.0
        %v4258 = vmax.f32 %v4226, 0.0
        %v4259 = vmax.f32 %v4227, 0.0
        %v4260 = vmax.f32 %v4228, 0.0
        %v4261 = vmax.f32 %v4229, 0.0
        %v4262 = vmax.f32 %v4230, 0.0
        %v4263 = vmax.f32 %v4231, 0.0
        %v4264 = vmax.f32 %v4232, 0.0
        %v4265 = vmax.f32 %v4233, 0.0
        %4266 = vst [vmem:[%s375] sm:$0xff] %v4234
        %4267 = vst [vmem:[%s375 + $0x8] sm:$0xff] %v4235
        %4268 = vst [vmem:[%s375 + $0x10] sm:$0xff] %v4236
        %4269 = vst [vmem:[%s375 + $0x18] sm:$0xff] %v4237
        %4270 = vst [vmem:[%s375 + $0x20] sm:$0xff] %v4238
        %4271 = vst [vmem:[%s375 + $0x28] sm:$0xff] %v4239
        %4272 = vst [vmem:[%s375 + $0x30] sm:$0xff] %v4240
        %4273 = vst [vmem:[%s375 + $0x38] sm:$0xff] %v4241
        %4274 = vst [vmem:[%s375 + $0x40] sm:$0xff] %v4242
        %4275 = vst [vmem:[%s375 + $0x48] sm:$0xff] %v4243
        %4276 = vst [vmem:[%s375 + $0x50] sm:$0xff] %v4244
        %4277 = vst [vmem:[%s375 + $0x58] sm:$0xff] %v4245
        %4278 = vst [vmem:[%s375 + $0x60] sm:$0xff] %v4246
        %4279 = vst [vmem:[%s375 + $0x68] sm:$0xff] %v4247
        %4280 = vst [vmem:[%s375 + $0x70] sm:$0xff] %v4248
        %4281 = vst [vmem:[%s375 + $0x78] sm:$0xff] %v4249
        %4282 = vst [vmem:[%s375 + $0x80] sm:$0xff] %v4250
        %4283 = vst [vmem:[%s375 + $0x88] sm:$0xff] %v4251
        %4284 = vst [vmem:[%s375 + $0x90] sm:$0xff] %v4252
        %4285 = vst [vmem:[%s375 + $0x98] sm:$0xff] %v4253
        %4286 = vst [vmem:[%s375 + $0xa0] sm:$0xff] %v4254
        %4287 = vst [vmem:[%s375 + $0xa8] sm:$0xff] %v4255
        %4288 = vst [vmem:[%s375 + $0xb0] sm:$0xff] %v4256
        %4289 = vst [vmem:[%s375 + $0xb8] sm:$0xff] %v4257
        %4290 = vst [vmem:[%s375 + $0xc0] sm:$0xff] %v4258
        %4291 = vst [vmem:[%s375 + $0xc8] sm:$0xff] %v4259
        %4292 = vst [vmem:[%s375 + $0xd0] sm:$0xff] %v4260
        %4293 = vst [vmem:[%s375 + $0xd8] sm:$0xff] %v4261
        %4294 = vst [vmem:[%s375 + $0xe0] sm:$0xff] %v4262
        %4295 = vst [vmem:[%s375 + $0xe8] sm:$0xff] %v4263
        %4296 = vst [vmem:[%s375 + $0xf0] sm:$0xff] %v4264
        %4297 = vst [vmem:[%s375 + $0xf8] sm:$0xff] %v4265
        %s4298 = sand.u32 %s187, 1
        %s4299 = scalar_lea.sflag [#allocation4], %s4298
        %s4300 = sand.u32 %s187, 1
        %s4301 = smul.addr %s4300, 256
        %s4302 = scalar_lea.vmem [#allocation14], %s4301
        // Predicated region
        $region77: #{tpu_custom_call.1} parent=47 // pred_check
          %p4303 = pneg %p197
        $region78: #{tpu_custom_call.1} parent=47 // pred_check_branch
          %4305 = sbr.rel (%p4303) target = $region80
        $region79: #{tpu_custom_call.1} parent=47 // pred_region
          %s4307 = ssub.s32 4096, 4096
          %4308 = vsyncadd %s4299, %s4307
          %s4309 = smul.addr %s27, 32
          %s4310 = smul.addr %s4309, 128
          %s4311 = scalar_lea.hbm %s7, %s4310
          %s4312 = sshll.u32 %s4302, 4
          %s4313 = int_to_ptr.vmem [resolvable:$true] %s4312
          %4318 = dma.vmem_to_hbm [thread:$0]  %s4313, 4096, %s4311, %s4299, 128, 128, 8
        $region80: #{tpu_custom_call.1} parent=47 // pred_fallthru
          _
      $region48: #{tpu_custom_call.1} parent=5 // pred_fallthru
        _
      %p4319 = scmp.le.s32.totalorder 2, %s22
      // Predicated region
      $region81: #{tpu_custom_call.1} parent=5 // pred_check
        %p4320 = pneg %p4319
      $region82: #{tpu_custom_call.1} parent=5 // pred_check_branch
        %4322 = sbr.rel (%p4320) target = $region84
      $region83: #{tpu_custom_call.1} parent=5 // pred_region
        %s4323 = ssub.s32 %s22, 2
        // Predicated region
        $region85: #{tpu_custom_call.1} parent=83 // pred_check
          %p4324 = pneg %p203
        $region86: #{tpu_custom_call.1} parent=83 // pred_check_branch
          %4326 = sbr.rel (%p4324) target = $region88
        $region87: #{tpu_custom_call.1} parent=83 // pred_region
          %s4327 = sand.u32 %s188, 1
          %s4328 = scalar_lea.sflag [#allocation4], %s4327
          %s4329 = sand.u32 %s188, 1
          %s4330 = smul.addr %s4329, 256
          %s4331 = scalar_lea.vmem [#allocation14], %s4330
          %4332 = dma.done %s4328, 4096
        $region88: #{tpu_custom_call.1} parent=83 // pred_fallthru
          _
      $region84: #{tpu_custom_call.1} parent=5 // pred_fallthru
        _
    $region6: #{tpu_custom_call.1} parent=1 // loop_footer
      %s26 = sadd.s32 1, %s22
    $region7: #{tpu_custom_call.1} parent=1 // loop_footer_branch
      %21 = sbr.rel target = $region3
    $region8: #{tpu_custom_call.1} parent=1 // loop_exit
      _
    %4333 = vsyncpa [#allocation3], 1
    %s4334 = scalar_lea.sflag [#allocation3], 1
    %4335 = vsyncpa %s4334, 1
    %4336 = vsyncpa [#allocation6], 1
    %4337 = vsyncpa [#allocation9], 1
    %4338 = vsyncpa [#allocation12], 1
    %4339 = vsyncpa [#allocation4], 1
    %s4340 = scalar_lea.sflag [#allocation4], 1
    %4341 = vsyncpa %s4340, 1

</llo_original>
